<compile_context>
chip_gen: v6e
topology: v6e:2x2x1
jax: 0.10.0
libtpu: 0.0.40
codegen_flags: <defaults>
</compile_context>

<pallas_src>
import math
from functools import partial

import jax
import jax.numpy as jnp
from jax.experimental import pallas as pl
from jax.experimental.pallas import tpu as pltpu


_COMPILER_PARAMS = pltpu.CompilerParams(vmem_limit_bytes=32 * 1024 * 1024)


# ----------------------------- Pallas kernels ------------------------------

def _conv_gemm_relu_kernel(w_ref, p_ref, b_ref, o_ref):
    # w: (Cout, Cin*K*K) bf16 ; p: (Cin*K*K, N*HW) bf16 ; b: (Cout, 1) f32
    # o: (Cout, N*HW) bf16 = relu(w @ p + b), f32 MXU accumulation.
    acc = jnp.dot(w_ref[...], p_ref[...], preferred_element_type=jnp.float32)
    o_ref[...] = jnp.maximum(acc + b_ref[...], 0.0).astype(o_ref.dtype)


def _head_kernel(a_ref, w1_ref, w2_ref, scal_ref, o_ref, *, n_cls, kk, d1, k_same):
    # a   : (N, 321)             bf16, [flattened detector features | 1]
    # w1  : (321, 51)            bf16, [[fc1_w^T ; fc1_b] | unit col] -> h_aug keeps a ones feature
    # w2  : (51, n_cls + kk*51)  bf16, [[fc2_w^T ; fc2_b] | Wide], Wide[d2, k*51+d1] = Baug[k, d1, d2]
    # scal: (2, kk)              f32 SMEM, row0 = lastfc weights (same ++ sum9), row1[0:2] = lastfc biases
    # o   : (N, >=2N+n_cls)      f32, cols [0:N)=same-pair matrix, [N:2N)=sum9-pair matrix,
    #                            [2N:2N+n_cls)=fc2 logits, rest zero padding (lane-dense store)
    n = a_ref.shape[0]
    h_aug = jnp.maximum(
        jnp.dot(a_ref[...], w1_ref[...], preferred_element_type=jnp.float32), 0.0)  # (N, 51), col 50 == 1
    hb = h_aug.astype(jnp.bfloat16)
    big = jnp.dot(hb, w2_ref[...], preferred_element_type=jnp.float32)               # (N, n_cls + kk*51)
    logits = big[:, :n_cls]
    ht = h_aug.T.astype(jnp.bfloat16)                                                # (51, N)

    acc_same = jnp.zeros((n, n), jnp.float32)
    acc_sum9 = jnp.zeros((n, n), jnp.float32)
    for k in range(kk):
        # uk[i, d1] = sum_d2 h_aug[i, d2] * Baug[k, d1, d2]   (row i plays x2)
        uk = big[:, n_cls + k * d1:n_cls + (k + 1) * d1].astype(jnp.bfloat16)
        # ak[i, j]  = sum_d1 uk[i, d1] * h_aug[j, d1]         (col j plays x1) == pair p = i*n + j
        ak = jnp.dot(uk, ht, preferred_element_type=jnp.float32)
        tk = jnp.tanh(ak) * scal_ref[0, k]
        if k < k_same:
            acc_same = acc_same + tk
        else:
            acc_sum9 = acc_sum9 + tk

    pieces = [acc_same + scal_ref[1, 0], acc_sum9 + scal_ref[1, 1], logits]
    rem = o_ref.shape[1] - 2 * n - n_cls
    if rem:
        pieces.append(jnp.zeros((n, rem), jnp.float32))
    o_ref[...] = jnp.concatenate(pieces, axis=1)


# ------------------------------- Wrappers -----------------------------------

def conv2d_relu_cm(x_cm, w, b):
    """relu(conv2d(x, w) + b), 'valid', channel-major (Cin,N,H,W) -> (Cout,N,Ho,Wo) bf16."""
    Cin, N, H, W = x_cm.shape
    Cout, _, Kh, Kw = w.shape
    Ho, Wo = H - Kh + 1, W - Kw + 1
    # im2col in glue; channel-major layout => (Cin*K*K, N*Ho*Wo) slab needs NO transpose.
    cols = [x_cm[:, :, ky:ky + Ho, kx:kx + Wo] for ky in range(Kh) for kx in range(Kw)]
    patches = jnp.stack(cols, axis=1).reshape(Cin * Kh * Kw, N * Ho * Wo).astype(jnp.bfloat16)
    out = pl.pallas_call(
        _conv_gemm_relu_kernel,
        out_shape=jax.ShapeDtypeStruct((Cout, N * Ho * Wo), jnp.bfloat16),
        compiler_params=_COMPILER_PARAMS,
    )(w.reshape(Cout, Cin * Kh * Kw).astype(jnp.bfloat16), patches,
      b.reshape(Cout, 1).astype(jnp.float32))
    return out.reshape(Cout, N, Ho, Wo)


def max_pool_2x2_cm(x):  # glue: elementwise max of strided views, channel-major (C,N,H,W)
    return jnp.maximum(
        jnp.maximum(x[:, :, 0::2, 0::2], x[:, :, 0::2, 1::2]),
        jnp.maximum(x[:, :, 1::2, 0::2], x[:, :, 1::2, 1::2]))


def head_forward(a_aug, det, same_head, sum9_head):
    """fc1/fc2 + both pairwise heads in ONE pallas_call, with N-row GEMM restructuring."""
    N = a_aug.shape[0]
    D = det['fc1_w'].shape[0]             # 50
    D1 = D + 1                            # 51 (ones feature)
    F = det['fc1_w'].shape[1]             # 320
    C = det['fc2_w'].shape[0]             # 10
    K = same_head['fcrel_w'].shape[0]     # 10
    KK = 2 * K

    # fc1 folded with its bias + a unit column so h_aug = relu(a_aug @ w1) carries a ones feature.
    w1 = jnp.zeros((F + 1, D1), jnp.float32)
    w1 = w1.at[:F, :D].set(det['fc1_w'].T)
    w1 = w1.at[F, :D].set(det['fc1_b'])
    w1 = w1.at[F, D].set(1.0)

    # fc2 folded with its bias (acts on the ones feature).
    w2a = jnp.zeros((D1, C), jnp.float32)
    w2a = w2a.at[:D, :].set(det['fc2_w'].T)
    w2a = w2a.at[D, :].set(det['fc2_b'])

    def augmented_bilinear(hd):
        # Baug[k] (D1,D1): x1_aug^T Baug[k] x2_aug == bilinear(x1,x2)[k] + fcrel([x1,x2])[k]
        # (both biases folded into the [D,D] corner).
        Ba = jnp.zeros((K, D1, D1), jnp.float32)
        Ba = Ba.at[:, :D, :D].set(hd['bil_w'])
        Ba = Ba.at[:, :D, D].set(hd['fcrel_w'][:, :D])    # x1 half of fcrel
        Ba = Ba.at[:, D, :D].set(hd['fcrel_w'][:, D:])    # x2 half of fcrel
        Ba = Ba.at[:, D, D].set(hd['fcrel_b'] + hd['bil_b'])
        return Ba

    Ball = jnp.concatenate(
        [augmented_bilinear(same_head), augmented_bilinear(sum9_head)], axis=0)  # (2K, D1, D1)
    wide = jnp.transpose(Ball, (2, 0, 1)).reshape(D1, KK * D1)   # wide[d2, k*D1+d1] = Ball[k, d1, d2]
    w2 = jnp.concatenate([w2a, wide], axis=1).astype(jnp.bfloat16)               # (D1, C + 2K*D1)

    # SMEM scalar slab: lastfc weights per k (same then sum9) and the two lastfc biases.
    scal = jnp.zeros((2, KK), jnp.float32)
    scal = scal.at[0, :K].set(same_head['last_w'].reshape(K))
    scal = scal.at[0, K:].set(sum9_head['last_w'].reshape(K))
    scal = scal.at[1, 0].set(same_head['last_b'][0])
    scal = scal.at[1, 1].set(sum9_head['last_b'][0])

    out_w = max(128, ((2 * N + C + 127) // 128) * 128)   # lane-dense packed output slab
    slab = pl.pallas_call(
        partial(_head_kernel, n_cls=C, kk=KK, d1=D1, k_same=K),
        out_shape=jax.ShapeDtypeStruct((N, out_w), jnp.float32),
        in_specs=[pl.BlockSpec(memory_space=pltpu.MemorySpace.VMEM),
                  pl.BlockSpec(memory_space=pltpu.MemorySpace.VMEM),
                  pl.BlockSpec(memory_space=pltpu.MemorySpace.VMEM),
                  pl.BlockSpec(memory_space=pltpu.MemorySpace.SMEM)],
        out_specs=pl.BlockSpec(memory_space=pltpu.MemorySpace.VMEM),
        compiler_params=_COMPILER_PARAMS,
    )(a_aug, w1.astype(jnp.bfloat16), w2, scal)

    logits = slab[:, 2 * N:2 * N + C]
    logits_same = slab[:, 0:N].reshape(N * N, 1)       # [i, j] -> pair p = i*N + j
    logits_sum9 = slab[:, N:2 * N].reshape(N * N, 1)
    return logits, logits_same, logits_sum9


def bothnet_forward(params, x, labels):
    det = params['detector']
    n = x.shape[0]
    # DigitsNet (eval mode): conv+relu Pallas GEMMs in channel-major layout, 2x2 pools in glue.
    x_cm = x.astype(jnp.bfloat16).transpose(1, 0, 2, 3)                               # (1, N, 28, 28)
    a1 = max_pool_2x2_cm(conv2d_relu_cm(x_cm, det['conv1_w'], det['conv1_b']))        # (10, N, 12, 12)
    a2 = max_pool_2x2_cm(conv2d_relu_cm(a1, det['conv2_w'], det['conv2_b']))          # (20, N, 4, 4)
    a2f = a2.transpose(1, 0, 2, 3).reshape(n, -1)       # (N, 320) == torch .view(-1, 320) ordering
    a_aug = jnp.concatenate([a2f, jnp.ones((n, 1), a2f.dtype)], axis=1)               # (N, 321)

    logits, logits_same, logits_sum9 = head_forward(
        a_aug, det, params['same_head'], params['sum9_head'])

    # pair expansion of logits/labels (glue): index j fast (x), index i slow (y)
    logits_x = jnp.tile(logits, (n, 1))
    logits_y = jnp.repeat(logits, n, axis=0)
    labels_x = jnp.tile(labels, n)
    labels_y = jnp.repeat(labels, n)
    labels_same = labels_x == labels_y
    labels_sum9 = (labels_x + labels_y) == 9
    # TODO(synk): writer.add_scalar / register_hook gradient-logging side effects omitted.
    return {
        'logits_unpaired': logits,
        'logits_1': logits_x,
        'logits_2': logits_y,
        'logits_same': logits_same,
        'logits_same_sqz': jnp.squeeze(logits_same, axis=1),
        'labels_1': labels_x,
        'labels_2': labels_y,
        'labels_same': labels_same,
        'logits_sum9': logits_sum9,
        'logits_sum9_sqz': jnp.squeeze(logits_sum9, axis=1),
        'labels_sum9': labels_sum9,
    }


# ------------------------------ Parameter init ------------------------------

def init_params(key):
    def uni(k, shape, fan_in):
        b = 1.0 / math.sqrt(fan_in)
        return jax.random.uniform(k, shape, jnp.float32, -b, b)

    ks = jax.random.split(key, 3)
    dk = jax.random.split(ks[0], 8)
    detector = {  # shared between SameNet and Sum9Net (sum9Net.detector = sameNet.detector)
        'conv1_w': uni(dk[0], (10, 1, 5, 5), 25),
        'conv1_b': uni(dk[1], (10,), 25),
        'conv2_w': uni(dk[2], (20, 10, 5, 5), 250),
        'conv2_b': uni(dk[3], (20,), 250),
        'fc1_w': uni(dk[4], (50, 320), 320),
        'fc1_b': uni(dk[5], (50,), 320),
        'fc2_w': uni(dk[6], (10, 50), 50),
        'fc2_b': uni(dk[7], (10,), 50),
    }

    def head(k0):
        hk = jax.random.split(k0, 6)
        return {
            'fcrel_w': uni(hk[0], (10, 100), 100),
            'fcrel_b': uni(hk[1], (10,), 100),
            'bil_w': uni(hk[2], (10, 50, 50), 50),
            'bil_b': uni(hk[3], (10,), 50),
            'last_w': uni(hk[4], (1, 10), 10),
            'last_b': uni(hk[5], (1,), 10),
        }

    return {'detector': detector, 'same_head': head(ks[1]), 'sum9_head': head(ks[2])}


# ---------------------------------- Main -------------------------------------

if __name__ == "__main__":
    key = jax.random.PRNGKey(0)
    kp, kx, kl = jax.random.split(key, 3)
    params = init_params(kp)
    # 1x28x28 input is required by fc1: 20 * 4 * 4 = 320 after two conv+pool stages.
    batch = 4
    x = jax.random.normal(kx, (batch, 1, 28, 28), jnp.float32)
    labels = jax.random.randint(kl, (batch,), 0, 10, dtype=jnp.int32)

    fwd = jax.jit(bothnet_forward)
    out = fwd(params, x, labels)
    jax.block_until_ready(out)

    n2 = batch * batch
    assert out['logits_unpaired'].shape == (batch, 10)
    assert out['logits_1'].shape == (n2, 10)
    assert out['logits_2'].shape == (n2, 10)
    assert out['logits_same'].shape == (n2, 1)
    assert out['logits_same_sqz'].shape == (n2,)
    assert out['logits_sum9'].shape == (n2, 1)
    assert out['logits_sum9_sqz'].shape == (n2,)
    assert out['labels_same'].shape == (n2,) and out['labels_same'].dtype == jnp.bool_
    assert out['labels_sum9'].shape == (n2,) and out['labels_sum9'].dtype == jnp.bool_
    print("KERNEL_OK")
</pallas_src>

<mosaic_0001>
module attributes {stable_mosaic.version = 11 : i64} {
  func.func @_conv_gemm_relu_kernel(%arg0: memref<10x25xbf16, #tpu.memory_space<vmem>>, %arg1: memref<25x2304xbf16, #tpu.memory_space<vmem>>, %arg2: memref<10x1xf32, #tpu.memory_space<vmem>>, %arg3: memref<10x2304xbf16, #tpu.memory_space<vmem>>) attributes {dimension_semantics = [], scalar_prefetch = 0 : i64, scratch_operands = 0 : i64, tpu.core_type = #tpu.core_type<tc>} {
    %c0 = arith.constant 0 : index
    %c0_0 = arith.constant 0 : index
    %0 = vector.load %arg0[%c0, %c0_0] : memref<10x25xbf16, #tpu.memory_space<vmem>>, vector<10x25xbf16>
    %c0_1 = arith.constant 0 : index
    %c0_2 = arith.constant 0 : index
    %1 = vector.load %arg1[%c0_1, %c0_2] : memref<25x2304xbf16, #tpu.memory_space<vmem>>, vector<25x2304xbf16>
    %cst = arith.constant dense<0.000000e+00> : vector<10x2304xf32>
    %2 = tpu.matmul %0, %1, %cst {dimension_numbers = #tpu.dot_dimension_numbers<[1], [0], [0], [1], [0, 0, 1, 1], [], []>} : vector<10x25xbf16>, vector<25x2304xbf16>, vector<10x2304xf32> -> vector<10x2304xf32>
    %c0_3 = arith.constant 0 : index
    %c0_4 = arith.constant 0 : index
    %3 = vector.load %arg2[%c0_3, %c0_4] : memref<10x1xf32, #tpu.memory_space<vmem>>, vector<10x1xf32>
    %4 = vector.broadcast %3 : vector<10x1xf32> to vector<10x2304xf32>
    %5 = arith.addf %2, %4 : vector<10x2304xf32>
    %cst_5 = arith.constant 0.000000e+00 : f32
    %6 = vector.broadcast %cst_5 : f32 to vector<10x2304xf32>
    %7 = arith.maximumf %5, %6 : vector<10x2304xf32>
    %8 = arith.truncf %7 : vector<10x2304xf32> to vector<10x2304xbf16>
    %c0_6 = arith.constant 0 : index
    %c0_7 = arith.constant 0 : index
    %9 = vector.load %arg3[%c0_6, %c0_7] : memref<10x2304xbf16, #tpu.memory_space<vmem>>, vector<10x2304xbf16>
    tpu.vector_store %arg3[%c0_6, %c0_7], %8 {strides = array<i32>} : memref<10x2304xbf16, #tpu.memory_space<vmem>>, vector<10x2304xbf16>,
    return
  }
}

module attributes {stable_mosaic.version = 11 : i64} {
  func.func @_conv_gemm_relu_kernel(%arg0: memref<20x250xbf16, #tpu.memory_space<vmem>>, %arg1: memref<250x256xbf16, #tpu.memory_space<vmem>>, %arg2: memref<20x1xf32, #tpu.memory_space<vmem>>, %arg3: memref<20x256xbf16, #tpu.memory_space<vmem>>) attributes {dimension_semantics = [], scalar_prefetch = 0 : i64, scratch_operands = 0 : i64, tpu.core_type = #tpu.core_type<tc>} {
    %c0 = arith.constant 0 : index
    %c0_0 = arith.constant 0 : index
    %0 = vector.load %arg0[%c0, %c0_0] : memref<20x250xbf16, #tpu.memory_space<vmem>>, vector<20x250xbf16>
    %c0_1 = arith.constant 0 : index
    %c0_2 = arith.constant 0 : index
    %1 = vector.load %arg1[%c0_1, %c0_2] : memref<250x256xbf16, #tpu.memory_space<vmem>>, vector<250x256xbf16>
    %cst = arith.constant dense<0.000000e+00> : vector<20x256xf32>
    %2 = tpu.matmul %0, %1, %cst {dimension_numbers = #tpu.dot_dimension_numbers<[1], [0], [0], [1], [0, 0, 1, 1], [], []>} : vector<20x250xbf16>, vector<250x256xbf16>, vector<20x256xf32> -> vector<20x256xf32>
    %c0_3 = arith.constant 0 : index
    %c0_4 = arith.constant 0 : index
    %3 = vector.load %arg2[%c0_3, %c0_4] : memref<20x1xf32, #tpu.memory_space<vmem>>, vector<20x1xf32>
    %4 = vector.broadcast %3 : vector<20x1xf32> to vector<20x256xf32>
    %5 = arith.addf %2, %4 : vector<20x256xf32>
    %cst_5 = arith.constant 0.000000e+00 : f32
    %6 = vector.broadcast %cst_5 : f32 to vector<20x256xf32>
    %7 = arith.maximumf %5, %6 : vector<20x256xf32>
    %8 = arith.truncf %7 : vector<20x256xf32> to vector<20x256xbf16>
    %c0_6 = arith.constant 0 : index
    %c0_7 = arith.constant 0 : index
    %9 = vector.load %arg3[%c0_6, %c0_7] : memref<20x256xbf16, #tpu.memory_space<vmem>>, vector<20x256xbf16>
    tpu.vector_store %arg3[%c0_6, %c0_7], %8 {strides = array<i32>} : memref<20x256xbf16, #tpu.memory_space<vmem>>, vector<20x256xbf16>,
    return
  }
}

module attributes {stable_mosaic.version = 11 : i64} {
  func.func @_head_kernel(%arg0: memref<4x321xbf16, #tpu.memory_space<vmem>>, %arg1: memref<321x51xbf16, #tpu.memory_space<vmem>>, %arg2: memref<51x1030xbf16, #tpu.memory_space<vmem>>, %arg3: memref<2x20xf32, #tpu.memory_space<smem>>, %arg4: memref<4x128xf32, #tpu.memory_space<vmem>>) attributes {dimension_semantics = [], scalar_prefetch = 0 : i64, scratch_operands = 0 : i64, tpu.core_type = #tpu.core_type<tc>} {
    %c0 = arith.constant 0 : index
    %c0_0 = arith.constant 0 : index
    %0 = vector.load %arg0[%c0, %c0_0] : memref<4x321xbf16, #tpu.memory_space<vmem>>, vector<4x321xbf16>
    %c0_1 = arith.constant 0 : index
    %c0_2 = arith.constant 0 : index
    %1 = vector.load %arg1[%c0_1, %c0_2] : memref<321x51xbf16, #tpu.memory_space<vmem>>, vector<321x51xbf16>
    %cst = arith.constant dense<0.000000e+00> : vector<4x51xf32>
    %2 = tpu.matmul %0, %1, %cst {dimension_numbers = #tpu.dot_dimension_numbers<[1], [0], [0], [1], [0, 0, 1, 1], [], []>} : vector<4x321xbf16>, vector<321x51xbf16>, vector<4x51xf32> -> vector<4x51xf32>
    %cst_3 = arith.constant 0.000000e+00 : f32
    %3 = vector.broadcast %cst_3 : f32 to vector<4x51xf32>
    %4 = arith.maximumf %2, %3 : vector<4x51xf32>
    %5 = arith.truncf %4 : vector<4x51xf32> to vector<4x51xbf16>
    %c0_4 = arith.constant 0 : index
    %c0_5 = arith.constant 0 : index
    %6 = vector.load %arg2[%c0_4, %c0_5] : memref<51x1030xbf16, #tpu.memory_space<vmem>>, vector<51x1030xbf16>
    %cst_6 = arith.constant dense<0.000000e+00> : vector<4x1030xf32>
    %7 = tpu.matmul %5, %6, %cst_6 {dimension_numbers = #tpu.dot_dimension_numbers<[1], [0], [0], [1], [0, 0, 1, 1], [], []>} : vector<4x51xbf16>, vector<51x1030xbf16>, vector<4x1030xf32> -> vector<4x1030xf32>
    %8 = vector.extract_strided_slice %7 {offsets = [0, 0], sizes = [4, 10], strides = [1, 1]} : vector<4x1030xf32> to vector<4x10xf32>
    %9 = tpu.transpose %4, [1, 0] : vector<4x51xf32> -> vector<51x4xf32>
    %10 = arith.truncf %9 : vector<51x4xf32> to vector<51x4xbf16>
    %cst_7 = arith.constant 0.000000e+00 : f32
    %11 = vector.broadcast %cst_7 : f32 to vector<4x4xf32>
    %cst_8 = arith.constant 0.000000e+00 : f32
    %12 = vector.broadcast %cst_8 : f32 to vector<4x4xf32>
    %13 = vector.extract_strided_slice %7 {offsets = [0, 10], sizes = [4, 51], strides = [1, 1]} : vector<4x1030xf32> to vector<4x51xf32>
    %14 = arith.truncf %13 : vector<4x51xf32> to vector<4x51xbf16>
    %cst_9 = arith.constant dense<0.000000e+00> : vector<4x4xf32>
    %15 = tpu.matmul %14, %10, %cst_9 {dimension_numbers = #tpu.dot_dimension_numbers<[1], [0], [0], [1], [0, 0, 1, 1], [], []>} : vector<4x51xbf16>, vector<51x4xbf16>, vector<4x4xf32> -> vector<4x4xf32>
    %16 = math.tanh %15 : vector<4x4xf32>
    %c0_10 = arith.constant 0 : index
    %c0_11 = arith.constant 0 : index
    %17 = memref.load %arg3[%c0_10, %c0_11] : memref<2x20xf32, #tpu.memory_space<smem>>
    %18 = vector.broadcast %17 : f32 to vector<4x4xf32>
    %19 = arith.mulf %16, %18 : vector<4x4xf32>
    %20 = arith.addf %11, %19 : vector<4x4xf32>
    %21 = vector.extract_strided_slice %7 {offsets = [0, 61], sizes = [4, 51], strides = [1, 1]} : vector<4x1030xf32> to vector<4x51xf32>
    %22 = arith.truncf %21 : vector<4x51xf32> to vector<4x51xbf16>
    %cst_12 = arith.constant dense<0.000000e+00> : vector<4x4xf32>
    %23 = tpu.matmul %22, %10, %cst_12 {dimension_numbers = #tpu.dot_dimension_numbers<[1], [0], [0], [1], [0, 0, 1, 1], [], []>} : vector<4x51xbf16>, vector<51x4xbf16>, vector<4x4xf32> -> vector<4x4xf32>
    %24 = math.tanh %23 : vector<4x4xf32>
    %c0_13 = arith.constant 0 : index
    %c1 = arith.constant 1 : index
    %25 = memref.load %arg3[%c0_13, %c1] : memref<2x20xf32, #tpu.memory_space<smem>>
    %26 = vector.broadcast %25 : f32 to vector<4x4xf32>
    %27 = arith.mulf %24, %26 : vector<4x4xf32>
    %28 = arith.addf %20, %27 : vector<4x4xf32>
    %29 = vector.extract_strided_slice %7 {offsets = [0, 112], sizes = [4, 51], strides = [1, 1]} : vector<4x1030xf32> to vector<4x51xf32>
    %30 = arith.truncf %29 : vector<4x51xf32> to vector<4x51xbf16>
    %cst_14 = arith.constant dense<0.000000e+00> : vector<4x4xf32>
    %31 = tpu.matmul %30, %10, %cst_14 {dimension_numbers = #tpu.dot_dimension_numbers<[1], [0], [0], [1], [0, 0, 1, 1], [], []>} : vector<4x51xbf16>, vector<51x4xbf16>, vector<4x4xf32> -> vector<4x4xf32>
    %32 = math.tanh %31 : vector<4x4xf32>
    %c0_15 = arith.constant 0 : index
    %c2 = arith.constant 2 : index
    %33 = memref.load %arg3[%c0_15, %c2] : memref<2x20xf32, #tpu.memory_space<smem>>
    %34 = vector.broadcast %33 : f32 to vector<4x4xf32>
    %35 = arith.mulf %32, %34 : vector<4x4xf32>
    %36 = arith.addf %28, %35 : vector<4x4xf32>
    %37 = vector.extract_strided_slice %7 {offsets = [0, 163], sizes = [4, 51], strides = [1, 1]} : vector<4x1030xf32> to vector<4x51xf32>
    %38 = arith.truncf %37 : vector<4x51xf32> to vector<4x51xbf16>
    %cst_16 = arith.constant dense<0.000000e+00> : vector<4x4xf32>
    %39 = tpu.matmul %38, %10, %cst_16 {dimension_numbers = #tpu.dot_dimension_numbers<[1], [0], [0], [1], [0, 0, 1, 1], [], []>} : vector<4x51xbf16>, vector<51x4xbf16>, vector<4x4xf32> -> vector<4x4xf32>
    %40 = math.tanh %39 : vector<4x4xf32>
    %c0_17 = arith.constant 0 : index
    %c3 = arith.constant 3 : index
    %41 = memref.load %arg3[%c0_17, %c3] : memref<2x20xf32, #tpu.memory_space<smem>>
    %42 = vector.broadcast %41 : f32 to vector<4x4xf32>
    %43 = arith.mulf %40, %42 : vector<4x4xf32>
    %44 = arith.addf %36, %43 : vector<4x4xf32>
    %45 = vector.extract_strided_slice %7 {offsets = [0, 214], sizes = [4, 51], strides = [1, 1]} : vector<4x1030xf32> to vector<4x51xf32>
    %46 = arith.truncf %45 : vector<4x51xf32> to vector<4x51xbf16>
    %cst_18 = arith.constant dense<0.000000e+00> : vector<4x4xf32>
    %47 = tpu.matmul %46, %10, %cst_18 {dimension_numbers = #tpu.dot_dimension_numbers<[1], [0], [0], [1], [0, 0, 1, 1], [], []>} : vector<4x51xbf16>, vector<51x4xbf16>, vector<4x4xf32> -> vector<4x4xf32>
    %48 = math.tanh %47 : vector<4x4xf32>
    %c0_19 = arith.constant 0 : index
    %c4 = arith.constant 4 : index
    %49 = memref.load %arg3[%c0_19, %c4] : memref<2x20xf32, #tpu.memory_space<smem>>
    %50 = vector.broadcast %49 : f32 to vector<4x4xf32>
    %51 = arith.mulf %48, %50 : vector<4x4xf32>
    %52 = arith.addf %44, %51 : vector<4x4xf32>
    %53 = vector.extract_strided_slice %7 {offsets = [0, 265], sizes = [4, 51], strides = [1, 1]} : vector<4x1030xf32> to vector<4x51xf32>
    %54 = arith.truncf %53 : vector<4x51xf32> to vector<4x51xbf16>
    %cst_20 = arith.constant dense<0.000000e+00> : vector<4x4xf32>
    %55 = tpu.matmul %54, %10, %cst_20 {dimension_numbers = #tpu.dot_dimension_numbers<[1], [0], [0], [1], [0, 0, 1, 1], [], []>} : vector<4x51xbf16>, vector<51x4xbf16>, vector<4x4xf32> -> vector<4x4xf32>
    %56 = math.tanh %55 : vector<4x4xf32>
    %c0_21 = arith.constant 0 : index
    %c5 = arith.constant 5 : index
    %57 = memref.load %arg3[%c0_21, %c5] : memref<2x20xf32, #tpu.memory_space<smem>>
    %58 = vector.broadcast %57 : f32 to vector<4x4xf32>
    %59 = arith.mulf %56, %58 : vector<4x4xf32>
    %60 = arith.addf %52, %59 : vector<4x4xf32>
    %61 = vector.extract_strided_slice %7 {offsets = [0, 316], sizes = [4, 51], strides = [1, 1]} : vector<4x1030xf32> to vector<4x51xf32>
    %62 = arith.truncf %61 : vector<4x51xf32> to vector<4x51xbf16>
    %cst_22 = arith.constant dense<0.000000e+00> : vector<4x4xf32>
    %63 = tpu.matmul %62, %10, %cst_22 {dimension_numbers = #tpu.dot_dimension_numbers<[1], [0], [0], [1], [0, 0, 1, 1], [], []>} : vector<4x51xbf16>, vector<51x4xbf16>, vector<4x4xf32> -> vector<4x4xf32>
    %64 = math.tanh %63 : vector<4x4xf32>
    %c0_23 = arith.constant 0 : index
    %c6 = arith.constant 6 : index
    %65 = memref.load %arg3[%c0_23, %c6] : memref<2x20xf32, #tpu.memory_space<smem>>
    %66 = vector.broadcast %65 : f32 to vector<4x4xf32>
    %67 = arith.mulf %64, %66 : vector<4x4xf32>
    %68 = arith.addf %60, %67 : vector<4x4xf32>
    %69 = vector.extract_strided_slice %7 {offsets = [0, 367], sizes = [4, 51], strides = [1, 1]} : vector<4x1030xf32> to vector<4x51xf32>
    %70 = arith.truncf %69 : vector<4x51xf32> to vector<4x51xbf16>
    %cst_24 = arith.constant dense<0.000000e+00> : vector<4x4xf32>
    %71 = tpu.matmul %70, %10, %cst_24 {dimension_numbers = #tpu.dot_dimension_numbers<[1], [0], [0], [1], [0, 0, 1, 1], [], []>} : vector<4x51xbf16>, vector<51x4xbf16>, vector<4x4xf32> -> vector<4x4xf32>
    %72 = math.tanh %71 : vector<4x4xf32>
    %c0_25 = arith.constant 0 : index
    %c7 = arith.constant 7 : index
    %73 = memref.load %arg3[%c0_25, %c7] : memref<2x20xf32, #tpu.memory_space<smem>>
    %74 = vector.broadcast %73 : f32 to vector<4x4xf32>
    %75 = arith.mulf %72, %74 : vector<4x4xf32>
    %76 = arith.addf %68, %75 : vector<4x4xf32>
    %77 = vector.extract_strided_slice %7 {offsets = [0, 418], sizes = [4, 51], strides = [1, 1]} : vector<4x1030xf32> to vector<4x51xf32>
    %78 = arith.truncf %77 : vector<4x51xf32> to vector<4x51xbf16>
    %cst_26 = arith.constant dense<0.000000e+00> : vector<4x4xf32>
    %79 = tpu.matmul %78, %10, %cst_26 {dimension_numbers = #tpu.dot_dimension_numbers<[1], [0], [0], [1], [0, 0, 1, 1], [], []>} : vector<4x51xbf16>, vector<51x4xbf16>, vector<4x4xf32> -> vector<4x4xf32>
    %80 = math.tanh %79 : vector<4x4xf32>
    %c0_27 = arith.constant 0 : index
    %c8 = arith.constant 8 : index
    %81 = memref.load %arg3[%c0_27, %c8] : memref<2x20xf32, #tpu.memory_space<smem>>
    %82 = vector.broadcast %81 : f32 to vector<4x4xf32>
    %83 = arith.mulf %80, %82 : vector<4x4xf32>
    %84 = arith.addf %76, %83 : vector<4x4xf32>
    %85 = vector.extract_strided_slice %7 {offsets = [0, 469], sizes = [4, 51], strides = [1, 1]} : vector<4x1030xf32> to vector<4x51xf32>
    %86 = arith.truncf %85 : vector<4x51xf32> to vector<4x51xbf16>
    %cst_28 = arith.constant dense<0.000000e+00> : vector<4x4xf32>
    %87 = tpu.matmul %86, %10, %cst_28 {dimension_numbers = #tpu.dot_dimension_numbers<[1], [0], [0], [1], [0, 0, 1, 1], [], []>} : vector<4x51xbf16>, vector<51x4xbf16>, vector<4x4xf32> -> vector<4x4xf32>
    %88 = math.tanh %87 : vector<4x4xf32>
    %c0_29 = arith.constant 0 : index
    %c9 = arith.constant 9 : index
    %89 = memref.load %arg3[%c0_29, %c9] : memref<2x20xf32, #tpu.memory_space<smem>>
    %90 = vector.broadcast %89 : f32 to vector<4x4xf32>
    %91 = arith.mulf %88, %90 : vector<4x4xf32>
    %92 = arith.addf %84, %91 : vector<4x4xf32>
    %93 = vector.extract_strided_slice %7 {offsets = [0, 520], sizes = [4, 51], strides = [1, 1]} : vector<4x1030xf32> to vector<4x51xf32>
    %94 = arith.truncf %93 : vector<4x51xf32> to vector<4x51xbf16>
    %cst_30 = arith.constant dense<0.000000e+00> : vector<4x4xf32>
    %95 = tpu.matmul %94, %10, %cst_30 {dimension_numbers = #tpu.dot_dimension_numbers<[1], [0], [0], [1], [0, 0, 1, 1], [], []>} : vector<4x51xbf16>, vector<51x4xbf16>, vector<4x4xf32> -> vector<4x4xf32>
    %96 = math.tanh %95 : vector<4x4xf32>
    %c0_31 = arith.constant 0 : index
    %c10 = arith.constant 10 : index
    %97 = memref.load %arg3[%c0_31, %c10] : memref<2x20xf32, #tpu.memory_space<smem>>
    %98 = vector.broadcast %97 : f32 to vector<4x4xf32>
    %99 = arith.mulf %96, %98 : vector<4x4xf32>
    %100 = arith.addf %12, %99 : vector<4x4xf32>
    %101 = vector.extract_strided_slice %7 {offsets = [0, 571], sizes = [4, 51], strides = [1, 1]} : vector<4x1030xf32> to vector<4x51xf32>
    %102 = arith.truncf %101 : vector<4x51xf32> to vector<4x51xbf16>
    %cst_32 = arith.constant dense<0.000000e+00> : vector<4x4xf32>
    %103 = tpu.matmul %102, %10, %cst_32 {dimension_numbers = #tpu.dot_dimension_numbers<[1], [0], [0], [1], [0, 0, 1, 1], [], []>} : vector<4x51xbf16>, vector<51x4xbf16>, vector<4x4xf32> -> vector<4x4xf32>
    %104 = math.tanh %103 : vector<4x4xf32>
    %c0_33 = arith.constant 0 : index
    %c11 = arith.constant 11 : index
    %105 = memref.load %arg3[%c0_33, %c11] : memref<2x20xf32, #tpu.memory_space<smem>>
    %106 = vector.broadcast %105 : f32 to vector<4x4xf32>
    %107 = arith.mulf %104, %106 : vector<4x4xf32>
    %108 = arith.addf %100, %107 : vector<4x4xf32>
    %109 = vector.extract_strided_slice %7 {offsets = [0, 622], sizes = [4, 51], strides = [1, 1]} : vector<4x1030xf32> to vector<4x51xf32>
    %110 = arith.truncf %109 : vector<4x51xf32> to vector<4x51xbf16>
    %cst_34 = arith.constant dense<0.000000e+00> : vector<4x4xf32>
    %111 = tpu.matmul %110, %10, %cst_34 {dimension_numbers = #tpu.dot_dimension_numbers<[1], [0], [0], [1], [0, 0, 1, 1], [], []>} : vector<4x51xbf16>, vector<51x4xbf16>, vector<4x4xf32> -> vector<4x4xf32>
    %112 = math.tanh %111 : vector<4x4xf32>
    %c0_35 = arith.constant 0 : index
    %c12 = arith.constant 12 : index
    %113 = memref.load %arg3[%c0_35, %c12] : memref<2x20xf32, #tpu.memory_space<smem>>
    %114 = vector.broadcast %113 : f32 to vector<4x4xf32>
    %115 = arith.mulf %112, %114 : vector<4x4xf32>
    %116 = arith.addf %108, %115 : vector<4x4xf32>
    %117 = vector.extract_strided_slice %7 {offsets = [0, 673], sizes = [4, 51], strides = [1, 1]} : vector<4x1030xf32> to vector<4x51xf32>
    %118 = arith.truncf %117 : vector<4x51xf32> to vector<4x51xbf16>
    %cst_36 = arith.constant dense<0.000000e+00> : vector<4x4xf32>
    %119 = tpu.matmul %118, %10, %cst_36 {dimension_numbers = #tpu.dot_dimension_numbers<[1], [0], [0], [1], [0, 0, 1, 1], [], []>} : vector<4x51xbf16>, vector<51x4xbf16>, vector<4x4xf32> -> vector<4x4xf32>
    %120 = math.tanh %119 : vector<4x4xf32>
    %c0_37 = arith.constant 0 : index
    %c13 = arith.constant 13 : index
    %121 = memref.load %arg3[%c0_37, %c13] : memref<2x20xf32, #tpu.memory_space<smem>>
    %122 = vector.broadcast %121 : f32 to vector<4x4xf32>
    %123 = arith.mulf %120, %122 : vector<4x4xf32>
    %124 = arith.addf %116, %123 : vector<4x4xf32>
    %125 = vector.extract_strided_slice %7 {offsets = [0, 724], sizes = [4, 51], strides = [1, 1]} : vector<4x1030xf32> to vector<4x51xf32>
    %126 = arith.truncf %125 : vector<4x51xf32> to vector<4x51xbf16>
    %cst_38 = arith.constant dense<0.000000e+00> : vector<4x4xf32>
    %127 = tpu.matmul %126, %10, %cst_38 {dimension_numbers = #tpu.dot_dimension_numbers<[1], [0], [0], [1], [0, 0, 1, 1], [], []>} : vector<4x51xbf16>, vector<51x4xbf16>, vector<4x4xf32> -> vector<4x4xf32>
    %128 = math.tanh %127 : vector<4x4xf32>
    %c0_39 = arith.constant 0 : index
    %c14 = arith.constant 14 : index
    %129 = memref.load %arg3[%c0_39, %c14] : memref<2x20xf32, #tpu.memory_space<smem>>
    %130 = vector.broadcast %129 : f32 to vector<4x4xf32>
    %131 = arith.mulf %128, %130 : vector<4x4xf32>
    %132 = arith.addf %124, %131 : vector<4x4xf32>
    %133 = vector.extract_strided_slice %7 {offsets = [0, 775], sizes = [4, 51], strides = [1, 1]} : vector<4x1030xf32> to vector<4x51xf32>
    %134 = arith.truncf %133 : vector<4x51xf32> to vector<4x51xbf16>
    %cst_40 = arith.constant dense<0.000000e+00> : vector<4x4xf32>
    %135 = tpu.matmul %134, %10, %cst_40 {dimension_numbers = #tpu.dot_dimension_numbers<[1], [0], [0], [1], [0, 0, 1, 1], [], []>} : vector<4x51xbf16>, vector<51x4xbf16>, vector<4x4xf32> -> vector<4x4xf32>
    %136 = math.tanh %135 : vector<4x4xf32>
    %c0_41 = arith.constant 0 : index
    %c15 = arith.constant 15 : index
    %137 = memref.load %arg3[%c0_41, %c15] : memref<2x20xf32, #tpu.memory_space<smem>>
    %138 = vector.broadcast %137 : f32 to vector<4x4xf32>
    %139 = arith.mulf %136, %138 : vector<4x4xf32>
    %140 = arith.addf %132, %139 : vector<4x4xf32>
    %141 = vector.extract_strided_slice %7 {offsets = [0, 826], sizes = [4, 51], strides = [1, 1]} : vector<4x1030xf32> to vector<4x51xf32>
    %142 = arith.truncf %141 : vector<4x51xf32> to vector<4x51xbf16>
    %cst_42 = arith.constant dense<0.000000e+00> : vector<4x4xf32>
    %143 = tpu.matmul %142, %10, %cst_42 {dimension_numbers = #tpu.dot_dimension_numbers<[1], [0], [0], [1], [0, 0, 1, 1], [], []>} : vector<4x51xbf16>, vector<51x4xbf16>, vector<4x4xf32> -> vector<4x4xf32>
    %144 = math.tanh %143 : vector<4x4xf32>
    %c0_43 = arith.constant 0 : index
    %c16 = arith.constant 16 : index
    %145 = memref.load %arg3[%c0_43, %c16] : memref<2x20xf32, #tpu.memory_space<smem>>
    %146 = vector.broadcast %145 : f32 to vector<4x4xf32>
    %147 = arith.mulf %144, %146 : vector<4x4xf32>
    %148 = arith.addf %140, %147 : vector<4x4xf32>
    %149 = vector.extract_strided_slice %7 {offsets = [0, 877], sizes = [4, 51], strides = [1, 1]} : vector<4x1030xf32> to vector<4x51xf32>
    %150 = arith.truncf %149 : vector<4x51xf32> to vector<4x51xbf16>
    %cst_44 = arith.constant dense<0.000000e+00> : vector<4x4xf32>
    %151 = tpu.matmul %150, %10, %cst_44 {dimension_numbers = #tpu.dot_dimension_numbers<[1], [0], [0], [1], [0, 0, 1, 1], [], []>} : vector<4x51xbf16>, vector<51x4xbf16>, vector<4x4xf32> -> vector<4x4xf32>
    %152 = math.tanh %151 : vector<4x4xf32>
    %c0_45 = arith.constant 0 : index
    %c17 = arith.constant 17 : index
    %153 = memref.load %arg3[%c0_45, %c17] : memref<2x20xf32, #tpu.memory_space<smem>>
    %154 = vector.broadcast %153 : f32 to vector<4x4xf32>
    %155 = arith.mulf %152, %154 : vector<4x4xf32>
    %156 = arith.addf %148, %155 : vector<4x4xf32>
    %157 = vector.extract_strided_slice %7 {offsets = [0, 928], sizes = [4, 51], strides = [1, 1]} : vector<4x1030xf32> to vector<4x51xf32>
    %158 = arith.truncf %157 : vector<4x51xf32> to vector<4x51xbf16>
    %cst_46 = arith.constant dense<0.000000e+00> : vector<4x4xf32>
    %159 = tpu.matmul %158, %10, %cst_46 {dimension_numbers = #tpu.dot_dimension_numbers<[1], [0], [0], [1], [0, 0, 1, 1], [], []>} : vector<4x51xbf16>, vector<51x4xbf16>, vector<4x4xf32> -> vector<4x4xf32>
    %160 = math.tanh %159 : vector<4x4xf32>
    %c0_47 = arith.constant 0 : index
    %c18 = arith.constant 18 : index
    %161 = memref.load %arg3[%c0_47, %c18] : memref<2x20xf32, #tpu.memory_space<smem>>
    %162 = vector.broadcast %161 : f32 to vector<4x4xf32>
    %163 = arith.mulf %160, %162 : vector<4x4xf32>
    %164 = arith.addf %156, %163 : vector<4x4xf32>
    %165 = vector.extract_strided_slice %7 {offsets = [0, 979], sizes = [4, 51], strides = [1, 1]} : vector<4x1030xf32> to vector<4x51xf32>
    %166 = arith.truncf %165 : vector<4x51xf32> to vector<4x51xbf16>
    %cst_48 = arith.constant dense<0.000000e+00> : vector<4x4xf32>
    %167 = tpu.matmul %166, %10, %cst_48 {dimension_numbers = #tpu.dot_dimension_numbers<[1], [0], [0], [1], [0, 0, 1, 1], [], []>} : vector<4x51xbf16>, vector<51x4xbf16>, vector<4x4xf32> -> vector<4x4xf32>
    %168 = math.tanh %167 : vector<4x4xf32>
    %c0_49 = arith.constant 0 : index
    %c19 = arith.constant 19 : index
    %169 = memref.load %arg3[%c0_49, %c19] : memref<2x20xf32, #tpu.memory_space<smem>>
    %170 = vector.broadcast %169 : f32 to vector<4x4xf32>
    %171 = arith.mulf %168, %170 : vector<4x4xf32>
    %172 = arith.addf %164, %171 : vector<4x4xf32>
    %c1_50 = arith.constant 1 : index
    %c0_51 = arith.constant 0 : index
    %173 = memref.load %arg3[%c1_50, %c0_51] : memref<2x20xf32, #tpu.memory_space<smem>>
    %174 = vector.broadcast %173 : f32 to vector<4x4xf32>
    %175 = arith.addf %92, %174 : vector<4x4xf32>
    %c1_52 = arith.constant 1 : index
    %c1_53 = arith.constant 1 : index
    %176 = memref.load %arg3[%c1_52, %c1_53] : memref<2x20xf32, #tpu.memory_space<smem>>
    %177 = vector.broadcast %176 : f32 to vector<4x4xf32>
    %178 = arith.addf %172, %177 : vector<4x4xf32>
    %cst_54 = arith.constant 0.000000e+00 : f32
    %179 = vector.broadcast %cst_54 : f32 to vector<4x110xf32>
    %180 = tpu.concatenate %175, %178, %8, %179 in 1 : vector<4x4xf32>, vector<4x4xf32>, vector<4x10xf32>, vector<4x110xf32> -> vector<4x128xf32>
    %c0_55 = arith.constant 0 : index
    %c0_56 = arith.constant 0 : index
    %181 = vector.load %arg4[%c0_55, %c0_56] : memref<4x128xf32, #tpu.memory_space<vmem>>, vector<4x128xf32>
    tpu.vector_store %arg4[%c0_55, %c0_56], %180 {strides = array<i32>} : memref<4x128xf32, #tpu.memory_space<vmem>>, vector<4x128xf32>,
    return
  }
}

</mosaic_0001>

<llo_original>
// kernel: bothnet_forward.3
$region0: #{bothnet_forward.3}
  #allocation0 [shape = 'u32[]', space=smem, size = 0x4, offset = 0x4, fixed_abs, tag = 'smem constant byte address 0x4 - core index']
  #allocation1 [shape = 'u32[144,128]{1,0:T(1,128)}', space=vmem, size = 0x12000, scoped, tag = 'internal scratch']
  %s0 = inlined_call_operand.vmem [shape: bf16[10,25], index: 0, kind: input, shape index: {}]
  %s1 = inlined_call_operand.vmem [shape: bf16[25,2304], index: 1, kind: input, shape index: {}]
  %s2 = inlined_call_operand.vmem [shape: f32[10,1], index: 2, kind: input, shape index: {}]
  %s3 = inlined_call_operand.vmem [shape: bf16[10,2304], index: 3, kind: output, shape index: {}]
  %s4 = sld [smem:[#allocation0]]
  $region22: #{bothnet_forward.3} parent=0
    _
  %s6 = ssub.s32 1, %s4
  %s7 = scalar_select 0, %s6, %s4
  // Predicated region
  $region2: #{bothnet_forward.3} parent=0 // pred_check
    _
  $region3: #{bothnet_forward.3} parent=0 // pred_check_branch
    %9 = sbr.rel (0) target = $region5
  $region4: #{bothnet_forward.3} parent=0 // pred_region
    _
  $region5: #{bothnet_forward.3} parent=0 // pred_fallthru
    _
  // Predicated region
  $region6: #{bothnet_forward.3} parent=0 // pred_check
    _
  $region7: #{bothnet_forward.3} parent=0 // pred_check_branch
    %11 = sbr.rel (0) target = $region9
  $region8: #{bothnet_forward.3} parent=0 // pred_region
    _
  $region9: #{bothnet_forward.3} parent=0 // pred_fallthru
    _
  // Predicated region
  $region10: #{bothnet_forward.3} parent=0 // pred_check
    _
  $region11: #{bothnet_forward.3} parent=0 // pred_check_branch
    %13 = sbr.rel (0) target = $region13
  $region12: #{bothnet_forward.3} parent=0 // pred_region
    _
  $region13: #{bothnet_forward.3} parent=0 // pred_fallthru
    _
  %v15 = vld [vmem:[%s0] sm:$0xf]
  %v16 = vld [vmem:[%s0 + $0x4] sm:$0x1]
  %v17 = vld [vmem:[%s1] sm:$0xff]
  %v18 = vld [vmem:[%s1 + $0x8] sm:$0xff]
  %v19 = vld [vmem:[%s1 + $0x10] sm:$0xff]
  %v20 = vld [vmem:[%s1 + $0x18] sm:$0xff]
  %v21 = vld [vmem:[%s1 + $0x20] sm:$0xff]
  %v22 = vld [vmem:[%s1 + $0x28] sm:$0xff]
  %v23 = vld [vmem:[%s1 + $0x30] sm:$0xff]
  %v24 = vld [vmem:[%s1 + $0x38] sm:$0xff]
  %v25 = vld [vmem:[%s1 + $0x40] sm:$0xff]
  %v26 = vld [vmem:[%s1 + $0x48] sm:$0xff]
  %v27 = vld [vmem:[%s1 + $0x50] sm:$0xff]
  %v28 = vld [vmem:[%s1 + $0x58] sm:$0xff]
  %v29 = vld [vmem:[%s1 + $0x60] sm:$0xff]
  %v30 = vld [vmem:[%s1 + $0x68] sm:$0xff]
  %v31 = vld [vmem:[%s1 + $0x70] sm:$0xff]
  %v32 = vld [vmem:[%s1 + $0x78] sm:$0xff]
  %v33 = vld [vmem:[%s1 + $0x80] sm:$0xff]
  %v34 = vld [vmem:[%s1 + $0x88] sm:$0xff]
  %v35 = vld [vmem:[%s1 + $0x90] sm:$0xff]
  %v36 = vld [vmem:[%s1 + $0x98] sm:$0xff]
  %v37 = vld [vmem:[%s1 + $0xa0] sm:$0xff]
  %v38 = vld [vmem:[%s1 + $0xa8] sm:$0xff]
  %v39 = vld [vmem:[%s1 + $0xb0] sm:$0xff]
  %v40 = vld [vmem:[%s1 + $0xb8] sm:$0xff]
  %v41 = vld [vmem:[%s1 + $0xc0] sm:$0xff]
  %v42 = vld [vmem:[%s1 + $0xc8] sm:$0xff]
  %v43 = vld [vmem:[%s1 + $0xd0] sm:$0xff]
  %v44 = vld [vmem:[%s1 + $0xd8] sm:$0x11]
  %v45 = vld [vmem:[%s1 + $0xe0] sm:$0x11]
  %v46 = vld [vmem:[%s1 + $0xe8] sm:$0x11]
  %v47 = vld [vmem:[%s1 + $0xf0] sm:$0x11]
  %v48 = vld [vmem:[%s1 + $0xf8] sm:$0x11]
  %v49 = vld [vmem:[%s1 + $0x100] sm:$0x11]
  %v50 = vld [vmem:[%s1 + $0x108] sm:$0x11]
  %v51 = vld [vmem:[%s1 + $0x110] sm:$0x11]
  %v52 = vld [vmem:[%s1 + $0x118] sm:$0x11]
  %v53 = vld [vmem:[%s2] sm:$0xff]
  %v54 = vld [vmem:[%s2 + $0x8] sm:$0x3]
  %56 = vset.pattern.permute.xlu0 0
  %57 = vperm.xlu0 %56, %v53
  %v58 = vpop.permute.xlu0 %57
  %61 = vset.pattern.permute.xlu0 0
  %62 = vperm.xlu0 %61, %v54
  %v63 = vpop.permute.xlu0 %62
  %v67 = vunpack.c.l.b16 %v15
  %v68 = vunpack.c.l.b16 %v16
  %v69 = vpack.c.b16 %v68, %v67
  %v106 = vunpack.c.l.b16 %v17
  %v107 = vunpack.c.h.b16 %v17
  %v108 = vunpack.c.l.b16 %v18
  %v109 = vunpack.c.h.b16 %v18
  %v110 = vunpack.c.l.b16 %v19
  %v111 = vunpack.c.h.b16 %v19
  %v112 = vunpack.c.l.b16 %v20
  %v113 = vunpack.c.h.b16 %v20
  %v114 = vunpack.c.l.b16 %v21
  %v115 = vunpack.c.h.b16 %v21
  %v116 = vunpack.c.l.b16 %v22
  %v117 = vunpack.c.h.b16 %v22
  %v118 = vunpack.c.l.b16 %v23
  %v119 = vunpack.c.h.b16 %v23
  %v120 = vunpack.c.l.b16 %v24
  %v121 = vunpack.c.h.b16 %v24
  %v122 = vunpack.c.l.b16 %v25
  %v123 = vunpack.c.h.b16 %v25
  %v124 = vunpack.c.l.b16 %v26
  %v125 = vunpack.c.h.b16 %v26
  %v126 = vunpack.c.l.b16 %v27
  %v127 = vunpack.c.h.b16 %v27
  %v128 = vunpack.c.l.b16 %v28
  %v129 = vunpack.c.h.b16 %v28
  %v130 = vunpack.c.l.b16 %v29
  %v131 = vunpack.c.h.b16 %v29
  %v132 = vunpack.c.l.b16 %v30
  %v133 = vunpack.c.h.b16 %v30
  %v134 = vunpack.c.l.b16 %v31
  %v135 = vunpack.c.h.b16 %v31
  %v136 = vunpack.c.l.b16 %v32
  %v137 = vunpack.c.h.b16 %v32
  %v138 = vunpack.c.l.b16 %v33
  %v139 = vunpack.c.h.b16 %v33
  %v140 = vunpack.c.l.b16 %v34
  %v141 = vunpack.c.h.b16 %v34
  %v142 = vunpack.c.l.b16 %v35
  %v143 = vunpack.c.h.b16 %v35
  %v144 = vunpack.c.l.b16 %v36
  %v145 = vunpack.c.h.b16 %v36
  %v146 = vunpack.c.l.b16 %v37
  %v147 = vunpack.c.h.b16 %v37
  %v148 = vunpack.c.l.b16 %v38
  %v149 = vunpack.c.h.b16 %v38
  %v150 = vunpack.c.l.b16 %v39
  %v151 = vunpack.c.h.b16 %v39
  %v152 = vunpack.c.l.b16 %v40
  %v153 = vunpack.c.h.b16 %v40
  %v154 = vunpack.c.l.b16 %v41
  %v155 = vunpack.c.h.b16 %v41
  %v156 = vunpack.c.l.b16 %v42
  %v157 = vunpack.c.h.b16 %v42
  %v158 = vunpack.c.l.b16 %v43
  %v159 = vunpack.c.h.b16 %v43
  %v160 = vunpack.c.l.b16 %v44
  %v161 = vunpack.c.h.b16 %v44
  %v162 = vunpack.c.l.b16 %v45
  %v163 = vunpack.c.h.b16 %v45
  %v164 = vunpack.c.l.b16 %v46
  %v165 = vunpack.c.h.b16 %v46
  %v166 = vunpack.c.l.b16 %v47
  %v167 = vunpack.c.h.b16 %v47
  %v168 = vunpack.c.l.b16 %v48
  %v169 = vunpack.c.h.b16 %v48
  %v170 = vunpack.c.l.b16 %v49
  %v171 = vunpack.c.h.b16 %v49
  %v172 = vunpack.c.l.b16 %v50
  %v173 = vunpack.c.h.b16 %v50
  %v174 = vunpack.c.l.b16 %v51
  %v175 = vunpack.c.h.b16 %v51
  %v176 = vunpack.c.l.b16 %v52
  %v177 = vunpack.c.h.b16 %v52
  %v178 = vpack.c.b16 %v124, %v106
  %v179 = vpack.c.b16 %v125, %v107
  %v180 = vpack.c.b16 %v126, %v108
  %v181 = vpack.c.b16 %v127, %v109
  %v182 = vpack.c.b16 %v128, %v110
  %v183 = vpack.c.b16 %v129, %v111
  %v184 = vpack.c.b16 %v130, %v112
  %v185 = vpack.c.b16 %v131, %v113
  %v186 = vpack.c.b16 %v132, %v114
  %v187 = vpack.c.b16 %v133, %v115
  %v188 = vpack.c.b16 %v134, %v116
  %v189 = vpack.c.b16 %v135, %v117
  %v190 = vpack.c.b16 %v136, %v118
  %v191 = vpack.c.b16 %v137, %v119
  %v192 = vpack.c.b16 %v138, %v120
  %v193 = vpack.c.b16 %v139, %v121
  %v194 = vpack.c.b16 %v140, %v122
  %v195 = vpack.c.b16 %v141, %v123
  %v196 = vpack.c.b16 %v160, %v142
  %v197 = vpack.c.b16 %v161, %v143
  %v198 = vpack.c.b16 %v162, %v144
  %v199 = vpack.c.b16 %v163, %v145
  %v200 = vpack.c.b16 %v164, %v146
  %v201 = vpack.c.b16 %v165, %v147
  %v202 = vpack.c.b16 %v166, %v148
  %v203 = vpack.c.b16 %v167, %v149
  %v204 = vpack.c.b16 %v168, %v150
  %v205 = vpack.c.b16 %v169, %v151
  %v206 = vpack.c.b16 %v170, %v152
  %v207 = vpack.c.b16 %v171, %v153
  %v208 = vpack.c.b16 %v172, %v154
  %v209 = vpack.c.b16 %v173, %v155
  %v210 = vpack.c.b16 %v174, %v156
  %v211 = vpack.c.b16 %v175, %v157
  %v212 = vpack.c.b16 %v176, %v158
  %v213 = vpack.c.b16 %v177, %v159
  %vm232 = vcmask 203776
  %v234 = vsel %vm232, %v69, 0
  %vm236 = vcmask 1043456
  %vm237 = vcmask 1044480
  %v238 = vsel %vm236, 4294967295, 65535
  %v239 = vsel %vm237, %v238, 0
  %v241 = vand.u32 %v196, %v239
  %v244 = vand.u32 %v197, %v239
  %v247 = vand.u32 %v198, %v239
  %v250 = vand.u32 %v199, %v239
  %v253 = vand.u32 %v200, %v239
  %v256 = vand.u32 %v201, %v239
  %v259 = vand.u32 %v202, %v239
  %v262 = vand.u32 %v203, %v239
  %v265 = vand.u32 %v204, %v239
  %v268 = vand.u32 %v205, %v239
  %v271 = vand.u32 %v206, %v239
  %v274 = vand.u32 %v207, %v239
  %v277 = vand.u32 %v208, %v239
  %v280 = vand.u32 %v209, %v239
  %v283 = vand.u32 %v210, %v239
  %v286 = vand.u32 %v211, %v239
  %v289 = vand.u32 %v212, %v239
  %v292 = vand.u32 %v213, %v239
  %294 = vmatprep.subr.bf16.mxu0 0
  %295 = vmatpush1.bf16.msra.mxu0 0
  %296 = vmatprep.subr.bf16.mxu0 0
  %297 = vmatpush1.bf16.msra.mxu0 0
  %298 = vmatprep.subr.bf16.mxu0 0
  %299 = vmatpush1.bf16.msra.mxu0 0
  %300 = vmatprep.subr.bf16.mxu0 0
  %301 = vmatpush1.bf16.msra.mxu0 0
  %302 = vmatprep.subr.bf16.mxu0 0
  %303 = vmatpush1.bf16.msra.mxu0 0
  %304 = vmatprep.subr.bf16.mxu0 0
  %305 = vmatpush1.bf16.msra.mxu0 0
  %306 = vmatprep.subr.bf16.mxu0 %v244
  %307 = vmatpush1.bf16.msra.mxu0 %v241
  %308 = vmatprep.subr.bf16.mxu0 %v179
  %309 = vmatpush1.bf16.msra.mxu0 %v178
  %310 = vmatprep.subr.bf16.mxu0 0
  %311 = vmatpush2.bf16.msra.mxu0 0
  %312 = vmatprep.subr.bf16.mxu0 0
  %313 = vmatpush2.bf16.msra.mxu0 0
  %314 = vmatprep.subr.bf16.mxu0 0
  %315 = vmatpush2.bf16.msra.mxu0 0
  %316 = vmatprep.subr.bf16.mxu0 0
  %317 = vmatpush2.bf16.msra.mxu0 0
  %318 = vmatprep.subr.bf16.mxu0 0
  %319 = vmatpush2.bf16.msra.mxu0 0
  %320 = vmatprep.subr.bf16.mxu0 0
  %321 = vmatpush2.bf16.msra.mxu0 0
  %322 = vmatprep.subr.bf16.mxu0 0
  %323 = vmatpush2.bf16.msra.mxu0 0
  %324 = vmatprep.subr.bf16.mxu0 0
  %325 = vmatpush2.bf16.msra.mxu0 0
  %326 = vmatprep.mubr.bf16.mxu0 0
  %327 = vmatmul.mubr.bf16.gmra.mxu0 %v234
  %v328 = vpop.f32.mrf.mxu0
  %v329 = vadd.f32 %v58, %v328
  %v330 = vpop.f32.mrf.mxu0
  %v331 = vadd.f32 %v58, %v330
  %v332 = vpop.f32.mrf.mxu0
  %v333 = vadd.f32 %v63, %v332
  %v334 = vpop.f32.mrf.mxu0
  %v335 = vadd.f32 %v63, %v334
  %336 = vdwg.mxu0
  %337 = vmatprep.subr.bf16.mxu0 0
  %338 = vmatpush1.bf16.msra.mxu0 0
  %339 = vmatprep.subr.bf16.mxu0 0
  %340 = vmatpush1.bf16.msra.mxu0 0
  %341 = vmatprep.subr.bf16.mxu0 0
  %342 = vmatpush1.bf16.msra.mxu0 0
  %343 = vmatprep.subr.bf16.mxu0 0
  %344 = vmatpush1.bf16.msra.mxu0 0
  %345 = vmatprep.subr.bf16.mxu0 0
  %346 = vmatpush1.bf16.msra.mxu0 0
  %347 = vmatprep.subr.bf16.mxu0 0
  %348 = vmatpush1.bf16.msra.mxu0 0
  %349 = vmatprep.subr.bf16.mxu0 %v250
  %350 = vmatpush1.bf16.msra.mxu0 %v247
  %351 = vmatprep.subr.bf16.mxu0 %v181
  %352 = vmatpush1.bf16.msra.mxu0 %v180
  %353 = vmatprep.subr.bf16.mxu0 0
  %354 = vmatpush2.bf16.msra.mxu0 0
  %355 = vmatprep.subr.bf16.mxu0 0
  %356 = vmatpush2.bf16.msra.mxu0 0
  %357 = vmatprep.subr.bf16.mxu0 0
  %358 = vmatpush2.bf16.msra.mxu0 0
  %359 = vmatprep.subr.bf16.mxu0 0
  %360 = vmatpush2.bf16.msra.mxu0 0
  %361 = vmatprep.subr.bf16.mxu0 0
  %362 = vmatpush2.bf16.msra.mxu0 0
  %363 = vmatprep.subr.bf16.mxu0 0
  %364 = vmatpush2.bf16.msra.mxu0 0
  %365 = vmatprep.subr.bf16.mxu0 0
  %366 = vmatpush2.bf16.msra.mxu0 0
  %367 = vmatprep.subr.bf16.mxu0 0
  %368 = vmatpush2.bf16.msra.mxu0 0
  %369 = vmatprep.mubr.bf16.mxu0 0
  %370 = vmatmul.mubr.bf16.gmra.mxu0 %v234
  %v371 = vpop.f32.mrf.mxu0
  %v372 = vadd.f32 %v58, %v371
  %v373 = vpop.f32.mrf.mxu0
  %v374 = vadd.f32 %v58, %v373
  %v375 = vpop.f32.mrf.mxu0
  %v376 = vadd.f32 %v63, %v375
  %v377 = vpop.f32.mrf.mxu0
  %v378 = vadd.f32 %v63, %v377
  %379 = vdwg.mxu0
  %380 = vmatprep.subr.bf16.mxu0 0
  %381 = vmatpush1.bf16.msra.mxu0 0
  %382 = vmatprep.subr.bf16.mxu0 0
  %383 = vmatpush1.bf16.msra.mxu0 0
  %384 = vmatprep.subr.bf16.mxu0 0
  %385 = vmatpush1.bf16.msra.mxu0 0
  %386 = vmatprep.subr.bf16.mxu0 0
  %387 = vmatpush1.bf16.msra.mxu0 0
  %388 = vmatprep.subr.bf16.mxu0 0
  %389 = vmatpush1.bf16.msra.mxu0 0
  %390 = vmatprep.subr.bf16.mxu0 0
  %391 = vmatpush1.bf16.msra.mxu0 0
  %392 = vmatprep.subr.bf16.mxu0 %v256
  %393 = vmatpush1.bf16.msra.mxu0 %v253
  %394 = vmatprep.subr.bf16.mxu0 %v183
  %395 = vmatpush1.bf16.msra.mxu0 %v182
  %396 = vmatprep.subr.bf16.mxu0 0
  %397 = vmatpush2.bf16.msra.mxu0 0
  %398 = vmatprep.subr.bf16.mxu0 0
  %399 = vmatpush2.bf16.msra.mxu0 0
  %400 = vmatprep.subr.bf16.mxu0 0
  %401 = vmatpush2.bf16.msra.mxu0 0
  %402 = vmatprep.subr.bf16.mxu0 0
  %403 = vmatpush2.bf16.msra.mxu0 0
  %404 = vmatprep.subr.bf16.mxu0 0
  %405 = vmatpush2.bf16.msra.mxu0 0
  %406 = vmatprep.subr.bf16.mxu0 0
  %407 = vmatpush2.bf16.msra.mxu0 0
  %408 = vmatprep.subr.bf16.mxu0 0
  %409 = vmatpush2.bf16.msra.mxu0 0
  %410 = vmatprep.subr.bf16.mxu0 0
  %411 = vmatpush2.bf16.msra.mxu0 0
  %412 = vmatprep.mubr.bf16.mxu0 0
  %413 = vmatmul.mubr.bf16.gmra.mxu0 %v234
  %v414 = vpop.f32.mrf.mxu0
  %v415 = vadd.f32 %v58, %v414
  %v416 = vpop.f32.mrf.mxu0
  %v417 = vadd.f32 %v58, %v416
  %v418 = vpop.f32.mrf.mxu0
  %v419 = vadd.f32 %v63, %v418
  %v420 = vpop.f32.mrf.mxu0
  %v421 = vadd.f32 %v63, %v420
  %422 = vdwg.mxu0
  %423 = vmatprep.subr.bf16.mxu0 0
  %424 = vmatpush1.bf16.msra.mxu0 0
  %425 = vmatprep.subr.bf16.mxu0 0
  %426 = vmatpush1.bf16.msra.mxu0 0
  %427 = vmatprep.subr.bf16.mxu0 0
  %428 = vmatpush1.bf16.msra.mxu0 0
  %429 = vmatprep.subr.bf16.mxu0 0
  %430 = vmatpush1.bf16.msra.mxu0 0
  %431 = vmatprep.subr.bf16.mxu0 0
  %432 = vmatpush1.bf16.msra.mxu0 0
  %433 = vmatprep.subr.bf16.mxu0 0
  %434 = vmatpush1.bf16.msra.mxu0 0
  %435 = vmatprep.subr.bf16.mxu0 %v262
  %436 = vmatpush1.bf16.msra.mxu0 %v259
  %437 = vmatprep.subr.bf16.mxu0 %v185
  %438 = vmatpush1.bf16.msra.mxu0 %v184
  %439 = vmatprep.subr.bf16.mxu0 0
  %440 = vmatpush2.bf16.msra.mxu0 0
  %441 = vmatprep.subr.bf16.mxu0 0
  %442 = vmatpush2.bf16.msra.mxu0 0
  %443 = vmatprep.subr.bf16.mxu0 0
  %444 = vmatpush2.bf16.msra.mxu0 0
  %445 = vmatprep.subr.bf16.mxu0 0
  %446 = vmatpush2.bf16.msra.mxu0 0
  %447 = vmatprep.subr.bf16.mxu0 0
  %448 = vmatpush2.bf16.msra.mxu0 0
  %449 = vmatprep.subr.bf16.mxu0 0
  %450 = vmatpush2.bf16.msra.mxu0 0
  %451 = vmatprep.subr.bf16.mxu0 0
  %452 = vmatpush2.bf16.msra.mxu0 0
  %453 = vmatprep.subr.bf16.mxu0 0
  %454 = vmatpush2.bf16.msra.mxu0 0
  %455 = vmatprep.mubr.bf16.mxu0 0
  %456 = vmatmul.mubr.bf16.gmra.mxu0 %v234
  %v457 = vpop.f32.mrf.mxu0
  %v458 = vadd.f32 %v58, %v457
  %v459 = vpop.f32.mrf.mxu0
  %v460 = vadd.f32 %v58, %v459
  %v461 = vpop.f32.mrf.mxu0
  %v462 = vadd.f32 %v63, %v461
  %v463 = vpop.f32.mrf.mxu0
  %v464 = vadd.f32 %v63, %v463
  %465 = vdwg.mxu0
  %466 = vmatprep.subr.bf16.mxu0 0
  %467 = vmatpush1.bf16.msra.mxu0 0
  %468 = vmatprep.subr.bf16.mxu0 0
  %469 = vmatpush1.bf16.msra.mxu0 0
  %470 = vmatprep.subr.bf16.mxu0 0
  %471 = vmatpush1.bf16.msra.mxu0 0
  %472 = vmatprep.subr.bf16.mxu0 0
  %473 = vmatpush1.bf16.msra.mxu0 0
  %474 = vmatprep.subr.bf16.mxu0 0
  %475 = vmatpush1.bf16.msra.mxu0 0
  %476 = vmatprep.subr.bf16.mxu0 0
  %477 = vmatpush1.bf16.msra.mxu0 0
  %478 = vmatprep.subr.bf16.mxu0 %v268
  %479 = vmatpush1.bf16.msra.mxu0 %v265
  %480 = vmatprep.subr.bf16.mxu0 %v187
  %481 = vmatpush1.bf16.msra.mxu0 %v186
  %482 = vmatprep.subr.bf16.mxu0 0
  %483 = vmatpush2.bf16.msra.mxu0 0
  %484 = vmatprep.subr.bf16.mxu0 0
  %485 = vmatpush2.bf16.msra.mxu0 0
  %486 = vmatprep.subr.bf16.mxu0 0
  %487 = vmatpush2.bf16.msra.mxu0 0
  %488 = vmatprep.subr.bf16.mxu0 0
  %489 = vmatpush2.bf16.msra.mxu0 0
  %490 = vmatprep.subr.bf16.mxu0 0
  %491 = vmatpush2.bf16.msra.mxu0 0
  %492 = vmatprep.subr.bf16.mxu0 0
  %493 = vmatpush2.bf16.msra.mxu0 0
  %494 = vmatprep.subr.bf16.mxu0 0
  %495 = vmatpush2.bf16.msra.mxu0 0
  %496 = vmatprep.subr.bf16.mxu0 0
  %497 = vmatpush2.bf16.msra.mxu0 0
  %498 = vmatprep.mubr.bf16.mxu0 0
  %499 = vmatmul.mubr.bf16.gmra.mxu0 %v234
  %v500 = vpop.f32.mrf.mxu0
  %v501 = vadd.f32 %v58, %v500
  %v502 = vpop.f32.mrf.mxu0
  %v503 = vadd.f32 %v58, %v502
  %v504 = vpop.f32.mrf.mxu0
  %v505 = vadd.f32 %v63, %v504
  %v506 = vpop.f32.mrf.mxu0
  %v507 = vadd.f32 %v63, %v506
  %508 = vdwg.mxu0
  %509 = vmatprep.subr.bf16.mxu0 0
  %510 = vmatpush1.bf16.msra.mxu0 0
  %511 = vmatprep.subr.bf16.mxu0 0
  %512 = vmatpush1.bf16.msra.mxu0 0
  %513 = vmatprep.subr.bf16.mxu0 0
  %514 = vmatpush1.bf16.msra.mxu0 0
  %515 = vmatprep.subr.bf16.mxu0 0
  %516 = vmatpush1.bf16.msra.mxu0 0
  %517 = vmatprep.subr.bf16.mxu0 0
  %518 = vmatpush1.bf16.msra.mxu0 0
  %519 = vmatprep.subr.bf16.mxu0 0
  %520 = vmatpush1.bf16.msra.mxu0 0
  %521 = vmatprep.subr.bf16.mxu0 %v274
  %522 = vmatpush1.bf16.msra.mxu0 %v271
  %523 = vmatprep.subr.bf16.mxu0 %v189
  %524 = vmatpush1.bf16.msra.mxu0 %v188
  %525 = vmatprep.subr.bf16.mxu0 0
  %526 = vmatpush2.bf16.msra.mxu0 0
  %527 = vmatprep.subr.bf16.mxu0 0
  %528 = vmatpush2.bf16.msra.mxu0 0
  %529 = vmatprep.subr.bf16.mxu0 0
  %530 = vmatpush2.bf16.msra.mxu0 0
  %531 = vmatprep.subr.bf16.mxu0 0
  %532 = vmatpush2.bf16.msra.mxu0 0
  %533 = vmatprep.subr.bf16.mxu0 0
  %534 = vmatpush2.bf16.msra.mxu0 0
  %535 = vmatprep.subr.bf16.mxu0 0
  %536 = vmatpush2.bf16.msra.mxu0 0
  %537 = vmatprep.subr.bf16.mxu0 0
  %538 = vmatpush2.bf16.msra.mxu0 0
  %539 = vmatprep.subr.bf16.mxu0 0
  %540 = vmatpush2.bf16.msra.mxu0 0
  %541 = vmatprep.mubr.bf16.mxu0 0
  %542 = vmatmul.mubr.bf16.gmra.mxu0 %v234
  %v543 = vpop.f32.mrf.mxu0
  %v544 = vadd.f32 %v58, %v543
  %v545 = vpop.f32.mrf.mxu0
  %v546 = vadd.f32 %v58, %v545
  %v547 = vpop.f32.mrf.mxu0
  %v548 = vadd.f32 %v63, %v547
  %v549 = vpop.f32.mrf.mxu0
  %v550 = vadd.f32 %v63, %v549
  %551 = vdwg.mxu0
  %552 = vmatprep.subr.bf16.mxu0 0
  %553 = vmatpush1.bf16.msra.mxu0 0
  %554 = vmatprep.subr.bf16.mxu0 0
  %555 = vmatpush1.bf16.msra.mxu0 0
  %556 = vmatprep.subr.bf16.mxu0 0
  %557 = vmatpush1.bf16.msra.mxu0 0
  %558 = vmatprep.subr.bf16.mxu0 0
  %559 = vmatpush1.bf16.msra.mxu0 0
  %560 = vmatprep.subr.bf16.mxu0 0
  %561 = vmatpush1.bf16.msra.mxu0 0
  %562 = vmatprep.subr.bf16.mxu0 0
  %563 = vmatpush1.bf16.msra.mxu0 0
  %564 = vmatprep.subr.bf16.mxu0 %v280
  %565 = vmatpush1.bf16.msra.mxu0 %v277
  %566 = vmatprep.subr.bf16.mxu0 %v191
  %567 = vmatpush1.bf16.msra.mxu0 %v190
  %568 = vmatprep.subr.bf16.mxu0 0
  %569 = vmatpush2.bf16.msra.mxu0 0
  %570 = vmatprep.subr.bf16.mxu0 0
  %571 = vmatpush2.bf16.msra.mxu0 0
  %572 = vmatprep.subr.bf16.mxu0 0
  %573 = vmatpush2.bf16.msra.mxu0 0
  %574 = vmatprep.subr.bf16.mxu0 0
  %575 = vmatpush2.bf16.msra.mxu0 0
  %576 = vmatprep.subr.bf16.mxu0 0
  %577 = vmatpush2.bf16.msra.mxu0 0
  %578 = vmatprep.subr.bf16.mxu0 0
  %579 = vmatpush2.bf16.msra.mxu0 0
  %580 = vmatprep.subr.bf16.mxu0 0
  %581 = vmatpush2.bf16.msra.mxu0 0
  %582 = vmatprep.subr.bf16.mxu0 0
  %583 = vmatpush2.bf16.msra.mxu0 0
  %584 = vmatprep.mubr.bf16.mxu0 0
  %585 = vmatmul.mubr.bf16.gmra.mxu0 %v234
  %v586 = vpop.f32.mrf.mxu0
  %v587 = vadd.f32 %v58, %v586
  %v588 = vpop.f32.mrf.mxu0
  %v589 = vadd.f32 %v58, %v588
  %v590 = vpop.f32.mrf.mxu0
  %v591 = vadd.f32 %v63, %v590
  %v592 = vpop.f32.mrf.mxu0
  %v593 = vadd.f32 %v63, %v592
  %594 = vdwg.mxu0
  %595 = vmatprep.subr.bf16.mxu0 0
  %596 = vmatpush1.bf16.msra.mxu0 0
  %597 = vmatprep.subr.bf16.mxu0 0
  %598 = vmatpush1.bf16.msra.mxu0 0
  %599 = vmatprep.subr.bf16.mxu0 0
  %600 = vmatpush1.bf16.msra.mxu0 0
  %601 = vmatprep.subr.bf16.mxu0 0
  %602 = vmatpush1.bf16.msra.mxu0 0
  %603 = vmatprep.subr.bf16.mxu0 0
  %604 = vmatpush1.bf16.msra.mxu0 0
  %605 = vmatprep.subr.bf16.mxu0 0
  %606 = vmatpush1.bf16.msra.mxu0 0
  %607 = vmatprep.subr.bf16.mxu0 %v286
  %608 = vmatpush1.bf16.msra.mxu0 %v283
  %609 = vmatprep.subr.bf16.mxu0 %v193
  %610 = vmatpush1.bf16.msra.mxu0 %v192
  %611 = vmatprep.subr.bf16.mxu0 0
  %612 = vmatpush2.bf16.msra.mxu0 0
  %613 = vmatprep.subr.bf16.mxu0 0
  %614 = vmatpush2.bf16.msra.mxu0 0
  %615 = vmatprep.subr.bf16.mxu0 0
  %616 = vmatpush2.bf16.msra.mxu0 0
  %617 = vmatprep.subr.bf16.mxu0 0
  %618 = vmatpush2.bf16.msra.mxu0 0
  %619 = vmatprep.subr.bf16.mxu0 0
  %620 = vmatpush2.bf16.msra.mxu0 0
  %621 = vmatprep.subr.bf16.mxu0 0
  %622 = vmatpush2.bf16.msra.mxu0 0
  %623 = vmatprep.subr.bf16.mxu0 0
  %624 = vmatpush2.bf16.msra.mxu0 0
  %625 = vmatprep.subr.bf16.mxu0 0
  %626 = vmatpush2.bf16.msra.mxu0 0
  %627 = vmatprep.mubr.bf16.mxu0 0
  %628 = vmatmul.mubr.bf16.gmra.mxu0 %v234
  %v629 = vpop.f32.mrf.mxu0
  %v630 = vadd.f32 %v58, %v629
  %v631 = vpop.f32.mrf.mxu0
  %v632 = vadd.f32 %v58, %v631
  %v633 = vpop.f32.mrf.mxu0
  %v634 = vadd.f32 %v63, %v633
  %v635 = vpop.f32.mrf.mxu0
  %v636 = vadd.f32 %v63, %v635
  %637 = vdwg.mxu0
  %638 = vmatprep.subr.bf16.mxu0 0
  %639 = vmatpush1.bf16.msra.mxu0 0
  %640 = vmatprep.subr.bf16.mxu0 0
  %641 = vmatpush1.bf16.msra.mxu0 0
  %642 = vmatprep.subr.bf16.mxu0 0
  %643 = vmatpush1.bf16.msra.mxu0 0
  %644 = vmatprep.subr.bf16.mxu0 0
  %645 = vmatpush1.bf16.msra.mxu0 0
  %646 = vmatprep.subr.bf16.mxu0 0
  %647 = vmatpush1.bf16.msra.mxu0 0
  %648 = vmatprep.subr.bf16.mxu0 0
  %649 = vmatpush1.bf16.msra.mxu0 0
  %650 = vmatprep.subr.bf16.mxu0 %v292
  %651 = vmatpush1.bf16.msra.mxu0 %v289
  %652 = vmatprep.subr.bf16.mxu0 %v195
  %653 = vmatpush1.bf16.msra.mxu0 %v194
  %654 = vmatprep.subr.bf16.mxu0 0
  %655 = vmatpush2.bf16.msra.mxu0 0
  %656 = vmatprep.subr.bf16.mxu0 0
  %657 = vmatpush2.bf16.msra.mxu0 0
  %658 = vmatprep.subr.bf16.mxu0 0
  %659 = vmatpush2.bf16.msra.mxu0 0
  %660 = vmatprep.subr.bf16.mxu0 0
  %661 = vmatpush2.bf16.msra.mxu0 0
  %662 = vmatprep.subr.bf16.mxu0 0
  %663 = vmatpush2.bf16.msra.mxu0 0
  %664 = vmatprep.subr.bf16.mxu0 0
  %665 = vmatpush2.bf16.msra.mxu0 0
  %666 = vmatprep.subr.bf16.mxu0 0
  %667 = vmatpush2.bf16.msra.mxu0 0
  %668 = vmatprep.subr.bf16.mxu0 0
  %669 = vmatpush2.bf16.msra.mxu0 0
  %670 = vmatprep.mubr.bf16.mxu0 0
  %671 = vmatmul.mubr.bf16.gmra.mxu0 %v234
  %v672 = vpop.f32.mrf.mxu0
  %v673 = vadd.f32 %v58, %v672
  %v674 = vpop.f32.mrf.mxu0
  %v675 = vadd.f32 %v58, %v674
  %v676 = vpop.f32.mrf.mxu0
  %v677 = vadd.f32 %v63, %v676
  %v678 = vpop.f32.mrf.mxu0
  %v679 = vadd.f32 %v63, %v678
  %680 = vdwg.mxu0
  %v681 = vmax.f32 %v329, 0.0
  %v682 = vmax.f32 %v331, 0.0
  %v683 = vmax.f32 %v372, 0.0
  %v684 = vmax.f32 %v374, 0.0
  %v685 = vmax.f32 %v415, 0.0
  %v686 = vmax.f32 %v417, 0.0
  %v687 = vmax.f32 %v458, 0.0
  %v688 = vmax.f32 %v460, 0.0
  %v689 = vmax.f32 %v501, 0.0
  %v690 = vmax.f32 %v503, 0.0
  %v691 = vmax.f32 %v544, 0.0
  %v692 = vmax.f32 %v546, 0.0
  %v693 = vmax.f32 %v587, 0.0
  %v694 = vmax.f32 %v589, 0.0
  %v695 = vmax.f32 %v630, 0.0
  %v696 = vmax.f32 %v632, 0.0
  %v697 = vmax.f32 %v673, 0.0
  %v698 = vmax.f32 %v675, 0.0
  %v699 = vmax.f32 %v333, 0.0
  %v700 = vmax.f32 %v335, 0.0
  %v701 = vmax.f32 %v376, 0.0
  %v702 = vmax.f32 %v378, 0.0
  %v703 = vmax.f32 %v419, 0.0
  %v704 = vmax.f32 %v421, 0.0
  %v705 = vmax.f32 %v462, 0.0
  %v706 = vmax.f32 %v464, 0.0
  %v707 = vmax.f32 %v505, 0.0
  %v708 = vmax.f32 %v507, 0.0
  %v709 = vmax.f32 %v548, 0.0
  %v710 = vmax.f32 %v550, 0.0
  %v711 = vmax.f32 %v591, 0.0
  %v712 = vmax.f32 %v593, 0.0
  %v713 = vmax.f32 %v634, 0.0
  %v714 = vmax.f32 %v636, 0.0
  %v715 = vmax.f32 %v677, 0.0
  %v716 = vmax.f32 %v679, 0.0
  %v717 = vpack.c.bf16 %v699, %v681
  %v718 = vpack.c.bf16 %v700, %v682
  %v719 = vpack.c.bf16 %v701, %v683
  %v720 = vpack.c.bf16 %v702, %v684
  %v721 = vpack.c.bf16 %v703, %v685
  %v722 = vpack.c.bf16 %v704, %v686
  %v723 = vpack.c.bf16 %v705, %v687
  %v724 = vpack.c.bf16 %v706, %v688
  %v725 = vpack.c.bf16 %v707, %v689
  %v726 = vpack.c.bf16 %v708, %v690
  %v727 = vpack.c.bf16 %v709, %v691
  %v728 = vpack.c.bf16 %v710, %v692
  %v729 = vpack.c.bf16 %v711, %v693
  %v730 = vpack.c.bf16 %v712, %v694
  %v731 = vpack.c.bf16 %v713, %v695
  %v732 = vpack.c.bf16 %v714, %v696
  %v733 = vpack.c.bf16 %v715, %v697
  %v734 = vpack.c.bf16 %v716, %v698
  %v753 = vunpack.c.l.b16 %v717
  %v754 = vunpack.c.l.b16 %v718
  %v755 = vunpack.c.l.b16 %v719
  %v756 = vunpack.c.l.b16 %v720
  %v757 = vunpack.c.l.b16 %v721
  %v758 = vunpack.c.l.b16 %v722
  %v759 = vunpack.c.l.b16 %v723
  %v760 = vunpack.c.l.b16 %v724
  %v761 = vunpack.c.l.b16 %v725
  %v762 = vunpack.c.l.b16 %v726
  %v763 = vunpack.c.l.b16 %v727
  %v764 = vunpack.c.l.b16 %v728
  %v765 = vunpack.c.l.b16 %v729
  %v766 = vunpack.c.l.b16 %v730
  %v767 = vunpack.c.l.b16 %v731
  %v768 = vunpack.c.l.b16 %v732
  %v769 = vunpack.c.l.b16 %v733
  %v770 = vunpack.c.l.b16 %v734
  %v771 = vunpack.c.h.b16 %v717
  %v772 = vunpack.c.h.b16 %v718
  %v773 = vunpack.c.h.b16 %v719
  %v774 = vunpack.c.h.b16 %v720
  %v775 = vunpack.c.h.b16 %v721
  %v776 = vunpack.c.h.b16 %v722
  %v777 = vunpack.c.h.b16 %v723
  %v778 = vunpack.c.h.b16 %v724
  %v779 = vunpack.c.h.b16 %v725
  %v780 = vunpack.c.h.b16 %v726
  %v781 = vunpack.c.h.b16 %v727
  %v782 = vunpack.c.h.b16 %v728
  %v783 = vunpack.c.h.b16 %v729
  %v784 = vunpack.c.h.b16 %v730
  %v785 = vunpack.c.h.b16 %v731
  %v786 = vunpack.c.h.b16 %v732
  %v787 = vunpack.c.h.b16 %v733
  %v788 = vunpack.c.h.b16 %v734
  %v789 = vpack.c.b16 %v754, %v753
  %v790 = vpack.c.b16 %v756, %v755
  %v791 = vpack.c.b16 %v758, %v757
  %v792 = vpack.c.b16 %v760, %v759
  %v793 = vpack.c.b16 %v762, %v761
  %v794 = vpack.c.b16 %v764, %v763
  %v795 = vpack.c.b16 %v766, %v765
  %v796 = vpack.c.b16 %v768, %v767
  %v797 = vpack.c.b16 %v770, %v769
  %v798 = vpack.c.b16 %v772, %v771
  %v799 = vpack.c.b16 %v774, %v773
  %v800 = vpack.c.b16 %v776, %v775
  %v801 = vpack.c.b16 %v778, %v777
  %v802 = vpack.c.b16 %v780, %v779
  %v803 = vpack.c.b16 %v782, %v781
  %v804 = vpack.c.b16 %v784, %v783
  %v805 = vpack.c.b16 %v786, %v785
  %v806 = vpack.c.b16 %v788, %v787
  %825 = vst [vmem:[%s3] sm:$0xff] %v789
  %826 = vst [vmem:[%s3 + $0x8] sm:$0xff] %v790
  %827 = vst [vmem:[%s3 + $0x10] sm:$0xff] %v791
  %828 = vst [vmem:[%s3 + $0x18] sm:$0xff] %v792
  %829 = vst [vmem:[%s3 + $0x20] sm:$0xff] %v793
  %830 = vst [vmem:[%s3 + $0x28] sm:$0xff] %v794
  %831 = vst [vmem:[%s3 + $0x30] sm:$0xff] %v795
  %832 = vst [vmem:[%s3 + $0x38] sm:$0xff] %v796
  %833 = vst [vmem:[%s3 + $0x40] sm:$0xff] %v797
  %834 = vst [vmem:[%s3 + $0x48] sm:$0x11] %v798
  %835 = vst [vmem:[%s3 + $0x50] sm:$0x11] %v799
  %836 = vst [vmem:[%s3 + $0x58] sm:$0x11] %v800
  %837 = vst [vmem:[%s3 + $0x60] sm:$0x11] %v801
  %838 = vst [vmem:[%s3 + $0x68] sm:$0x11] %v802
  %839 = vst [vmem:[%s3 + $0x70] sm:$0x11] %v803
  %840 = vst [vmem:[%s3 + $0x78] sm:$0x11] %v804
  %841 = vst [vmem:[%s3 + $0x80] sm:$0x11] %v805
  %842 = vst [vmem:[%s3 + $0x88] sm:$0x11] %v806
  // Predicated region
  $region14: #{bothnet_forward.3} parent=0 // pred_check
    _
  $region15: #{bothnet_forward.3} parent=0 // pred_check_branch
    %844 = sbr.rel (0) target = $region17
  $region16: #{bothnet_forward.3} parent=0 // pred_region
    _
  $region17: #{bothnet_forward.3} parent=0 // pred_fallthru
    _
  // Predicated region
  $region18: #{bothnet_forward.3} parent=0 // pred_check
    _
  $region19: #{bothnet_forward.3} parent=0 // pred_check_branch
    %846 = sbr.rel (0) target = $region21
  $region20: #{bothnet_forward.3} parent=0 // pred_region
    _
  $region21: #{bothnet_forward.3} parent=0 // pred_fallthru
    _

// kernel: bothnet_forward.4
$region0: #{bothnet_forward.4}
  #allocation0 [shape = 'u32[]', space=smem, size = 0x4, offset = 0x4, fixed_abs, tag = 'smem constant byte address 0x4 - core index']
  #allocation1 [shape = 'u32[144,128]{1,0:T(1,128)}', space=vmem, size = 0x12000, scoped, tag = 'internal scratch']
  %s0 = inlined_call_operand.vmem [shape: bf16[20,250], index: 0, kind: input, shape index: {}]
  %s1 = inlined_call_operand.vmem [shape: bf16[250,256], index: 1, kind: input, shape index: {}]
  %s2 = inlined_call_operand.vmem [shape: f32[20,1], index: 2, kind: input, shape index: {}]
  %s3 = inlined_call_operand.vmem [shape: bf16[20,256], index: 3, kind: output, shape index: {}]
  %s4 = sld [smem:[#allocation0]]
  $region22: #{bothnet_forward.4} parent=0
    _
  %s6 = ssub.s32 1, %s4
  %s7 = scalar_select 0, %s6, %s4
  // Predicated region
  $region2: #{bothnet_forward.4} parent=0 // pred_check
    _
  $region3: #{bothnet_forward.4} parent=0 // pred_check_branch
    %9 = sbr.rel (0) target = $region5
  $region4: #{bothnet_forward.4} parent=0 // pred_region
    _
  $region5: #{bothnet_forward.4} parent=0 // pred_fallthru
    _
  // Predicated region
  $region6: #{bothnet_forward.4} parent=0 // pred_check
    _
  $region7: #{bothnet_forward.4} parent=0 // pred_check_branch
    %11 = sbr.rel (0) target = $region9
  $region8: #{bothnet_forward.4} parent=0 // pred_region
    _
  $region9: #{bothnet_forward.4} parent=0 // pred_fallthru
    _
  // Predicated region
  $region10: #{bothnet_forward.4} parent=0 // pred_check
    _
  $region11: #{bothnet_forward.4} parent=0 // pred_check_branch
    %13 = sbr.rel (0) target = $region13
  $region12: #{bothnet_forward.4} parent=0 // pred_region
    _
  $region13: #{bothnet_forward.4} parent=0 // pred_fallthru
    _
  %v14 = vld [vmem:[%s0] sm:$0xff]
  %v15 = vld [vmem:[%s0 + $0x8] sm:$0xff]
  %v16 = vld [vmem:[%s0 + $0x10] sm:$0x33]
  %v17 = vld [vmem:[%s1] sm:$0xff]
  %v18 = vld [vmem:[%s1 + $0x8] sm:$0xff]
  %v19 = vld [vmem:[%s1 + $0x10] sm:$0xff]
  %v20 = vld [vmem:[%s1 + $0x18] sm:$0xff]
  %v21 = vld [vmem:[%s1 + $0x20] sm:$0xff]
  %v22 = vld [vmem:[%s1 + $0x28] sm:$0xff]
  %v23 = vld [vmem:[%s1 + $0x30] sm:$0xff]
  %v24 = vld [vmem:[%s1 + $0x38] sm:$0xff]
  %v25 = vld [vmem:[%s1 + $0x40] sm:$0xff]
  %v26 = vld [vmem:[%s1 + $0x48] sm:$0xff]
  %v27 = vld [vmem:[%s1 + $0x50] sm:$0xff]
  %v28 = vld [vmem:[%s1 + $0x58] sm:$0xff]
  %v29 = vld [vmem:[%s1 + $0x60] sm:$0xff]
  %v30 = vld [vmem:[%s1 + $0x68] sm:$0xff]
  %v31 = vld [vmem:[%s1 + $0x70] sm:$0xff]
  %v32 = vld [vmem:[%s1 + $0x78] sm:$0xff]
  %v33 = vld [vmem:[%s1 + $0x80] sm:$0xff]
  %v34 = vld [vmem:[%s1 + $0x88] sm:$0xff]
  %v35 = vld [vmem:[%s1 + $0x90] sm:$0xff]
  %v36 = vld [vmem:[%s1 + $0x98] sm:$0xff]
  %v37 = vld [vmem:[%s1 + $0xa0] sm:$0xff]
  %v38 = vld [vmem:[%s1 + $0xa8] sm:$0xff]
  %v39 = vld [vmem:[%s1 + $0xb0] sm:$0xff]
  %v40 = vld [vmem:[%s1 + $0xb8] sm:$0xff]
  %v41 = vld [vmem:[%s1 + $0xc0] sm:$0xff]
  %v42 = vld [vmem:[%s1 + $0xc8] sm:$0xff]
  %v43 = vld [vmem:[%s1 + $0xd0] sm:$0xff]
  %v44 = vld [vmem:[%s1 + $0xd8] sm:$0xff]
  %v45 = vld [vmem:[%s1 + $0xe0] sm:$0xff]
  %v46 = vld [vmem:[%s1 + $0xe8] sm:$0xff]
  %v47 = vld [vmem:[%s1 + $0xf0] sm:$0xff]
  %v48 = vld [vmem:[%s1 + $0xf8] sm:$0x11]
  %v49 = vld [vmem:[%s2] sm:$0xff]
  %v50 = vld [vmem:[%s2 + $0x8] sm:$0xff]
  %v51 = vld [vmem:[%s2 + $0x10] sm:$0xf]
  %53 = vset.pattern.permute.xlu0 0
  %54 = vperm.xlu0 %53, %v49
  %v55 = vpop.permute.xlu0 %54
  %58 = vset.pattern.permute.xlu0 0
  %59 = vperm.xlu0 %58, %v50
  %v60 = vpop.permute.xlu0 %59
  %63 = vset.pattern.permute.xlu0 0
  %64 = vperm.xlu0 %63, %v51
  %v65 = vpop.permute.xlu0 %64
  %v70 = vunpack.c.l.b16 %v14
  %v71 = vunpack.c.h.b16 %v14
  %v72 = vunpack.c.l.b16 %v15
  %v73 = vunpack.c.h.b16 %v15
  %v74 = vunpack.c.l.b16 %v16
  %v75 = vunpack.c.h.b16 %v16
  %v76 = vpack.c.b16 %v72, %v70
  %v77 = vpack.c.b16 %v73, %v71
  %v78 = vpack.c.b16 %v74, %v74
  %v79 = vpack.c.b16 %v75, %v75
  %v114 = vunpack.c.l.b16 %v17
  %v115 = vunpack.c.h.b16 %v17
  %v116 = vunpack.c.l.b16 %v18
  %v117 = vunpack.c.h.b16 %v18
  %v118 = vunpack.c.l.b16 %v19
  %v119 = vunpack.c.h.b16 %v19
  %v120 = vunpack.c.l.b16 %v20
  %v121 = vunpack.c.h.b16 %v20
  %v122 = vunpack.c.l.b16 %v21
  %v123 = vunpack.c.h.b16 %v21
  %v124 = vunpack.c.l.b16 %v22
  %v125 = vunpack.c.h.b16 %v22
  %v126 = vunpack.c.l.b16 %v23
  %v127 = vunpack.c.h.b16 %v23
  %v128 = vunpack.c.l.b16 %v24
  %v129 = vunpack.c.h.b16 %v24
  %v130 = vunpack.c.l.b16 %v25
  %v131 = vunpack.c.h.b16 %v25
  %v132 = vunpack.c.l.b16 %v26
  %v133 = vunpack.c.h.b16 %v26
  %v134 = vunpack.c.l.b16 %v27
  %v135 = vunpack.c.h.b16 %v27
  %v136 = vunpack.c.l.b16 %v28
  %v137 = vunpack.c.h.b16 %v28
  %v138 = vunpack.c.l.b16 %v29
  %v139 = vunpack.c.h.b16 %v29
  %v140 = vunpack.c.l.b16 %v30
  %v141 = vunpack.c.h.b16 %v30
  %v142 = vunpack.c.l.b16 %v31
  %v143 = vunpack.c.h.b16 %v31
  %v144 = vunpack.c.l.b16 %v32
  %v145 = vunpack.c.h.b16 %v32
  %v146 = vunpack.c.l.b16 %v33
  %v147 = vunpack.c.h.b16 %v33
  %v148 = vunpack.c.l.b16 %v34
  %v149 = vunpack.c.h.b16 %v34
  %v150 = vunpack.c.l.b16 %v35
  %v151 = vunpack.c.h.b16 %v35
  %v152 = vunpack.c.l.b16 %v36
  %v153 = vunpack.c.h.b16 %v36
  %v154 = vunpack.c.l.b16 %v37
  %v155 = vunpack.c.h.b16 %v37
  %v156 = vunpack.c.l.b16 %v38
  %v157 = vunpack.c.h.b16 %v38
  %v158 = vunpack.c.l.b16 %v39
  %v159 = vunpack.c.h.b16 %v39
  %v160 = vunpack.c.l.b16 %v40
  %v161 = vunpack.c.h.b16 %v40
  %v162 = vunpack.c.l.b16 %v41
  %v163 = vunpack.c.h.b16 %v41
  %v164 = vunpack.c.l.b16 %v42
  %v165 = vunpack.c.h.b16 %v42
  %v166 = vunpack.c.l.b16 %v43
  %v167 = vunpack.c.h.b16 %v43
  %v168 = vunpack.c.l.b16 %v44
  %v169 = vunpack.c.h.b16 %v44
  %v170 = vunpack.c.l.b16 %v45
  %v171 = vunpack.c.h.b16 %v45
  %v172 = vunpack.c.l.b16 %v46
  %v173 = vunpack.c.h.b16 %v46
  %v174 = vunpack.c.l.b16 %v47
  %v175 = vunpack.c.h.b16 %v47
  %v176 = vunpack.c.l.b16 %v48
  %v177 = vunpack.c.h.b16 %v48
  %v178 = vpack.c.b16 %v116, %v114
  %v179 = vpack.c.b16 %v117, %v115
  %v180 = vpack.c.b16 %v120, %v118
  %v181 = vpack.c.b16 %v121, %v119
  %v182 = vpack.c.b16 %v124, %v122
  %v183 = vpack.c.b16 %v125, %v123
  %v184 = vpack.c.b16 %v128, %v126
  %v185 = vpack.c.b16 %v129, %v127
  %v186 = vpack.c.b16 %v132, %v130
  %v187 = vpack.c.b16 %v133, %v131
  %v188 = vpack.c.b16 %v136, %v134
  %v189 = vpack.c.b16 %v137, %v135
  %v190 = vpack.c.b16 %v140, %v138
  %v191 = vpack.c.b16 %v141, %v139
  %v192 = vpack.c.b16 %v144, %v142
  %v193 = vpack.c.b16 %v145, %v143
  %v194 = vpack.c.b16 %v148, %v146
  %v195 = vpack.c.b16 %v149, %v147
  %v196 = vpack.c.b16 %v152, %v150
  %v197 = vpack.c.b16 %v153, %v151
  %v198 = vpack.c.b16 %v156, %v154
  %v199 = vpack.c.b16 %v157, %v155
  %v200 = vpack.c.b16 %v160, %v158
  %v201 = vpack.c.b16 %v161, %v159
  %v202 = vpack.c.b16 %v164, %v162
  %v203 = vpack.c.b16 %v165, %v163
  %v204 = vpack.c.b16 %v168, %v166
  %v205 = vpack.c.b16 %v169, %v167
  %v206 = vpack.c.b16 %v172, %v170
  %v207 = vpack.c.b16 %v173, %v171
  %v208 = vpack.c.b16 %v176, %v174
  %v209 = vpack.c.b16 %v177, %v175
  %vm240 = vcmask 998400
  %v242 = vsel %vm240, %v77, 0
  %v245 = vsel %vm240, %v79, 0
  %vm247 = vcmask 1044480
  %v249 = vsel %vm247, %v208, 0
  %v252 = vsel %vm247, %v209, 0
  %254 = vmatprep.subr.bf16.mxu0 %v193
  %255 = vmatpush1.bf16.msra.mxu0 %v192
  %256 = vmatprep.subr.bf16.mxu0 %v191
  %257 = vmatpush1.bf16.msra.mxu0 %v190
  %258 = vmatprep.subr.bf16.mxu0 %v189
  %259 = vmatpush1.bf16.msra.mxu0 %v188
  %260 = vmatprep.subr.bf16.mxu0 %v187
  %261 = vmatpush1.bf16.msra.mxu0 %v186
  %262 = vmatprep.subr.bf16.mxu0 %v185
  %263 = vmatpush1.bf16.msra.mxu0 %v184
  %264 = vmatprep.subr.bf16.mxu0 %v183
  %265 = vmatpush1.bf16.msra.mxu0 %v182
  %266 = vmatprep.subr.bf16.mxu0 %v181
  %267 = vmatpush1.bf16.msra.mxu0 %v180
  %268 = vmatprep.subr.bf16.mxu0 %v179
  %269 = vmatpush1.bf16.msra.mxu0 %v178
  %270 = vmatprep.subr.bf16.mxu0 %v252
  %271 = vmatpush2.bf16.msra.mxu0 %v249
  %272 = vmatprep.subr.bf16.mxu0 %v207
  %273 = vmatpush2.bf16.msra.mxu0 %v206
  %274 = vmatprep.subr.bf16.mxu0 %v205
  %275 = vmatpush2.bf16.msra.mxu0 %v204
  %276 = vmatprep.subr.bf16.mxu0 %v203
  %277 = vmatpush2.bf16.msra.mxu0 %v202
  %278 = vmatprep.subr.bf16.mxu0 %v201
  %279 = vmatpush2.bf16.msra.mxu0 %v200
  %280 = vmatprep.subr.bf16.mxu0 %v199
  %281 = vmatpush2.bf16.msra.mxu0 %v198
  %282 = vmatprep.subr.bf16.mxu0 %v197
  %283 = vmatpush2.bf16.msra.mxu0 %v196
  %284 = vmatprep.subr.bf16.mxu0 %v195
  %285 = vmatpush2.bf16.msra.mxu0 %v194
  %286 = vmatprep.mubr.bf16.mxu0 %v242
  %287 = vmatmul.mubr.bf16.gmra.mxu0 %v76
  %v288 = vpop.f32.mrf.mxu0
  %v289 = vadd.f32 %v55, %v288
  %v290 = vpop.f32.mrf.mxu0
  %v291 = vadd.f32 %v55, %v290
  %v292 = vpop.f32.mrf.mxu0
  %v293 = vadd.f32 %v60, %v292
  %v294 = vpop.f32.mrf.mxu0
  %v295 = vadd.f32 %v60, %v294
  %296 = vmatprep.mubr.bf16.mxu0 %v245
  %297 = vmatmul.mubr.bf16.gmra.mxu0 %v78
  %v298 = vpop.f32.mrf.mxu0
  %v299 = vadd.f32 %v65, %v298
  %v300 = vpop.f32.mrf.mxu0
  %v301 = vadd.f32 %v65, %v300
  %v302 = vpop.f32.mrf.mxu0
  %v303 = vpop.f32.mrf.mxu0
  %304 = vdwg.mxu0
  %v305 = vmax.f32 %v289, 0.0
  %v306 = vmax.f32 %v291, 0.0
  %v307 = vmax.f32 %v293, 0.0
  %v308 = vmax.f32 %v295, 0.0
  %v309 = vmax.f32 %v299, 0.0
  %v310 = vmax.f32 %v301, 0.0
  %v311 = vpack.c.bf16 %v307, %v305
  %v312 = vpack.c.bf16 %v308, %v306
  %v313 = vpack.c.bf16 %v309, %v309
  %v314 = vpack.c.bf16 %v310, %v310
  %v319 = vunpack.c.l.b16 %v311
  %v320 = vunpack.c.l.b16 %v312
  %v321 = vunpack.c.h.b16 %v311
  %v322 = vunpack.c.h.b16 %v312
  %v323 = vunpack.c.l.b16 %v313
  %v324 = vunpack.c.l.b16 %v314
  %v325 = vpack.c.b16 %v320, %v319
  %v326 = vpack.c.b16 %v322, %v321
  %v327 = vpack.c.b16 %v324, %v323
  %331 = vst [vmem:[%s3] sm:$0xff] %v325
  %332 = vst [vmem:[%s3 + $0x8] sm:$0xff] %v326
  %333 = vst [vmem:[%s3 + $0x10] sm:$0x33] %v327
  // Predicated region
  $region14: #{bothnet_forward.4} parent=0 // pred_check
    _
  $region15: #{bothnet_forward.4} parent=0 // pred_check_branch
    %335 = sbr.rel (0) target = $region17
  $region16: #{bothnet_forward.4} parent=0 // pred_region
    _
  $region17: #{bothnet_forward.4} parent=0 // pred_fallthru
    _
  // Predicated region
  $region18: #{bothnet_forward.4} parent=0 // pred_check
    _
  $region19: #{bothnet_forward.4} parent=0 // pred_check_branch
    %337 = sbr.rel (0) target = $region21
  $region20: #{bothnet_forward.4} parent=0 // pred_region
    _
  $region21: #{bothnet_forward.4} parent=0 // pred_fallthru
    _

// kernel: tile.18
$region0: #{tile.18}
  #allocation0 [shape = 's32[1]{0}', space=sflag, size = 0x4, scoped, tag = 'scoped memory for tile.18']
  %s0 = inlined_call_operand.vmem [shape: s32[4], index: 0, kind: input, shape index: {}]
  %s1 = inlined_call_operand.vmem [shape: s32[4,4], index: 1, kind: output, shape index: {}]
  // Predicated region
  $region2: #{tile.18} parent=0 // pred_check
    _
  $region3: #{tile.18} parent=0 // pred_check_branch
    %3 = sbr.rel (0) target = $region5
  $region4: #{tile.18} parent=0 // pred_region
    _
  $region5: #{tile.18} parent=0 // pred_fallthru
    _
  %v4 = vld [vmem:[%s0] ss:$0 sm:$0xff]
  %5 = vst [vmem:[%s1] sm:$0xf] %v4

// kernel: bothnet_forward.5
$region0: #{bothnet_forward.5}
  #allocation0 [shape = 'u32[]', space=smem, size = 0x4, offset = 0x4, fixed_abs, tag = 'smem constant byte address 0x4 - core index']
  #allocation1 [shape = 'u32[144,128]{1,0:T(1,128)}', space=vmem, size = 0x12000, scoped, tag = 'internal scratch']
  %s0 = inlined_call_operand.vmem [shape: bf16[4,321], index: 0, kind: input, shape index: {}]
  %s1 = inlined_call_operand.vmem [shape: bf16[321,51], index: 1, kind: input, shape index: {}]
  %s2 = inlined_call_operand.vmem [shape: bf16[51,1030], index: 2, kind: input, shape index: {}]
  %s3 = inlined_call_operand.vmem [shape: f32[2,20], index: 3, kind: input, shape index: {}]
  %s4 = inlined_call_operand.vmem [shape: f32[4,128], index: 4, kind: output, shape index: {}]
  %s5 = sld [smem:[#allocation0]]
  $region30: #{bothnet_forward.5} parent=0
    _
  %s7 = ssub.s32 1, %s5
  %s8 = scalar_select 0, %s7, %s5
  $region1: #{bothnet_forward.5} parent=0
    #allocation2 [shape = 'u8[1024]{0}', space=smem, size = 0x400, scoped, tag = 'input window, operand 3, single buffered']
    #allocation3 [shape = 's32[1]{0}', space=sflag, size = 0x4, scoped, tag = 'scoped memory for bothnet_forward.5']
    %9 = vsyncpa [#allocation3], 0
    // Predicated region
    $region2: #{bothnet_forward.5} parent=1 // pred_check
      _
    $region3: #{bothnet_forward.5} parent=1 // pred_check_branch
      %11 = sbr.rel (0) target = $region5
    $region4: #{bothnet_forward.5} parent=1 // pred_region
      _
    $region5: #{bothnet_forward.5} parent=1 // pred_fallthru
      _
    // Predicated region
    $region6: #{bothnet_forward.5} parent=1 // pred_check
      _
    $region7: #{bothnet_forward.5} parent=1 // pred_check_branch
      %13 = sbr.rel (0) target = $region9
    $region8: #{bothnet_forward.5} parent=1 // pred_region
      _
    $region9: #{bothnet_forward.5} parent=1 // pred_fallthru
      _
    // Predicated region
    $region10: #{bothnet_forward.5} parent=1 // pred_check
      _
    $region11: #{bothnet_forward.5} parent=1 // pred_check_branch
      %15 = sbr.rel (0) target = $region13
    $region12: #{bothnet_forward.5} parent=1 // pred_region
      _
    $region13: #{bothnet_forward.5} parent=1 // pred_fallthru
      _
    // Predicated region
    $region14: #{bothnet_forward.5} parent=1 // pred_check
      _
    $region15: #{bothnet_forward.5} parent=1 // pred_check_branch
      %17 = sbr.rel (0) target = $region17
    $region16: #{bothnet_forward.5} parent=1 // pred_region
      %s19 = ssub.s32 32, 32
      %20 = vsyncadd [#allocation3], %s19
      %s22 = sshll.u32 %s3, 4
      %s23 = int_to_ptr.vmem [resolvable:$true] %s22
      %25 = dma.vmem_to_smem %s23, 32, [#allocation2], [#allocation3]
    $region17: #{bothnet_forward.5} parent=1 // pred_fallthru
      _
    // Predicated region
    $region18: #{bothnet_forward.5} parent=1 // pred_check
      _
    $region19: #{bothnet_forward.5} parent=1 // pred_check_branch
      %27 = sbr.rel (0) target = $region21
    $region20: #{bothnet_forward.5} parent=1 // pred_region
      %28 = dma.done [#allocation3], 32
    $region21: #{bothnet_forward.5} parent=1 // pred_fallthru
      _
    %29 = sfence
    %v31 = vld [vmem:[%s0] sm:$0x3f]
    %v32 = vld [vmem:[%s1] sm:$0xf]
    %v33 = vld [vmem:[%s1 + $0x4] sm:$0xf]
    %v34 = vld [vmem:[%s1 + $0x8] sm:$0xf]
    %v35 = vld [vmem:[%s1 + $0xc] sm:$0xf]
    %v36 = vld [vmem:[%s1 + $0x10] sm:$0xf]
    %v37 = vld [vmem:[%s1 + $0x14] sm:$0xf]
    %v38 = vld [vmem:[%s1 + $0x18] sm:$0xf]
    %v39 = vld [vmem:[%s1 + $0x1c] sm:$0xf]
    %v40 = vld [vmem:[%s1 + $0x20] sm:$0xf]
    %v41 = vld [vmem:[%s1 + $0x24] sm:$0xf]
    %v42 = vld [vmem:[%s1 + $0x28] sm:$0xf]
    %v43 = vld [vmem:[%s1 + $0x2c] sm:$0xf]
    %v44 = vld [vmem:[%s1 + $0x30] sm:$0xf]
    %v45 = vld [vmem:[%s1 + $0x34] sm:$0xf]
    %v46 = vld [vmem:[%s1 + $0x38] sm:$0xf]
    %v47 = vld [vmem:[%s1 + $0x3c] sm:$0xf]
    %v48 = vld [vmem:[%s1 + $0x40] sm:$0xf]
    %v49 = vld [vmem:[%s1 + $0x44] sm:$0xf]
    %v50 = vld [vmem:[%s1 + $0x48] sm:$0xf]
    %v51 = vld [vmem:[%s1 + $0x4c] sm:$0xf]
    %v52 = vld [vmem:[%s1 + $0x50] sm:$0xf]
    %v53 = vld [vmem:[%s1 + $0x54] sm:$0xf]
    %v54 = vld [vmem:[%s1 + $0x58] sm:$0xf]
    %v55 = vld [vmem:[%s1 + $0x5c] sm:$0xf]
    %v56 = vld [vmem:[%s1 + $0x60] sm:$0xf]
    %v57 = vld [vmem:[%s1 + $0x64] sm:$0xf]
    %v58 = vld [vmem:[%s1 + $0x68] sm:$0xf]
    %v59 = vld [vmem:[%s1 + $0x6c] sm:$0xf]
    %v60 = vld [vmem:[%s1 + $0x70] sm:$0xf]
    %v61 = vld [vmem:[%s1 + $0x74] sm:$0xf]
    %v62 = vld [vmem:[%s1 + $0x78] sm:$0xf]
    %v63 = vld [vmem:[%s1 + $0x7c] sm:$0xf]
    %v64 = vld [vmem:[%s1 + $0x80] sm:$0xf]
    %v65 = vld [vmem:[%s1 + $0x84] sm:$0xf]
    %v66 = vld [vmem:[%s1 + $0x88] sm:$0xf]
    %v67 = vld [vmem:[%s1 + $0x8c] sm:$0xf]
    %v68 = vld [vmem:[%s1 + $0x90] sm:$0xf]
    %v69 = vld [vmem:[%s1 + $0x94] sm:$0xf]
    %v70 = vld [vmem:[%s1 + $0x98] sm:$0xf]
    %v71 = vld [vmem:[%s1 + $0x9c] sm:$0xf]
    %v72 = vld [vmem:[%s1 + $0xa0] sm:$0x1]
    %v74 = vcombine.high %v31, %v31
    %v76 = vunpack.c.l.s4 1983009808
    %v77 = vunpack.c.0.s8 %v76
    %v78 = vlaneseq
    %v79 = vshrl.u32 %v78, 7
    %v80 = vsub.s32 %v77, %v79
    %v81 = vrot.slane %v31, %v80
    %v83 = vunpack.c.l.s4 1983009808
    %v84 = vunpack.c.0.s8 %v83
    %v85 = vlaneseq
    %v86 = vshrl.u32 %v85, 7
    %v87 = vsub.s32 %v84, %v86
    %v88 = vrot.slane %v74, %v87
    %v89 = vcombine.high %v81, %v81
    %v133 = vunpack.c.l.b16 %v32
    %v134 = vunpack.c.l.b16 %v33
    %v135 = vunpack.c.l.b16 %v34
    %v136 = vunpack.c.l.b16 %v35
    %v137 = vunpack.c.l.b16 %v36
    %v138 = vunpack.c.l.b16 %v37
    %v139 = vunpack.c.l.b16 %v38
    %v140 = vunpack.c.l.b16 %v39
    %v141 = vunpack.c.l.b16 %v40
    %v142 = vunpack.c.l.b16 %v41
    %v143 = vunpack.c.l.b16 %v42
    %v144 = vunpack.c.l.b16 %v43
    %v145 = vunpack.c.l.b16 %v44
    %v146 = vunpack.c.l.b16 %v45
    %v147 = vunpack.c.l.b16 %v46
    %v148 = vunpack.c.l.b16 %v47
    %v149 = vunpack.c.l.b16 %v48
    %v150 = vunpack.c.l.b16 %v49
    %v151 = vunpack.c.l.b16 %v50
    %v152 = vunpack.c.l.b16 %v51
    %v153 = vunpack.c.l.b16 %v52
    %v154 = vunpack.c.l.b16 %v53
    %v155 = vunpack.c.l.b16 %v54
    %v156 = vunpack.c.l.b16 %v55
    %v157 = vunpack.c.l.b16 %v56
    %v158 = vunpack.c.l.b16 %v57
    %v159 = vunpack.c.l.b16 %v58
    %v160 = vunpack.c.l.b16 %v59
    %v161 = vunpack.c.l.b16 %v60
    %v162 = vunpack.c.l.b16 %v61
    %v163 = vunpack.c.l.b16 %v62
    %v164 = vunpack.c.l.b16 %v63
    %v165 = vunpack.c.l.b16 %v64
    %v166 = vunpack.c.l.b16 %v65
    %v167 = vunpack.c.l.b16 %v66
    %v168 = vunpack.c.l.b16 %v67
    %v169 = vunpack.c.l.b16 %v68
    %v170 = vunpack.c.l.b16 %v69
    %v171 = vunpack.c.l.b16 %v70
    %v172 = vunpack.c.l.b16 %v71
    %v173 = vunpack.c.l.b16 %v72
    %v174 = vpack.c.b16 %v134, %v133
    %v175 = vpack.c.b16 %v136, %v135
    %v176 = vpack.c.b16 %v138, %v137
    %v177 = vpack.c.b16 %v140, %v139
    %v178 = vpack.c.b16 %v142, %v141
    %v179 = vpack.c.b16 %v144, %v143
    %v180 = vpack.c.b16 %v146, %v145
    %v181 = vpack.c.b16 %v148, %v147
    %v182 = vpack.c.b16 %v150, %v149
    %v183 = vpack.c.b16 %v152, %v151
    %v184 = vpack.c.b16 %v154, %v153
    %v185 = vpack.c.b16 %v156, %v155
    %v186 = vpack.c.b16 %v158, %v157
    %v187 = vpack.c.b16 %v160, %v159
    %v188 = vpack.c.b16 %v162, %v161
    %v189 = vpack.c.b16 %v164, %v163
    %v190 = vpack.c.b16 %v166, %v165
    %v191 = vpack.c.b16 %v168, %v167
    %v192 = vpack.c.b16 %v170, %v169
    %v193 = vpack.c.b16 %v172, %v171
    %v194 = vpack.c.b16 %v173, %v173
    %vm215 = vcmask 531456
    %v217 = vsel %vm215, %v88, 0
    %vm219 = vcmask 1040384
    %v220 = vsel 0, 4294967295, 65535
    %v221 = vsel %vm219, %v220, 0
    %v223 = vand.u32 %v194, %v221
    %225 = vmatprep.subr.bf16.mxu0 0
    %226 = vmatpush1.bf16.msra.mxu0 %v181
    %227 = vmatprep.subr.bf16.mxu0 0
    %228 = vmatpush1.bf16.msra.mxu0 %v180
    %229 = vmatprep.subr.bf16.mxu0 0
    %230 = vmatpush1.bf16.msra.mxu0 %v179
    %231 = vmatprep.subr.bf16.mxu0 0
    %232 = vmatpush1.bf16.msra.mxu0 %v178
    %233 = vmatprep.subr.bf16.mxu0 0
    %234 = vmatpush1.bf16.msra.mxu0 %v177
    %235 = vmatprep.subr.bf16.mxu0 0
    %236 = vmatpush1.bf16.msra.mxu0 %v176
    %237 = vmatprep.subr.bf16.mxu0 0
    %238 = vmatpush1.bf16.msra.mxu0 %v175
    %239 = vmatprep.subr.bf16.mxu0 0
    %240 = vmatpush1.bf16.msra.mxu0 %v174
    %241 = vmatprep.subr.bf16.mxu0 0
    %242 = vmatpush2.bf16.msra.mxu0 %v189
    %243 = vmatprep.subr.bf16.mxu0 0
    %244 = vmatpush2.bf16.msra.mxu0 %v188
    %245 = vmatprep.subr.bf16.mxu0 0
    %246 = vmatpush2.bf16.msra.mxu0 %v187
    %247 = vmatprep.subr.bf16.mxu0 0
    %248 = vmatpush2.bf16.msra.mxu0 %v186
    %249 = vmatprep.subr.bf16.mxu0 0
    %250 = vmatpush2.bf16.msra.mxu0 %v185
    %251 = vmatprep.subr.bf16.mxu0 0
    %252 = vmatpush2.bf16.msra.mxu0 %v184
    %253 = vmatprep.subr.bf16.mxu0 0
    %254 = vmatpush2.bf16.msra.mxu0 %v183
    %255 = vmatprep.subr.bf16.mxu0 0
    %256 = vmatpush2.bf16.msra.mxu0 %v182
    %257 = vmatprep.mubr.bf16.mxu0 %v89
    %258 = vmatmul.mubr.bf16.gmra.mxu0 %v81
    %v259 = vpop.f32.mrf.mxu0
    %v260 = vadd.f32 0.0, %v259
    %v261 = vpop.f32.mrf.mxu0
    %v262 = vpop.f32.mrf.mxu0
    %v263 = vpop.f32.mrf.mxu0
    %264 = vdwg.mxu0
    %265 = vmatprep.subr.bf16.mxu0 0
    %266 = vmatpush1.bf16.msra.mxu0 0
    %267 = vmatprep.subr.bf16.mxu0 0
    %268 = vmatpush1.bf16.msra.mxu0 0
    %269 = vmatprep.subr.bf16.mxu0 0
    %270 = vmatpush1.bf16.msra.mxu0 0
    %271 = vmatprep.subr.bf16.mxu0 0
    %272 = vmatpush1.bf16.msra.mxu0 %v223
    %273 = vmatprep.subr.bf16.mxu0 0
    %274 = vmatpush1.bf16.msra.mxu0 %v193
    %275 = vmatprep.subr.bf16.mxu0 0
    %276 = vmatpush1.bf16.msra.mxu0 %v192
    %277 = vmatprep.subr.bf16.mxu0 0
    %278 = vmatpush1.bf16.msra.mxu0 %v191
    %279 = vmatprep.subr.bf16.mxu0 0
    %280 = vmatpush1.bf16.msra.mxu0 %v190
    %281 = vmatprep.subr.bf16.mxu0 0
    %282 = vmatpush2.bf16.msra.mxu0 0
    %283 = vmatprep.subr.bf16.mxu0 0
    %284 = vmatpush2.bf16.msra.mxu0 0
    %285 = vmatprep.subr.bf16.mxu0 0
    %286 = vmatpush2.bf16.msra.mxu0 0
    %287 = vmatprep.subr.bf16.mxu0 0
    %288 = vmatpush2.bf16.msra.mxu0 0
    %289 = vmatprep.subr.bf16.mxu0 0
    %290 = vmatpush2.bf16.msra.mxu0 0
    %291 = vmatprep.subr.bf16.mxu0 0
    %292 = vmatpush2.bf16.msra.mxu0 0
    %293 = vmatprep.subr.bf16.mxu0 0
    %294 = vmatpush2.bf16.msra.mxu0 0
    %295 = vmatprep.subr.bf16.mxu0 0
    %296 = vmatpush2.bf16.msra.mxu0 0
    %297 = vmatprep.mubr.bf16.mxu0 0
    %298 = vmatmul.mubr.bf16.gmra.mxu0 %v217
    %v299 = vpop.f32.mrf.mxu0
    %v300 = vadd.f32 %v260, %v299
    %v301 = vpop.f32.mrf.mxu0
    %v302 = vpop.f32.mrf.mxu0
    %v303 = vpop.f32.mrf.mxu0
    %304 = vdwg.mxu0
    %v305 = vmax.f32 %v300, 0.0
    %v306 = vpack.c.bf16 %v305, %v305
    %v307 = vld [vmem:[%s2] sm:$0xff]
    %v308 = vld [vmem:[%s2 + $0x8] sm:$0xff]
    %v309 = vld [vmem:[%s2 + $0x10] sm:$0xff]
    %v310 = vld [vmem:[%s2 + $0x18] sm:$0xff]
    %v311 = vld [vmem:[%s2 + $0x20] sm:$0xf]
    %v312 = vld [vmem:[%s2 + $0x24] sm:$0xff]
    %v313 = vld [vmem:[%s2 + $0x2c] sm:$0xff]
    %v314 = vld [vmem:[%s2 + $0x34] sm:$0xff]
    %v315 = vld [vmem:[%s2 + $0x3c] sm:$0xff]
    %v316 = vld [vmem:[%s2 + $0x44] sm:$0xf]
    %v317 = vld [vmem:[%s2 + $0x48] sm:$0xff]
    %v318 = vld [vmem:[%s2 + $0x50] sm:$0xff]
    %v319 = vld [vmem:[%s2 + $0x58] sm:$0xff]
    %v320 = vld [vmem:[%s2 + $0x60] sm:$0xff]
    %v321 = vld [vmem:[%s2 + $0x68] sm:$0xf]
    %v322 = vld [vmem:[%s2 + $0x6c] sm:$0xff]
    %v323 = vld [vmem:[%s2 + $0x74] sm:$0xff]
    %v324 = vld [vmem:[%s2 + $0x7c] sm:$0xff]
    %v325 = vld [vmem:[%s2 + $0x84] sm:$0xff]
    %v326 = vld [vmem:[%s2 + $0x8c] sm:$0xf]
    %v327 = vld [vmem:[%s2 + $0x90] sm:$0xff]
    %v328 = vld [vmem:[%s2 + $0x98] sm:$0xff]
    %v329 = vld [vmem:[%s2 + $0xa0] sm:$0xff]
    %v330 = vld [vmem:[%s2 + $0xa8] sm:$0xff]
    %v331 = vld [vmem:[%s2 + $0xb0] sm:$0xf]
    %v332 = vld [vmem:[%s2 + $0xb4] sm:$0xff]
    %v333 = vld [vmem:[%s2 + $0xbc] sm:$0xff]
    %v334 = vld [vmem:[%s2 + $0xc4] sm:$0xff]
    %v335 = vld [vmem:[%s2 + $0xcc] sm:$0xff]
    %v336 = vld [vmem:[%s2 + $0xd4] sm:$0xf]
    %v337 = vld [vmem:[%s2 + $0xd8] sm:$0x33]
    %v338 = vld [vmem:[%s2 + $0xe0] sm:$0x33]
    %v339 = vld [vmem:[%s2 + $0xe8] sm:$0x33]
    %v340 = vld [vmem:[%s2 + $0xf0] sm:$0x33]
    %v341 = vld [vmem:[%s2 + $0xf8] sm:$0x3]
    %v377 = vunpack.c.l.b16 %v307
    %v378 = vunpack.c.h.b16 %v307
    %v379 = vunpack.c.l.b16 %v308
    %v380 = vunpack.c.h.b16 %v308
    %v381 = vunpack.c.l.b16 %v309
    %v382 = vunpack.c.h.b16 %v309
    %v383 = vunpack.c.l.b16 %v310
    %v384 = vunpack.c.h.b16 %v310
    %v385 = vunpack.c.l.b16 %v311
    %v386 = vunpack.c.l.b16 %v312
    %v387 = vunpack.c.h.b16 %v312
    %v388 = vunpack.c.l.b16 %v313
    %v389 = vunpack.c.h.b16 %v313
    %v390 = vunpack.c.l.b16 %v314
    %v391 = vunpack.c.h.b16 %v314
    %v392 = vunpack.c.l.b16 %v315
    %v393 = vunpack.c.h.b16 %v315
    %v394 = vunpack.c.l.b16 %v316
    %v395 = vunpack.c.l.b16 %v317
    %v396 = vunpack.c.h.b16 %v317
    %v397 = vunpack.c.l.b16 %v318
    %v398 = vunpack.c.h.b16 %v318
    %v399 = vunpack.c.l.b16 %v319
    %v400 = vunpack.c.h.b16 %v319
    %v401 = vunpack.c.l.b16 %v320
    %v402 = vunpack.c.h.b16 %v320
    %v403 = vunpack.c.l.b16 %v321
    %v404 = vunpack.c.l.b16 %v322
    %v405 = vunpack.c.h.b16 %v322
    %v406 = vunpack.c.l.b16 %v323
    %v407 = vunpack.c.h.b16 %v323
    %v408 = vunpack.c.l.b16 %v324
    %v409 = vunpack.c.h.b16 %v324
    %v410 = vunpack.c.l.b16 %v325
    %v411 = vunpack.c.h.b16 %v325
    %v412 = vunpack.c.l.b16 %v326
    %v413 = vunpack.c.l.b16 %v327
    %v414 = vunpack.c.h.b16 %v327
    %v415 = vunpack.c.l.b16 %v328
    %v416 = vunpack.c.h.b16 %v328
    %v417 = vunpack.c.l.b16 %v329
    %v418 = vunpack.c.h.b16 %v329
    %v419 = vunpack.c.l.b16 %v330
    %v420 = vunpack.c.h.b16 %v330
    %v421 = vunpack.c.l.b16 %v331
    %v422 = vunpack.c.l.b16 %v332
    %v423 = vunpack.c.h.b16 %v332
    %v424 = vunpack.c.l.b16 %v333
    %v425 = vunpack.c.h.b16 %v333
    %v426 = vunpack.c.l.b16 %v334
    %v427 = vunpack.c.h.b16 %v334
    %v428 = vunpack.c.l.b16 %v335
    %v429 = vunpack.c.h.b16 %v335
    %v430 = vunpack.c.l.b16 %v336
    %v431 = vunpack.c.l.b16 %v337
    %v432 = vunpack.c.h.b16 %v337
    %v433 = vunpack.c.l.b16 %v338
    %v434 = vunpack.c.h.b16 %v338
    %v435 = vunpack.c.l.b16 %v339
    %v436 = vunpack.c.h.b16 %v339
    %v437 = vunpack.c.l.b16 %v340
    %v438 = vunpack.c.h.b16 %v340
    %v439 = vunpack.c.l.b16 %v341
    %v440 = vpack.c.b16 %v386, %v377
    %v441 = vpack.c.b16 %v387, %v378
    %v442 = vpack.c.b16 %v388, %v379
    %v443 = vpack.c.b16 %v389, %v380
    %v444 = vpack.c.b16 %v390, %v381
    %v445 = vpack.c.b16 %v391, %v382
    %v446 = vpack.c.b16 %v392, %v383
    %v447 = vpack.c.b16 %v393, %v384
    %v448 = vpack.c.b16 %v394, %v385
    %v449 = vpack.c.b16 %v404, %v395
    %v450 = vpack.c.b16 %v405, %v396
    %v451 = vpack.c.b16 %v406, %v397
    %v452 = vpack.c.b16 %v407, %v398
    %v453 = vpack.c.b16 %v408, %v399
    %v454 = vpack.c.b16 %v409, %v400
    %v455 = vpack.c.b16 %v410, %v401
    %v456 = vpack.c.b16 %v411, %v402
    %v457 = vpack.c.b16 %v412, %v403
    %v458 = vpack.c.b16 %v422, %v413
    %v459 = vpack.c.b16 %v423, %v414
    %v460 = vpack.c.b16 %v424, %v415
    %v461 = vpack.c.b16 %v425, %v416
    %v462 = vpack.c.b16 %v426, %v417
    %v463 = vpack.c.b16 %v427, %v418
    %v464 = vpack.c.b16 %v428, %v419
    %v465 = vpack.c.b16 %v429, %v420
    %v466 = vpack.c.b16 %v430, %v421
    %v467 = vpack.c.b16 %v431, %v431
    %v468 = vpack.c.b16 %v432, %v432
    %v469 = vpack.c.b16 %v433, %v433
    %v470 = vpack.c.b16 %v434, %v434
    %v471 = vpack.c.b16 %v435, %v435
    %v472 = vpack.c.b16 %v436, %v436
    %v473 = vpack.c.b16 %v437, %v437
    %v474 = vpack.c.b16 %v438, %v438
    %v475 = vpack.c.b16 %v439, %v439
    %vm503 = vcmask 416768
    %v505 = vsel %vm503, %v306, 0
    %vm507 = vcmask 1041408
    %v508 = vsel %vm219, 4294967295, 65535
    %v509 = vsel %vm507, %v508, 0
    %v511 = vand.u32 %v467, %v509
    %v514 = vand.u32 %v468, %v509
    %v517 = vand.u32 %v469, %v509
    %v520 = vand.u32 %v470, %v509
    %v523 = vand.u32 %v471, %v509
    %v526 = vand.u32 %v472, %v509
    %v529 = vand.u32 %v473, %v509
    %v532 = vand.u32 %v474, %v509
    %v535 = vand.u32 %v475, %v509
    %537 = vmatprep.subr.bf16.mxu0 0
    %538 = vmatpush1.bf16.msra.mxu0 0
    %539 = vmatprep.subr.bf16.mxu0 0
    %540 = vmatpush1.bf16.msra.mxu0 0
    %541 = vmatprep.subr.bf16.mxu0 0
    %542 = vmatpush1.bf16.msra.mxu0 0
    %543 = vmatprep.subr.bf16.mxu0 0
    %544 = vmatpush1.bf16.msra.mxu0 0
    %545 = vmatprep.subr.bf16.mxu0 %v514
    %546 = vmatpush1.bf16.msra.mxu0 %v511
    %547 = vmatprep.subr.bf16.mxu0 %v459
    %548 = vmatpush1.bf16.msra.mxu0 %v458
    %549 = vmatprep.subr.bf16.mxu0 %v450
    %550 = vmatpush1.bf16.msra.mxu0 %v449
    %551 = vmatprep.subr.bf16.mxu0 %v441
    %552 = vmatpush1.bf16.msra.mxu0 %v440
    %553 = vmatprep.subr.bf16.mxu0 0
    %554 = vmatpush2.bf16.msra.mxu0 0
    %555 = vmatprep.subr.bf16.mxu0 0
    %556 = vmatpush2.bf16.msra.mxu0 0
    %557 = vmatprep.subr.bf16.mxu0 0
    %558 = vmatpush2.bf16.msra.mxu0 0
    %559 = vmatprep.subr.bf16.mxu0 0
    %560 = vmatpush2.bf16.msra.mxu0 0
    %561 = vmatprep.subr.bf16.mxu0 0
    %562 = vmatpush2.bf16.msra.mxu0 0
    %563 = vmatprep.subr.bf16.mxu0 0
    %564 = vmatpush2.bf16.msra.mxu0 0
    %565 = vmatprep.subr.bf16.mxu0 0
    %566 = vmatpush2.bf16.msra.mxu0 0
    %567 = vmatprep.subr.bf16.mxu0 0
    %568 = vmatpush2.bf16.msra.mxu0 0
    %569 = vmatprep.mubr.bf16.mxu0 0
    %570 = vmatmul.mubr.bf16.gmra.mxu0 %v505
    %v571 = vpop.f32.mrf.mxu0
    %v572 = vadd.f32 0.0, %v571
    %v573 = vpop.f32.mrf.mxu0
    %v574 = vadd.f32 0.0, %v573
    %v575 = vpop.f32.mrf.mxu0
    %v576 = vpop.f32.mrf.mxu0
    %577 = vdwg.mxu0
    %578 = vmatprep.subr.bf16.mxu0 0
    %579 = vmatpush1.bf16.msra.mxu0 0
    %580 = vmatprep.subr.bf16.mxu0 0
    %581 = vmatpush1.bf16.msra.mxu0 0
    %582 = vmatprep.subr.bf16.mxu0 0
    %583 = vmatpush1.bf16.msra.mxu0 0
    %584 = vmatprep.subr.bf16.mxu0 0
    %585 = vmatpush1.bf16.msra.mxu0 0
    %586 = vmatprep.subr.bf16.mxu0 %v520
    %587 = vmatpush1.bf16.msra.mxu0 %v517
    %588 = vmatprep.subr.bf16.mxu0 %v461
    %589 = vmatpush1.bf16.msra.mxu0 %v460
    %590 = vmatprep.subr.bf16.mxu0 %v452
    %591 = vmatpush1.bf16.msra.mxu0 %v451
    %592 = vmatprep.subr.bf16.mxu0 %v443
    %593 = vmatpush1.bf16.msra.mxu0 %v442
    %594 = vmatprep.subr.bf16.mxu0 0
    %595 = vmatpush2.bf16.msra.mxu0 0
    %596 = vmatprep.subr.bf16.mxu0 0
    %597 = vmatpush2.bf16.msra.mxu0 0
    %598 = vmatprep.subr.bf16.mxu0 0
    %599 = vmatpush2.bf16.msra.mxu0 0
    %600 = vmatprep.subr.bf16.mxu0 0
    %601 = vmatpush2.bf16.msra.mxu0 0
    %602 = vmatprep.subr.bf16.mxu0 0
    %603 = vmatpush2.bf16.msra.mxu0 0
    %604 = vmatprep.subr.bf16.mxu0 0
    %605 = vmatpush2.bf16.msra.mxu0 0
    %606 = vmatprep.subr.bf16.mxu0 0
    %607 = vmatpush2.bf16.msra.mxu0 0
    %608 = vmatprep.subr.bf16.mxu0 0
    %609 = vmatpush2.bf16.msra.mxu0 0
    %610 = vmatprep.mubr.bf16.mxu0 0
    %611 = vmatmul.mubr.bf16.gmra.mxu0 %v505
    %v612 = vpop.f32.mrf.mxu0
    %v613 = vadd.f32 0.0, %v612
    %v614 = vpop.f32.mrf.mxu0
    %v615 = vadd.f32 0.0, %v614
    %v616 = vpop.f32.mrf.mxu0
    %v617 = vpop.f32.mrf.mxu0
    %618 = vdwg.mxu0
    %619 = vmatprep.subr.bf16.mxu0 0
    %620 = vmatpush1.bf16.msra.mxu0 0
    %621 = vmatprep.subr.bf16.mxu0 0
    %622 = vmatpush1.bf16.msra.mxu0 0
    %623 = vmatprep.subr.bf16.mxu0 0
    %624 = vmatpush1.bf16.msra.mxu0 0
    %625 = vmatprep.subr.bf16.mxu0 0
    %626 = vmatpush1.bf16.msra.mxu0 0
    %627 = vmatprep.subr.bf16.mxu0 %v526
    %628 = vmatpush1.bf16.msra.mxu0 %v523
    %629 = vmatprep.subr.bf16.mxu0 %v463
    %630 = vmatpush1.bf16.msra.mxu0 %v462
    %631 = vmatprep.subr.bf16.mxu0 %v454
    %632 = vmatpush1.bf16.msra.mxu0 %v453
    %633 = vmatprep.subr.bf16.mxu0 %v445
    %634 = vmatpush1.bf16.msra.mxu0 %v444
    %635 = vmatprep.subr.bf16.mxu0 0
    %636 = vmatpush2.bf16.msra.mxu0 0
    %637 = vmatprep.subr.bf16.mxu0 0
    %638 = vmatpush2.bf16.msra.mxu0 0
    %639 = vmatprep.subr.bf16.mxu0 0
    %640 = vmatpush2.bf16.msra.mxu0 0
    %641 = vmatprep.subr.bf16.mxu0 0
    %642 = vmatpush2.bf16.msra.mxu0 0
    %643 = vmatprep.subr.bf16.mxu0 0
    %644 = vmatpush2.bf16.msra.mxu0 0
    %645 = vmatprep.subr.bf16.mxu0 0
    %646 = vmatpush2.bf16.msra.mxu0 0
    %647 = vmatprep.subr.bf16.mxu0 0
    %648 = vmatpush2.bf16.msra.mxu0 0
    %649 = vmatprep.subr.bf16.mxu0 0
    %650 = vmatpush2.bf16.msra.mxu0 0
    %651 = vmatprep.mubr.bf16.mxu0 0
    %652 = vmatmul.mubr.bf16.gmra.mxu0 %v505
    %v653 = vpop.f32.mrf.mxu0
    %v654 = vadd.f32 0.0, %v653
    %v655 = vpop.f32.mrf.mxu0
    %v656 = vadd.f32 0.0, %v655
    %v657 = vpop.f32.mrf.mxu0
    %v658 = vpop.f32.mrf.mxu0
    %659 = vdwg.mxu0
    %660 = vmatprep.subr.bf16.mxu0 0
    %661 = vmatpush1.bf16.msra.mxu0 0
    %662 = vmatprep.subr.bf16.mxu0 0
    %663 = vmatpush1.bf16.msra.mxu0 0
    %664 = vmatprep.subr.bf16.mxu0 0
    %665 = vmatpush1.bf16.msra.mxu0 0
    %666 = vmatprep.subr.bf16.mxu0 0
    %667 = vmatpush1.bf16.msra.mxu0 0
    %668 = vmatprep.subr.bf16.mxu0 %v532
    %669 = vmatpush1.bf16.msra.mxu0 %v529
    %670 = vmatprep.subr.bf16.mxu0 %v465
    %671 = vmatpush1.bf16.msra.mxu0 %v464
    %672 = vmatprep.subr.bf16.mxu0 %v456
    %673 = vmatpush1.bf16.msra.mxu0 %v455
    %674 = vmatprep.subr.bf16.mxu0 %v447
    %675 = vmatpush1.bf16.msra.mxu0 %v446
    %676 = vmatprep.subr.bf16.mxu0 0
    %677 = vmatpush2.bf16.msra.mxu0 0
    %678 = vmatprep.subr.bf16.mxu0 0
    %679 = vmatpush2.bf16.msra.mxu0 0
    %680 = vmatprep.subr.bf16.mxu0 0
    %681 = vmatpush2.bf16.msra.mxu0 0
    %682 = vmatprep.subr.bf16.mxu0 0
    %683 = vmatpush2.bf16.msra.mxu0 0
    %684 = vmatprep.subr.bf16.mxu0 0
    %685 = vmatpush2.bf16.msra.mxu0 0
    %686 = vmatprep.subr.bf16.mxu0 0
    %687 = vmatpush2.bf16.msra.mxu0 0
    %688 = vmatprep.subr.bf16.mxu0 0
    %689 = vmatpush2.bf16.msra.mxu0 0
    %690 = vmatprep.subr.bf16.mxu0 0
    %691 = vmatpush2.bf16.msra.mxu0 0
    %692 = vmatprep.mubr.bf16.mxu0 0
    %693 = vmatmul.mubr.bf16.gmra.mxu0 %v505
    %v694 = vpop.f32.mrf.mxu0
    %v695 = vadd.f32 0.0, %v694
    %v696 = vpop.f32.mrf.mxu0
    %v697 = vadd.f32 0.0, %v696
    %v698 = vpop.f32.mrf.mxu0
    %v699 = vpop.f32.mrf.mxu0
    %700 = vdwg.mxu0
    %701 = vmatprep.subr.bf16.mxu0 0
    %702 = vmatpush1.bf16.msra.mxu0 0
    %703 = vmatprep.subr.bf16.mxu0 0
    %704 = vmatpush1.bf16.msra.mxu0 0
    %705 = vmatprep.subr.bf16.mxu0 0
    %706 = vmatpush1.bf16.msra.mxu0 0
    %707 = vmatprep.subr.bf16.mxu0 0
    %708 = vmatpush1.bf16.msra.mxu0 0
    %709 = vmatprep.subr.bf16.mxu0 0
    %710 = vmatpush1.bf16.msra.mxu0 %v535
    %711 = vmatprep.subr.bf16.mxu0 0
    %712 = vmatpush1.bf16.msra.mxu0 %v466
    %713 = vmatprep.subr.bf16.mxu0 0
    %714 = vmatpush1.bf16.msra.mxu0 %v457
    %715 = vmatprep.subr.bf16.mxu0 0
    %716 = vmatpush1.bf16.msra.mxu0 %v448
    %717 = vmatprep.subr.bf16.mxu0 0
    %718 = vmatpush2.bf16.msra.mxu0 0
    %719 = vmatprep.subr.bf16.mxu0 0
    %720 = vmatpush2.bf16.msra.mxu0 0
    %721 = vmatprep.subr.bf16.mxu0 0
    %722 = vmatpush2.bf16.msra.mxu0 0
    %723 = vmatprep.subr.bf16.mxu0 0
    %724 = vmatpush2.bf16.msra.mxu0 0
    %725 = vmatprep.subr.bf16.mxu0 0
    %726 = vmatpush2.bf16.msra.mxu0 0
    %727 = vmatprep.subr.bf16.mxu0 0
    %728 = vmatpush2.bf16.msra.mxu0 0
    %729 = vmatprep.subr.bf16.mxu0 0
    %730 = vmatpush2.bf16.msra.mxu0 0
    %731 = vmatprep.subr.bf16.mxu0 0
    %732 = vmatpush2.bf16.msra.mxu0 0
    %733 = vmatprep.mubr.bf16.mxu0 0
    %734 = vmatmul.mubr.bf16.gmra.mxu0 %v505
    %v735 = vpop.f32.mrf.mxu0
    %v736 = vadd.f32 0.0, %v735
    %v737 = vpop.f32.mrf.mxu0
    %v738 = vpop.f32.mrf.mxu0
    %v739 = vpop.f32.mrf.mxu0
    %740 = vdwg.mxu0
    %741 = vxpose.xlu0.b32.start [1/16] %v305, 128
    %742 = vxpose.xlu0.b32.cont [2/16] 0.0, 128
    %743 = vxpose.xlu0.b32.cont [3/16] 0.0, 128
    %744 = vxpose.xlu0.b32.cont [4/16] 0.0, 128
    %745 = vxpose.xlu0.b32.cont [5/16] 0.0, 128
    %746 = vxpose.xlu0.b32.cont [6/16] 0.0, 128
    %747 = vxpose.xlu0.b32.cont [7/16] 0.0, 128
    %748 = vxpose.xlu0.b32.cont [8/16] 0.0, 128
    %749 = vxpose.xlu0.b32.cont [9/16] 0.0, 128
    %750 = vxpose.xlu0.b32.cont [10/16] 0.0, 128
    %751 = vxpose.xlu0.b32.cont [11/16] 0.0, 128
    %752 = vxpose.xlu0.b32.cont [12/16] 0.0, 128
    %753 = vxpose.xlu0.b32.cont [13/16] 0.0, 128
    %754 = vxpose.xlu0.b32.cont [14/16] 0.0, 128
    %755 = vxpose.xlu0.b32.cont [15/16] 0.0, 128
    %756 = vxpose.xlu0.b32.end [16/16] 0.0, 128
    %v757 = vpop.trf.xlu0
    %v758 = vpop.trf.xlu0
    %v759 = vpop.trf.xlu0
    %v760 = vpop.trf.xlu0
    %v761 = vpop.trf.xlu0
    %v762 = vpop.trf.xlu0
    %v763 = vpop.trf.xlu0
    %v764 = vpop.trf.xlu0
    %v765 = vpop.trf.xlu0
    %v766 = vpop.trf.xlu0
    %v767 = vpop.trf.xlu0
    %v768 = vpop.trf.xlu0
    %v769 = vpop.trf.xlu0
    %v770 = vpop.trf.xlu0
    %v771 = vpop.trf.xlu0
    %v772 = vpop.trf.xlu0
    %v773 = vpack.c.bf16 %v758, %v757
    %v774 = vpack.c.bf16 %v760, %v759
    %v775 = vpack.c.bf16 %v762, %v761
    %v776 = vpack.c.bf16 %v763, %v763
    %v777 = vpack.c.bf16 %v572, %v572
    %779 = vrot.lane.b32.xlu0 %v777, 118
    %v780 = vpop.permute.xlu0 %779
    %v782 = vsel %vm503, %v780, 0
    %v785 = vand.u32 %v776, %v509
    %787 = vmatprep.subr.bf16.mxu0 0
    %788 = vmatpush1.bf16.msra.mxu0 0
    %789 = vmatprep.subr.bf16.mxu0 0
    %790 = vmatpush1.bf16.msra.mxu0 0
    %791 = vmatprep.subr.bf16.mxu0 0
    %792 = vmatpush1.bf16.msra.mxu0 0
    %793 = vmatprep.subr.bf16.mxu0 0
    %794 = vmatpush1.bf16.msra.mxu0 0
    %795 = vmatprep.subr.bf16.mxu0 0
    %796 = vmatpush1.bf16.msra.mxu0 %v785
    %797 = vmatprep.subr.bf16.mxu0 0
    %798 = vmatpush1.bf16.msra.mxu0 %v775
    %799 = vmatprep.subr.bf16.mxu0 0
    %800 = vmatpush1.bf16.msra.mxu0 %v774
    %801 = vmatprep.subr.bf16.mxu0 0
    %802 = vmatpush1.bf16.msra.mxu0 %v773
    %803 = vmatprep.subr.bf16.mxu0 0
    %804 = vmatpush2.bf16.msra.mxu0 0
    %805 = vmatprep.subr.bf16.mxu0 0
    %806 = vmatpush2.bf16.msra.mxu0 0
    %807 = vmatprep.subr.bf16.mxu0 0
    %808 = vmatpush2.bf16.msra.mxu0 0
    %809 = vmatprep.subr.bf16.mxu0 0
    %810 = vmatpush2.bf16.msra.mxu0 0
    %811 = vmatprep.subr.bf16.mxu0 0
    %812 = vmatpush2.bf16.msra.mxu0 0
    %813 = vmatprep.subr.bf16.mxu0 0
    %814 = vmatpush2.bf16.msra.mxu0 0
    %815 = vmatprep.subr.bf16.mxu0 0
    %816 = vmatpush2.bf16.msra.mxu0 0
    %817 = vmatprep.subr.bf16.mxu0 0
    %818 = vmatpush2.bf16.msra.mxu0 0
    %819 = vmatprep.mubr.bf16.mxu0 0
    %820 = vmatmul.mubr.bf16.gmra.mxu0 %v782
    %v821 = vpop.f32.mrf.mxu0
    %v822 = vadd.f32 0.0, %v821
    %v823 = vpop.f32.mrf.mxu0
    %v824 = vpop.f32.mrf.mxu0
    %v825 = vpop.f32.mrf.mxu0
    %826 = vdwg.mxu0
    %v827 = vtanh.pop %v822
    %s828 = sld [smem:[#allocation2]]
    %v829 = vstv %s828
    %v830 = vmul.f32 %v827, %v829
    %v831 = vadd.f32 %v830, 0.0
    %832 = vrot.lane.b32.xlu0 %v777, 67
    %v833 = vpop.permute.xlu0 %832
    %v835 = vsel %vm503, %v833, 0
    %837 = vmatprep.subr.bf16.mxu0 0
    %838 = vmatpush1.bf16.msra.mxu0 0
    %839 = vmatprep.subr.bf16.mxu0 0
    %840 = vmatpush1.bf16.msra.mxu0 0
    %841 = vmatprep.subr.bf16.mxu0 0
    %842 = vmatpush1.bf16.msra.mxu0 0
    %843 = vmatprep.subr.bf16.mxu0 0
    %844 = vmatpush1.bf16.msra.mxu0 0
    %845 = vmatprep.subr.bf16.mxu0 0
    %846 = vmatpush1.bf16.msra.mxu0 %v785
    %847 = vmatprep.subr.bf16.mxu0 0
    %848 = vmatpush1.bf16.msra.mxu0 %v775
    %849 = vmatprep.subr.bf16.mxu0 0
    %850 = vmatpush1.bf16.msra.mxu0 %v774
    %851 = vmatprep.subr.bf16.mxu0 0
    %852 = vmatpush1.bf16.msra.mxu0 %v773
    %853 = vmatprep.subr.bf16.mxu0 0
    %854 = vmatpush2.bf16.msra.mxu0 0
    %855 = vmatprep.subr.bf16.mxu0 0
    %856 = vmatpush2.bf16.msra.mxu0 0
    %857 = vmatprep.subr.bf16.mxu0 0
    %858 = vmatpush2.bf16.msra.mxu0 0
    %859 = vmatprep.subr.bf16.mxu0 0
    %860 = vmatpush2.bf16.msra.mxu0 0
    %861 = vmatprep.subr.bf16.mxu0 0
    %862 = vmatpush2.bf16.msra.mxu0 0
    %863 = vmatprep.subr.bf16.mxu0 0
    %864 = vmatpush2.bf16.msra.mxu0 0
    %865 = vmatprep.subr.bf16.mxu0 0
    %866 = vmatpush2.bf16.msra.mxu0 0
    %867 = vmatprep.subr.bf16.mxu0 0
    %868 = vmatpush2.bf16.msra.mxu0 0
    %869 = vmatprep.mubr.bf16.mxu0 0
    %870 = vmatmul.mubr.bf16.gmra.mxu0 %v835
    %v871 = vpop.f32.mrf.mxu0
    %v872 = vadd.f32 0.0, %v871
    %v873 = vpop.f32.mrf.mxu0
    %v874 = vpop.f32.mrf.mxu0
    %v875 = vpop.f32.mrf.mxu0
    %876 = vdwg.mxu0
    %v877 = vtanh.pop %v872
    %s878 = sld [smem:[#allocation2 + $0x1]]
    %v879 = vstv %s878
    %v880 = vmul.f32 %v877, %v879
    %v881 = vadd.f32 %v831, %v880
    %v882 = vpack.c.bf16 %v574, %v574
    %884 = vrot.lane.b32.xlu0 %v777, 16
    %v885 = vpop.permute.xlu0 %884
    %886 = vrot.lane.b32.xlu0 %v882, 16
    %v887 = vpop.permute.xlu0 %886
    %vm888 = vcmask 130048
    %v889 = vsel %vm888, %v885, %v887
    %v891 = vsel %vm503, %v889, 0
    %893 = vmatprep.subr.bf16.mxu0 0
    %894 = vmatpush1.bf16.msra.mxu0 0
    %895 = vmatprep.subr.bf16.mxu0 0
    %896 = vmatpush1.bf16.msra.mxu0 0
    %897 = vmatprep.subr.bf16.mxu0 0
    %898 = vmatpush1.bf16.msra.mxu0 0
    %899 = vmatprep.subr.bf16.mxu0 0
    %900 = vmatpush1.bf16.msra.mxu0 0
    %901 = vmatprep.subr.bf16.mxu0 0
    %902 = vmatpush1.bf16.msra.mxu0 %v785
    %903 = vmatprep.subr.bf16.mxu0 0
    %904 = vmatpush1.bf16.msra.mxu0 %v775
    %905 = vmatprep.subr.bf16.mxu0 0
    %906 = vmatpush1.bf16.msra.mxu0 %v774
    %907 = vmatprep.subr.bf16.mxu0 0
    %908 = vmatpush1.bf16.msra.mxu0 %v773
    %909 = vmatprep.subr.bf16.mxu0 0
    %910 = vmatpush2.bf16.msra.mxu0 0
    %911 = vmatprep.subr.bf16.mxu0 0
    %912 = vmatpush2.bf16.msra.mxu0 0
    %913 = vmatprep.subr.bf16.mxu0 0
    %914 = vmatpush2.bf16.msra.mxu0 0
    %915 = vmatprep.subr.bf16.mxu0 0
    %916 = vmatpush2.bf16.msra.mxu0 0
    %917 = vmatprep.subr.bf16.mxu0 0
    %918 = vmatpush2.bf16.msra.mxu0 0
    %919 = vmatprep.subr.bf16.mxu0 0
    %920 = vmatpush2.bf16.msra.mxu0 0
    %921 = vmatprep.subr.bf16.mxu0 0
    %922 = vmatpush2.bf16.msra.mxu0 0
    %923 = vmatprep.subr.bf16.mxu0 0
    %924 = vmatpush2.bf16.msra.mxu0 0
    %925 = vmatprep.mubr.bf16.mxu0 0
    %926 = vmatmul.mubr.bf16.gmra.mxu0 %v891
    %v927 = vpop.f32.mrf.mxu0
    %v928 = vadd.f32 0.0, %v927
    %v929 = vpop.f32.mrf.mxu0
    %v930 = vpop.f32.mrf.mxu0
    %v931 = vpop.f32.mrf.mxu0
    %932 = vdwg.mxu0
    %v933 = vtanh.pop %v928
    %s934 = sld [smem:[#allocation2 + $0x2]]
    %v935 = vstv %s934
    %v936 = vmul.f32 %v933, %v935
    %v937 = vadd.f32 %v881, %v936
    %938 = vrot.lane.b32.xlu0 %v882, 93
    %v939 = vpop.permute.xlu0 %938
    %v941 = vsel %vm503, %v939, 0
    %943 = vmatprep.subr.bf16.mxu0 0
    %944 = vmatpush1.bf16.msra.mxu0 0
    %945 = vmatprep.subr.bf16.mxu0 0
    %946 = vmatpush1.bf16.msra.mxu0 0
    %947 = vmatprep.subr.bf16.mxu0 0
    %948 = vmatpush1.bf16.msra.mxu0 0
    %949 = vmatprep.subr.bf16.mxu0 0
    %950 = vmatpush1.bf16.msra.mxu0 0
    %951 = vmatprep.subr.bf16.mxu0 0
    %952 = vmatpush1.bf16.msra.mxu0 %v785
    %953 = vmatprep.subr.bf16.mxu0 0
    %954 = vmatpush1.bf16.msra.mxu0 %v775
    %955 = vmatprep.subr.bf16.mxu0 0
    %956 = vmatpush1.bf16.msra.mxu0 %v774
    %957 = vmatprep.subr.bf16.mxu0 0
    %958 = vmatpush1.bf16.msra.mxu0 %v773
    %959 = vmatprep.subr.bf16.mxu0 0
    %960 = vmatpush2.bf16.msra.mxu0 0
    %961 = vmatprep.subr.bf16.mxu0 0
    %962 = vmatpush2.bf16.msra.mxu0 0
    %963 = vmatprep.subr.bf16.mxu0 0
    %964 = vmatpush2.bf16.msra.mxu0 0
    %965 = vmatprep.subr.bf16.mxu0 0
    %966 = vmatpush2.bf16.msra.mxu0 0
    %967 = vmatprep.subr.bf16.mxu0 0
    %968 = vmatpush2.bf16.msra.mxu0 0
    %969 = vmatprep.subr.bf16.mxu0 0
    %970 = vmatpush2.bf16.msra.mxu0 0
    %971 = vmatprep.subr.bf16.mxu0 0
    %972 = vmatpush2.bf16.msra.mxu0 0
    %973 = vmatprep.subr.bf16.mxu0 0
    %974 = vmatpush2.bf16.msra.mxu0 0
    %975 = vmatprep.mubr.bf16.mxu0 0
    %976 = vmatmul.mubr.bf16.gmra.mxu0 %v941
    %v977 = vpop.f32.mrf.mxu0
    %v978 = vadd.f32 0.0, %v977
    %v979 = vpop.f32.mrf.mxu0
    %v980 = vpop.f32.mrf.mxu0
    %v981 = vpop.f32.mrf.mxu0
    %982 = vdwg.mxu0
    %v983 = vtanh.pop %v978
    %s984 = sld [smem:[#allocation2 + $0x3]]
    %v985 = vstv %s984
    %v986 = vmul.f32 %v983, %v985
    %v987 = vadd.f32 %v937, %v986
    %v988 = vpack.c.bf16 %v613, %v613
    %990 = vrot.lane.b32.xlu0 %v882, 42
    %v991 = vpop.permute.xlu0 %990
    %992 = vrot.lane.b32.xlu0 %v988, 42
    %v993 = vpop.permute.xlu0 %992
    %vm994 = vcmask 343040
    %v995 = vsel %vm994, %v991, %v993
    %v997 = vsel %vm503, %v995, 0
    %999 = vmatprep.subr.bf16.mxu0 0
    %1000 = vmatpush1.bf16.msra.mxu0 0
    %1001 = vmatprep.subr.bf16.mxu0 0
    %1002 = vmatpush1.bf16.msra.mxu0 0
    %1003 = vmatprep.subr.bf16.mxu0 0
    %1004 = vmatpush1.bf16.msra.mxu0 0
    %1005 = vmatprep.subr.bf16.mxu0 0
    %1006 = vmatpush1.bf16.msra.mxu0 0
    %1007 = vmatprep.subr.bf16.mxu0 0
    %1008 = vmatpush1.bf16.msra.mxu0 %v785
    %1009 = vmatprep.subr.bf16.mxu0 0
    %1010 = vmatpush1.bf16.msra.mxu0 %v775
    %1011 = vmatprep.subr.bf16.mxu0 0
    %1012 = vmatpush1.bf16.msra.mxu0 %v774
    %1013 = vmatprep.subr.bf16.mxu0 0
    %1014 = vmatpush1.bf16.msra.mxu0 %v773
    %1015 = vmatprep.subr.bf16.mxu0 0
    %1016 = vmatpush2.bf16.msra.mxu0 0
    %1017 = vmatprep.subr.bf16.mxu0 0
    %1018 = vmatpush2.bf16.msra.mxu0 0
    %1019 = vmatprep.subr.bf16.mxu0 0
    %1020 = vmatpush2.bf16.msra.mxu0 0
    %1021 = vmatprep.subr.bf16.mxu0 0
    %1022 = vmatpush2.bf16.msra.mxu0 0
    %1023 = vmatprep.subr.bf16.mxu0 0
    %1024 = vmatpush2.bf16.msra.mxu0 0
    %1025 = vmatprep.subr.bf16.mxu0 0
    %1026 = vmatpush2.bf16.msra.mxu0 0
    %1027 = vmatprep.subr.bf16.mxu0 0
    %1028 = vmatpush2.bf16.msra.mxu0 0
    %1029 = vmatprep.subr.bf16.mxu0 0
    %1030 = vmatpush2.bf16.msra.mxu0 0
    %1031 = vmatprep.mubr.bf16.mxu0 0
    %1032 = vmatmul.mubr.bf16.gmra.mxu0 %v997
    %v1033 = vpop.f32.mrf.mxu0
    %v1034 = vadd.f32 0.0, %v1033
    %v1035 = vpop.f32.mrf.mxu0
    %v1036 = vpop.f32.mrf.mxu0
    %v1037 = vpop.f32.mrf.mxu0
    %1038 = vdwg.mxu0
    %v1039 = vtanh.pop %v1034
    %s1040 = sld [smem:[#allocation2 + $0x4]]
    %v1041 = vstv %s1040
    %v1042 = vmul.f32 %v1039, %v1041
    %v1043 = vadd.f32 %v987, %v1042
    %1044 = vrot.lane.b32.xlu0 %v988, 119
    %v1045 = vpop.permute.xlu0 %1044
    %v1047 = vsel %vm503, %v1045, 0
    %1049 = vmatprep.subr.bf16.mxu0 0
    %1050 = vmatpush1.bf16.msra.mxu0 0
    %1051 = vmatprep.subr.bf16.mxu0 0
    %1052 = vmatpush1.bf16.msra.mxu0 0
    %1053 = vmatprep.subr.bf16.mxu0 0
    %1054 = vmatpush1.bf16.msra.mxu0 0
    %1055 = vmatprep.subr.bf16.mxu0 0
    %1056 = vmatpush1.bf16.msra.mxu0 0
    %1057 = vmatprep.subr.bf16.mxu0 0
    %1058 = vmatpush1.bf16.msra.mxu0 %v785
    %1059 = vmatprep.subr.bf16.mxu0 0
    %1060 = vmatpush1.bf16.msra.mxu0 %v775
    %1061 = vmatprep.subr.bf16.mxu0 0
    %1062 = vmatpush1.bf16.msra.mxu0 %v774
    %1063 = vmatprep.subr.bf16.mxu0 0
    %1064 = vmatpush1.bf16.msra.mxu0 %v773
    %1065 = vmatprep.subr.bf16.mxu0 0
    %1066 = vmatpush2.bf16.msra.mxu0 0
    %1067 = vmatprep.subr.bf16.mxu0 0
    %1068 = vmatpush2.bf16.msra.mxu0 0
    %1069 = vmatprep.subr.bf16.mxu0 0
    %1070 = vmatpush2.bf16.msra.mxu0 0
    %1071 = vmatprep.subr.bf16.mxu0 0
    %1072 = vmatpush2.bf16.msra.mxu0 0
    %1073 = vmatprep.subr.bf16.mxu0 0
    %1074 = vmatpush2.bf16.msra.mxu0 0
    %1075 = vmatprep.subr.bf16.mxu0 0
    %1076 = vmatpush2.bf16.msra.mxu0 0
    %1077 = vmatprep.subr.bf16.mxu0 0
    %1078 = vmatpush2.bf16.msra.mxu0 0
    %1079 = vmatprep.subr.bf16.mxu0 0
    %1080 = vmatpush2.bf16.msra.mxu0 0
    %1081 = vmatprep.mubr.bf16.mxu0 0
    %1082 = vmatmul.mubr.bf16.gmra.mxu0 %v1047
    %v1083 = vpop.f32.mrf.mxu0
    %v1084 = vadd.f32 0.0, %v1083
    %v1085 = vpop.f32.mrf.mxu0
    %v1086 = vpop.f32.mrf.mxu0
    %v1087 = vpop.f32.mrf.mxu0
    %1088 = vdwg.mxu0
    %v1089 = vtanh.pop %v1084
    %s1090 = sld [smem:[#allocation2 + $0x5]]
    %v1091 = vstv %s1090
    %v1092 = vmul.f32 %v1089, %v1091
    %v1093 = vadd.f32 %v1043, %v1092
    %1094 = vrot.lane.b32.xlu0 %v988, 68
    %v1095 = vpop.permute.xlu0 %1094
    %v1097 = vsel %vm503, %v1095, 0
    %1099 = vmatprep.subr.bf16.mxu0 0
    %1100 = vmatpush1.bf16.msra.mxu0 0
    %1101 = vmatprep.subr.bf16.mxu0 0
    %1102 = vmatpush1.bf16.msra.mxu0 0
    %1103 = vmatprep.subr.bf16.mxu0 0
    %1104 = vmatpush1.bf16.msra.mxu0 0
    %1105 = vmatprep.subr.bf16.mxu0 0
    %1106 = vmatpush1.bf16.msra.mxu0 0
    %1107 = vmatprep.subr.bf16.mxu0 0
    %1108 = vmatpush1.bf16.msra.mxu0 %v785
    %1109 = vmatprep.subr.bf16.mxu0 0
    %1110 = vmatpush1.bf16.msra.mxu0 %v775
    %1111 = vmatprep.subr.bf16.mxu0 0
    %1112 = vmatpush1.bf16.msra.mxu0 %v774
    %1113 = vmatprep.subr.bf16.mxu0 0
    %1114 = vmatpush1.bf16.msra.mxu0 %v773
    %1115 = vmatprep.subr.bf16.mxu0 0
    %1116 = vmatpush2.bf16.msra.mxu0 0
    %1117 = vmatprep.subr.bf16.mxu0 0
    %1118 = vmatpush2.bf16.msra.mxu0 0
    %1119 = vmatprep.subr.bf16.mxu0 0
    %1120 = vmatpush2.bf16.msra.mxu0 0
    %1121 = vmatprep.subr.bf16.mxu0 0
    %1122 = vmatpush2.bf16.msra.mxu0 0
    %1123 = vmatprep.subr.bf16.mxu0 0
    %1124 = vmatpush2.bf16.msra.mxu0 0
    %1125 = vmatprep.subr.bf16.mxu0 0
    %1126 = vmatpush2.bf16.msra.mxu0 0
    %1127 = vmatprep.subr.bf16.mxu0 0
    %1128 = vmatpush2.bf16.msra.mxu0 0
    %1129 = vmatprep.subr.bf16.mxu0 0
    %1130 = vmatpush2.bf16.msra.mxu0 0
    %1131 = vmatprep.mubr.bf16.mxu0 0
    %1132 = vmatmul.mubr.bf16.gmra.mxu0 %v1097
    %v1133 = vpop.f32.mrf.mxu0
    %v1134 = vadd.f32 0.0, %v1133
    %v1135 = vpop.f32.mrf.mxu0
    %v1136 = vpop.f32.mrf.mxu0
    %v1137 = vpop.f32.mrf.mxu0
    %1138 = vdwg.mxu0
    %v1139 = vtanh.pop %v1134
    %s1140 = sld [smem:[#allocation2 + $0x6]]
    %v1141 = vstv %s1140
    %v1142 = vmul.f32 %v1139, %v1141
    %v1143 = vadd.f32 %v1093, %v1142
    %v1144 = vpack.c.bf16 %v615, %v615
    %1146 = vrot.lane.b32.xlu0 %v988, 17
    %v1147 = vpop.permute.xlu0 %1146
    %1148 = vrot.lane.b32.xlu0 %v1144, 17
    %v1149 = vpop.permute.xlu0 %1148
    %vm1150 = vcmask 138240
    %v1151 = vsel %vm1150, %v1147, %v1149
    %v1153 = vsel %vm503, %v1151, 0
    %1155 = vmatprep.subr.bf16.mxu0 0
    %1156 = vmatpush1.bf16.msra.mxu0 0
    %1157 = vmatprep.subr.bf16.mxu0 0
    %1158 = vmatpush1.bf16.msra.mxu0 0
    %1159 = vmatprep.subr.bf16.mxu0 0
    %1160 = vmatpush1.bf16.msra.mxu0 0
    %1161 = vmatprep.subr.bf16.mxu0 0
    %1162 = vmatpush1.bf16.msra.mxu0 0
    %1163 = vmatprep.subr.bf16.mxu0 0
    %1164 = vmatpush1.bf16.msra.mxu0 %v785
    %1165 = vmatprep.subr.bf16.mxu0 0
    %1166 = vmatpush1.bf16.msra.mxu0 %v775
    %1167 = vmatprep.subr.bf16.mxu0 0
    %1168 = vmatpush1.bf16.msra.mxu0 %v774
    %1169 = vmatprep.subr.bf16.mxu0 0
    %1170 = vmatpush1.bf16.msra.mxu0 %v773
    %1171 = vmatprep.subr.bf16.mxu0 0
    %1172 = vmatpush2.bf16.msra.mxu0 0
    %1173 = vmatprep.subr.bf16.mxu0 0
    %1174 = vmatpush2.bf16.msra.mxu0 0
    %1175 = vmatprep.subr.bf16.mxu0 0
    %1176 = vmatpush2.bf16.msra.mxu0 0
    %1177 = vmatprep.subr.bf16.mxu0 0
    %1178 = vmatpush2.bf16.msra.mxu0 0
    %1179 = vmatprep.subr.bf16.mxu0 0
    %1180 = vmatpush2.bf16.msra.mxu0 0
    %1181 = vmatprep.subr.bf16.mxu0 0
    %1182 = vmatpush2.bf16.msra.mxu0 0
    %1183 = vmatprep.subr.bf16.mxu0 0
    %1184 = vmatpush2.bf16.msra.mxu0 0
    %1185 = vmatprep.subr.bf16.mxu0 0
    %1186 = vmatpush2.bf16.msra.mxu0 0
    %1187 = vmatprep.mubr.bf16.mxu0 0
    %1188 = vmatmul.mubr.bf16.gmra.mxu0 %v1153
    %v1189 = vpop.f32.mrf.mxu0
    %v1190 = vadd.f32 0.0, %v1189
    %v1191 = vpop.f32.mrf.mxu0
    %v1192 = vpop.f32.mrf.mxu0
    %v1193 = vpop.f32.mrf.mxu0
    %1194 = vdwg.mxu0
    %v1195 = vtanh.pop %v1190
    %s1196 = sld [smem:[#allocation2 + $0x7]]
    %v1197 = vstv %s1196
    %v1198 = vmul.f32 %v1195, %v1197
    %v1199 = vadd.f32 %v1143, %v1198
    %1200 = vrot.lane.b32.xlu0 %v1144, 94
    %v1201 = vpop.permute.xlu0 %1200
    %v1203 = vsel %vm503, %v1201, 0
    %1205 = vmatprep.subr.bf16.mxu0 0
    %1206 = vmatpush1.bf16.msra.mxu0 0
    %1207 = vmatprep.subr.bf16.mxu0 0
    %1208 = vmatpush1.bf16.msra.mxu0 0
    %1209 = vmatprep.subr.bf16.mxu0 0
    %1210 = vmatpush1.bf16.msra.mxu0 0
    %1211 = vmatprep.subr.bf16.mxu0 0
    %1212 = vmatpush1.bf16.msra.mxu0 0
    %1213 = vmatprep.subr.bf16.mxu0 0
    %1214 = vmatpush1.bf16.msra.mxu0 %v785
    %1215 = vmatprep.subr.bf16.mxu0 0
    %1216 = vmatpush1.bf16.msra.mxu0 %v775
    %1217 = vmatprep.subr.bf16.mxu0 0
    %1218 = vmatpush1.bf16.msra.mxu0 %v774
    %1219 = vmatprep.subr.bf16.mxu0 0
    %1220 = vmatpush1.bf16.msra.mxu0 %v773
    %1221 = vmatprep.subr.bf16.mxu0 0
    %1222 = vmatpush2.bf16.msra.mxu0 0
    %1223 = vmatprep.subr.bf16.mxu0 0
    %1224 = vmatpush2.bf16.msra.mxu0 0
    %1225 = vmatprep.subr.bf16.mxu0 0
    %1226 = vmatpush2.bf16.msra.mxu0 0
    %1227 = vmatprep.subr.bf16.mxu0 0
    %1228 = vmatpush2.bf16.msra.mxu0 0
    %1229 = vmatprep.subr.bf16.mxu0 0
    %1230 = vmatpush2.bf16.msra.mxu0 0
    %1231 = vmatprep.subr.bf16.mxu0 0
    %1232 = vmatpush2.bf16.msra.mxu0 0
    %1233 = vmatprep.subr.bf16.mxu0 0
    %1234 = vmatpush2.bf16.msra.mxu0 0
    %1235 = vmatprep.subr.bf16.mxu0 0
    %1236 = vmatpush2.bf16.msra.mxu0 0
    %1237 = vmatprep.mubr.bf16.mxu0 0
    %1238 = vmatmul.mubr.bf16.gmra.mxu0 %v1203
    %v1239 = vpop.f32.mrf.mxu0
    %v1240 = vadd.f32 0.0, %v1239
    %v1241 = vpop.f32.mrf.mxu0
    %v1242 = vpop.f32.mrf.mxu0
    %v1243 = vpop.f32.mrf.mxu0
    %1244 = vdwg.mxu0
    %v1245 = vtanh.pop %v1240
    %s1246 = sld [smem:[#allocation2 + $0x8]]
    %v1247 = vstv %s1246
    %v1248 = vmul.f32 %v1245, %v1247
    %v1249 = vadd.f32 %v1199, %v1248
    %v1250 = vpack.c.bf16 %v654, %v654
    %1252 = vrot.lane.b32.xlu0 %v1144, 43
    %v1253 = vpop.permute.xlu0 %1252
    %1254 = vrot.lane.b32.xlu0 %v1250, 43
    %v1255 = vpop.permute.xlu0 %1254
    %vm1256 = vcmask 351232
    %v1257 = vsel %vm1256, %v1253, %v1255
    %v1259 = vsel %vm503, %v1257, 0
    %1261 = vmatprep.subr.bf16.mxu0 0
    %1262 = vmatpush1.bf16.msra.mxu0 0
    %1263 = vmatprep.subr.bf16.mxu0 0
    %1264 = vmatpush1.bf16.msra.mxu0 0
    %1265 = vmatprep.subr.bf16.mxu0 0
    %1266 = vmatpush1.bf16.msra.mxu0 0
    %1267 = vmatprep.subr.bf16.mxu0 0
    %1268 = vmatpush1.bf16.msra.mxu0 0
    %1269 = vmatprep.subr.bf16.mxu0 0
    %1270 = vmatpush1.bf16.msra.mxu0 %v785
    %1271 = vmatprep.subr.bf16.mxu0 0
    %1272 = vmatpush1.bf16.msra.mxu0 %v775
    %1273 = vmatprep.subr.bf16.mxu0 0
    %1274 = vmatpush1.bf16.msra.mxu0 %v774
    %1275 = vmatprep.subr.bf16.mxu0 0
    %1276 = vmatpush1.bf16.msra.mxu0 %v773
    %1277 = vmatprep.subr.bf16.mxu0 0
    %1278 = vmatpush2.bf16.msra.mxu0 0
    %1279 = vmatprep.subr.bf16.mxu0 0
    %1280 = vmatpush2.bf16.msra.mxu0 0
    %1281 = vmatprep.subr.bf16.mxu0 0
    %1282 = vmatpush2.bf16.msra.mxu0 0
    %1283 = vmatprep.subr.bf16.mxu0 0
    %1284 = vmatpush2.bf16.msra.mxu0 0
    %1285 = vmatprep.subr.bf16.mxu0 0
    %1286 = vmatpush2.bf16.msra.mxu0 0
    %1287 = vmatprep.subr.bf16.mxu0 0
    %1288 = vmatpush2.bf16.msra.mxu0 0
    %1289 = vmatprep.subr.bf16.mxu0 0
    %1290 = vmatpush2.bf16.msra.mxu0 0
    %1291 = vmatprep.subr.bf16.mxu0 0
    %1292 = vmatpush2.bf16.msra.mxu0 0
    %1293 = vmatprep.mubr.bf16.mxu0 0
    %1294 = vmatmul.mubr.bf16.gmra.mxu0 %v1259
    %v1295 = vpop.f32.mrf.mxu0
    %v1296 = vadd.f32 0.0, %v1295
    %v1297 = vpop.f32.mrf.mxu0
    %v1298 = vpop.f32.mrf.mxu0
    %v1299 = vpop.f32.mrf.mxu0
    %1300 = vdwg.mxu0
    %v1301 = vtanh.pop %v1296
    %s1302 = sld [smem:[#allocation2 + $0x9]]
    %v1303 = vstv %s1302
    %v1304 = vmul.f32 %v1301, %v1303
    %v1305 = vadd.f32 %v1249, %v1304
    %1306 = vrot.lane.b32.xlu0 %v1250, 120
    %v1307 = vpop.permute.xlu0 %1306
    %v1309 = vsel %vm503, %v1307, 0
    %1311 = vmatprep.subr.bf16.mxu0 0
    %1312 = vmatpush1.bf16.msra.mxu0 0
    %1313 = vmatprep.subr.bf16.mxu0 0
    %1314 = vmatpush1.bf16.msra.mxu0 0
    %1315 = vmatprep.subr.bf16.mxu0 0
    %1316 = vmatpush1.bf16.msra.mxu0 0
    %1317 = vmatprep.subr.bf16.mxu0 0
    %1318 = vmatpush1.bf16.msra.mxu0 0
    %1319 = vmatprep.subr.bf16.mxu0 0
    %1320 = vmatpush1.bf16.msra.mxu0 %v785
    %1321 = vmatprep.subr.bf16.mxu0 0
    %1322 = vmatpush1.bf16.msra.mxu0 %v775
    %1323 = vmatprep.subr.bf16.mxu0 0
    %1324 = vmatpush1.bf16.msra.mxu0 %v774
    %1325 = vmatprep.subr.bf16.mxu0 0
    %1326 = vmatpush1.bf16.msra.mxu0 %v773
    %1327 = vmatprep.subr.bf16.mxu0 0
    %1328 = vmatpush2.bf16.msra.mxu0 0
    %1329 = vmatprep.subr.bf16.mxu0 0
    %1330 = vmatpush2.bf16.msra.mxu0 0
    %1331 = vmatprep.subr.bf16.mxu0 0
    %1332 = vmatpush2.bf16.msra.mxu0 0
    %1333 = vmatprep.subr.bf16.mxu0 0
    %1334 = vmatpush2.bf16.msra.mxu0 0
    %1335 = vmatprep.subr.bf16.mxu0 0
    %1336 = vmatpush2.bf16.msra.mxu0 0
    %1337 = vmatprep.subr.bf16.mxu0 0
    %1338 = vmatpush2.bf16.msra.mxu0 0
    %1339 = vmatprep.subr.bf16.mxu0 0
    %1340 = vmatpush2.bf16.msra.mxu0 0
    %1341 = vmatprep.subr.bf16.mxu0 0
    %1342 = vmatpush2.bf16.msra.mxu0 0
    %1343 = vmatprep.mubr.bf16.mxu0 0
    %1344 = vmatmul.mubr.bf16.gmra.mxu0 %v1309
    %v1345 = vpop.f32.mrf.mxu0
    %v1346 = vadd.f32 0.0, %v1345
    %v1347 = vpop.f32.mrf.mxu0
    %v1348 = vpop.f32.mrf.mxu0
    %v1349 = vpop.f32.mrf.mxu0
    %1350 = vdwg.mxu0
    %v1351 = vtanh.pop %v1346
    %s1352 = sld [smem:[#allocation2 + $0xa]]
    %v1353 = vstv %s1352
    %v1354 = vmul.f32 %v1351, %v1353
    %v1355 = vadd.f32 %v1354, 0.0
    %1356 = vrot.lane.b32.xlu0 %v1250, 69
    %v1357 = vpop.permute.xlu0 %1356
    %v1359 = vsel %vm503, %v1357, 0
    %1361 = vmatprep.subr.bf16.mxu0 0
    %1362 = vmatpush1.bf16.msra.mxu0 0
    %1363 = vmatprep.subr.bf16.mxu0 0
    %1364 = vmatpush1.bf16.msra.mxu0 0
    %1365 = vmatprep.subr.bf16.mxu0 0
    %1366 = vmatpush1.bf16.msra.mxu0 0
    %1367 = vmatprep.subr.bf16.mxu0 0
    %1368 = vmatpush1.bf16.msra.mxu0 0
    %1369 = vmatprep.subr.bf16.mxu0 0
    %1370 = vmatpush1.bf16.msra.mxu0 %v785
    %1371 = vmatprep.subr.bf16.mxu0 0
    %1372 = vmatpush1.bf16.msra.mxu0 %v775
    %1373 = vmatprep.subr.bf16.mxu0 0
    %1374 = vmatpush1.bf16.msra.mxu0 %v774
    %1375 = vmatprep.subr.bf16.mxu0 0
    %1376 = vmatpush1.bf16.msra.mxu0 %v773
    %1377 = vmatprep.subr.bf16.mxu0 0
    %1378 = vmatpush2.bf16.msra.mxu0 0
    %1379 = vmatprep.subr.bf16.mxu0 0
    %1380 = vmatpush2.bf16.msra.mxu0 0
    %1381 = vmatprep.subr.bf16.mxu0 0
    %1382 = vmatpush2.bf16.msra.mxu0 0
    %1383 = vmatprep.subr.bf16.mxu0 0
    %1384 = vmatpush2.bf16.msra.mxu0 0
    %1385 = vmatprep.subr.bf16.mxu0 0
    %1386 = vmatpush2.bf16.msra.mxu0 0
    %1387 = vmatprep.subr.bf16.mxu0 0
    %1388 = vmatpush2.bf16.msra.mxu0 0
    %1389 = vmatprep.subr.bf16.mxu0 0
    %1390 = vmatpush2.bf16.msra.mxu0 0
    %1391 = vmatprep.subr.bf16.mxu0 0
    %1392 = vmatpush2.bf16.msra.mxu0 0
    %1393 = vmatprep.mubr.bf16.mxu0 0
    %1394 = vmatmul.mubr.bf16.gmra.mxu0 %v1359
    %v1395 = vpop.f32.mrf.mxu0
    %v1396 = vadd.f32 0.0, %v1395
    %v1397 = vpop.f32.mrf.mxu0
    %v1398 = vpop.f32.mrf.mxu0
    %v1399 = vpop.f32.mrf.mxu0
    %1400 = vdwg.mxu0
    %v1401 = vtanh.pop %v1396
    %s1402 = sld [smem:[#allocation2 + $0xb]]
    %v1403 = vstv %s1402
    %v1404 = vmul.f32 %v1401, %v1403
    %v1405 = vadd.f32 %v1355, %v1404
    %v1406 = vpack.c.bf16 %v656, %v656
    %1408 = vrot.lane.b32.xlu0 %v1250, 18
    %v1409 = vpop.permute.xlu0 %1408
    %1410 = vrot.lane.b32.xlu0 %v1406, 18
    %v1411 = vpop.permute.xlu0 %1410
    %vm1412 = vcmask 146432
    %v1413 = vsel %vm1412, %v1409, %v1411
    %v1415 = vsel %vm503, %v1413, 0
    %1417 = vmatprep.subr.bf16.mxu0 0
    %1418 = vmatpush1.bf16.msra.mxu0 0
    %1419 = vmatprep.subr.bf16.mxu0 0
    %1420 = vmatpush1.bf16.msra.mxu0 0
    %1421 = vmatprep.subr.bf16.mxu0 0
    %1422 = vmatpush1.bf16.msra.mxu0 0
    %1423 = vmatprep.subr.bf16.mxu0 0
    %1424 = vmatpush1.bf16.msra.mxu0 0
    %1425 = vmatprep.subr.bf16.mxu0 0
    %1426 = vmatpush1.bf16.msra.mxu0 %v785
    %1427 = vmatprep.subr.bf16.mxu0 0
    %1428 = vmatpush1.bf16.msra.mxu0 %v775
    %1429 = vmatprep.subr.bf16.mxu0 0
    %1430 = vmatpush1.bf16.msra.mxu0 %v774
    %1431 = vmatprep.subr.bf16.mxu0 0
    %1432 = vmatpush1.bf16.msra.mxu0 %v773
    %1433 = vmatprep.subr.bf16.mxu0 0
    %1434 = vmatpush2.bf16.msra.mxu0 0
    %1435 = vmatprep.subr.bf16.mxu0 0
    %1436 = vmatpush2.bf16.msra.mxu0 0
    %1437 = vmatprep.subr.bf16.mxu0 0
    %1438 = vmatpush2.bf16.msra.mxu0 0
    %1439 = vmatprep.subr.bf16.mxu0 0
    %1440 = vmatpush2.bf16.msra.mxu0 0
    %1441 = vmatprep.subr.bf16.mxu0 0
    %1442 = vmatpush2.bf16.msra.mxu0 0
    %1443 = vmatprep.subr.bf16.mxu0 0
    %1444 = vmatpush2.bf16.msra.mxu0 0
    %1445 = vmatprep.subr.bf16.mxu0 0
    %1446 = vmatpush2.bf16.msra.mxu0 0
    %1447 = vmatprep.subr.bf16.mxu0 0
    %1448 = vmatpush2.bf16.msra.mxu0 0
    %1449 = vmatprep.mubr.bf16.mxu0 0
    %1450 = vmatmul.mubr.bf16.gmra.mxu0 %v1415
    %v1451 = vpop.f32.mrf.mxu0
    %v1452 = vadd.f32 0.0, %v1451
    %v1453 = vpop.f32.mrf.mxu0
    %v1454 = vpop.f32.mrf.mxu0
    %v1455 = vpop.f32.mrf.mxu0
    %1456 = vdwg.mxu0
    %v1457 = vtanh.pop %v1452
    %s1458 = sld [smem:[#allocation2 + $0xc]]
    %v1459 = vstv %s1458
    %v1460 = vmul.f32 %v1457, %v1459
    %v1461 = vadd.f32 %v1405, %v1460
    %1462 = vrot.lane.b32.xlu0 %v1406, 95
    %v1463 = vpop.permute.xlu0 %1462
    %v1465 = vsel %vm503, %v1463, 0
    %1467 = vmatprep.subr.bf16.mxu0 0
    %1468 = vmatpush1.bf16.msra.mxu0 0
    %1469 = vmatprep.subr.bf16.mxu0 0
    %1470 = vmatpush1.bf16.msra.mxu0 0
    %1471 = vmatprep.subr.bf16.mxu0 0
    %1472 = vmatpush1.bf16.msra.mxu0 0
    %1473 = vmatprep.subr.bf16.mxu0 0
    %1474 = vmatpush1.bf16.msra.mxu0 0
    %1475 = vmatprep.subr.bf16.mxu0 0
    %1476 = vmatpush1.bf16.msra.mxu0 %v785
    %1477 = vmatprep.subr.bf16.mxu0 0
    %1478 = vmatpush1.bf16.msra.mxu0 %v775
    %1479 = vmatprep.subr.bf16.mxu0 0
    %1480 = vmatpush1.bf16.msra.mxu0 %v774
    %1481 = vmatprep.subr.bf16.mxu0 0
    %1482 = vmatpush1.bf16.msra.mxu0 %v773
    %1483 = vmatprep.subr.bf16.mxu0 0
    %1484 = vmatpush2.bf16.msra.mxu0 0
    %1485 = vmatprep.subr.bf16.mxu0 0
    %1486 = vmatpush2.bf16.msra.mxu0 0
    %1487 = vmatprep.subr.bf16.mxu0 0
    %1488 = vmatpush2.bf16.msra.mxu0 0
    %1489 = vmatprep.subr.bf16.mxu0 0
    %1490 = vmatpush2.bf16.msra.mxu0 0
    %1491 = vmatprep.subr.bf16.mxu0 0
    %1492 = vmatpush2.bf16.msra.mxu0 0
    %1493 = vmatprep.subr.bf16.mxu0 0
    %1494 = vmatpush2.bf16.msra.mxu0 0
    %1495 = vmatprep.subr.bf16.mxu0 0
    %1496 = vmatpush2.bf16.msra.mxu0 0
    %1497 = vmatprep.subr.bf16.mxu0 0
    %1498 = vmatpush2.bf16.msra.mxu0 0
    %1499 = vmatprep.mubr.bf16.mxu0 0
    %1500 = vmatmul.mubr.bf16.gmra.mxu0 %v1465
    %v1501 = vpop.f32.mrf.mxu0
    %v1502 = vadd.f32 0.0, %v1501
    %v1503 = vpop.f32.mrf.mxu0
    %v1504 = vpop.f32.mrf.mxu0
    %v1505 = vpop.f32.mrf.mxu0
    %1506 = vdwg.mxu0
    %v1507 = vtanh.pop %v1502
    %s1508 = sld [smem:[#allocation2 + $0xd]]
    %v1509 = vstv %s1508
    %v1510 = vmul.f32 %v1507, %v1509
    %v1511 = vadd.f32 %v1461, %v1510
    %v1512 = vpack.c.bf16 %v695, %v695
    %1514 = vrot.lane.b32.xlu0 %v1406, 44
    %v1515 = vpop.permute.xlu0 %1514
    %1516 = vrot.lane.b32.xlu0 %v1512, 44
    %v1517 = vpop.permute.xlu0 %1516
    %vm1518 = vcmask 359424
    %v1519 = vsel %vm1518, %v1515, %v1517
    %v1521 = vsel %vm503, %v1519, 0
    %1523 = vmatprep.subr.bf16.mxu0 0
    %1524 = vmatpush1.bf16.msra.mxu0 0
    %1525 = vmatprep.subr.bf16.mxu0 0
    %1526 = vmatpush1.bf16.msra.mxu0 0
    %1527 = vmatprep.subr.bf16.mxu0 0
    %1528 = vmatpush1.bf16.msra.mxu0 0
    %1529 = vmatprep.subr.bf16.mxu0 0
    %1530 = vmatpush1.bf16.msra.mxu0 0
    %1531 = vmatprep.subr.bf16.mxu0 0
    %1532 = vmatpush1.bf16.msra.mxu0 %v785
    %1533 = vmatprep.subr.bf16.mxu0 0
    %1534 = vmatpush1.bf16.msra.mxu0 %v775
    %1535 = vmatprep.subr.bf16.mxu0 0
    %1536 = vmatpush1.bf16.msra.mxu0 %v774
    %1537 = vmatprep.subr.bf16.mxu0 0
    %1538 = vmatpush1.bf16.msra.mxu0 %v773
    %1539 = vmatprep.subr.bf16.mxu0 0
    %1540 = vmatpush2.bf16.msra.mxu0 0
    %1541 = vmatprep.subr.bf16.mxu0 0
    %1542 = vmatpush2.bf16.msra.mxu0 0
    %1543 = vmatprep.subr.bf16.mxu0 0
    %1544 = vmatpush2.bf16.msra.mxu0 0
    %1545 = vmatprep.subr.bf16.mxu0 0
    %1546 = vmatpush2.bf16.msra.mxu0 0
    %1547 = vmatprep.subr.bf16.mxu0 0
    %1548 = vmatpush2.bf16.msra.mxu0 0
    %1549 = vmatprep.subr.bf16.mxu0 0
    %1550 = vmatpush2.bf16.msra.mxu0 0
    %1551 = vmatprep.subr.bf16.mxu0 0
    %1552 = vmatpush2.bf16.msra.mxu0 0
    %1553 = vmatprep.subr.bf16.mxu0 0
    %1554 = vmatpush2.bf16.msra.mxu0 0
    %1555 = vmatprep.mubr.bf16.mxu0 0
    %1556 = vmatmul.mubr.bf16.gmra.mxu0 %v1521
    %v1557 = vpop.f32.mrf.mxu0
    %v1558 = vadd.f32 0.0, %v1557
    %v1559 = vpop.f32.mrf.mxu0
    %v1560 = vpop.f32.mrf.mxu0
    %v1561 = vpop.f32.mrf.mxu0
    %1562 = vdwg.mxu0
    %v1563 = vtanh.pop %v1558
    %s1564 = sld [smem:[#allocation2 + $0xe]]
    %v1565 = vstv %s1564
    %v1566 = vmul.f32 %v1563, %v1565
    %v1567 = vadd.f32 %v1511, %v1566
    %1568 = vrot.lane.b32.xlu0 %v1512, 121
    %v1569 = vpop.permute.xlu0 %1568
    %v1571 = vsel %vm503, %v1569, 0
    %1573 = vmatprep.subr.bf16.mxu0 0
    %1574 = vmatpush1.bf16.msra.mxu0 0
    %1575 = vmatprep.subr.bf16.mxu0 0
    %1576 = vmatpush1.bf16.msra.mxu0 0
    %1577 = vmatprep.subr.bf16.mxu0 0
    %1578 = vmatpush1.bf16.msra.mxu0 0
    %1579 = vmatprep.subr.bf16.mxu0 0
    %1580 = vmatpush1.bf16.msra.mxu0 0
    %1581 = vmatprep.subr.bf16.mxu0 0
    %1582 = vmatpush1.bf16.msra.mxu0 %v785
    %1583 = vmatprep.subr.bf16.mxu0 0
    %1584 = vmatpush1.bf16.msra.mxu0 %v775
    %1585 = vmatprep.subr.bf16.mxu0 0
    %1586 = vmatpush1.bf16.msra.mxu0 %v774
    %1587 = vmatprep.subr.bf16.mxu0 0
    %1588 = vmatpush1.bf16.msra.mxu0 %v773
    %1589 = vmatprep.subr.bf16.mxu0 0
    %1590 = vmatpush2.bf16.msra.mxu0 0
    %1591 = vmatprep.subr.bf16.mxu0 0
    %1592 = vmatpush2.bf16.msra.mxu0 0
    %1593 = vmatprep.subr.bf16.mxu0 0
    %1594 = vmatpush2.bf16.msra.mxu0 0
    %1595 = vmatprep.subr.bf16.mxu0 0
    %1596 = vmatpush2.bf16.msra.mxu0 0
    %1597 = vmatprep.subr.bf16.mxu0 0
    %1598 = vmatpush2.bf16.msra.mxu0 0
    %1599 = vmatprep.subr.bf16.mxu0 0
    %1600 = vmatpush2.bf16.msra.mxu0 0
    %1601 = vmatprep.subr.bf16.mxu0 0
    %1602 = vmatpush2.bf16.msra.mxu0 0
    %1603 = vmatprep.subr.bf16.mxu0 0
    %1604 = vmatpush2.bf16.msra.mxu0 0
    %1605 = vmatprep.mubr.bf16.mxu0 0
    %1606 = vmatmul.mubr.bf16.gmra.mxu0 %v1571
    %v1607 = vpop.f32.mrf.mxu0
    %v1608 = vadd.f32 0.0, %v1607
    %v1609 = vpop.f32.mrf.mxu0
    %v1610 = vpop.f32.mrf.mxu0
    %v1611 = vpop.f32.mrf.mxu0
    %1612 = vdwg.mxu0
    %v1613 = vtanh.pop %v1608
    %s1614 = sld [smem:[#allocation2 + $0xf]]
    %v1615 = vstv %s1614
    %v1616 = vmul.f32 %v1613, %v1615
    %v1617 = vadd.f32 %v1567, %v1616
    %1618 = vrot.lane.b32.xlu0 %v1512, 70
    %v1619 = vpop.permute.xlu0 %1618
    %v1621 = vsel %vm503, %v1619, 0
    %1623 = vmatprep.subr.bf16.mxu0 0
    %1624 = vmatpush1.bf16.msra.mxu0 0
    %1625 = vmatprep.subr.bf16.mxu0 0
    %1626 = vmatpush1.bf16.msra.mxu0 0
    %1627 = vmatprep.subr.bf16.mxu0 0
    %1628 = vmatpush1.bf16.msra.mxu0 0
    %1629 = vmatprep.subr.bf16.mxu0 0
    %1630 = vmatpush1.bf16.msra.mxu0 0
    %1631 = vmatprep.subr.bf16.mxu0 0
    %1632 = vmatpush1.bf16.msra.mxu0 %v785
    %1633 = vmatprep.subr.bf16.mxu0 0
    %1634 = vmatpush1.bf16.msra.mxu0 %v775
    %1635 = vmatprep.subr.bf16.mxu0 0
    %1636 = vmatpush1.bf16.msra.mxu0 %v774
    %1637 = vmatprep.subr.bf16.mxu0 0
    %1638 = vmatpush1.bf16.msra.mxu0 %v773
    %1639 = vmatprep.subr.bf16.mxu0 0
    %1640 = vmatpush2.bf16.msra.mxu0 0
    %1641 = vmatprep.subr.bf16.mxu0 0
    %1642 = vmatpush2.bf16.msra.mxu0 0
    %1643 = vmatprep.subr.bf16.mxu0 0
    %1644 = vmatpush2.bf16.msra.mxu0 0
    %1645 = vmatprep.subr.bf16.mxu0 0
    %1646 = vmatpush2.bf16.msra.mxu0 0
    %1647 = vmatprep.subr.bf16.mxu0 0
    %1648 = vmatpush2.bf16.msra.mxu0 0
    %1649 = vmatprep.subr.bf16.mxu0 0
    %1650 = vmatpush2.bf16.msra.mxu0 0
    %1651 = vmatprep.subr.bf16.mxu0 0
    %1652 = vmatpush2.bf16.msra.mxu0 0
    %1653 = vmatprep.subr.bf16.mxu0 0
    %1654 = vmatpush2.bf16.msra.mxu0 0
    %1655 = vmatprep.mubr.bf16.mxu0 0
    %1656 = vmatmul.mubr.bf16.gmra.mxu0 %v1621
    %v1657 = vpop.f32.mrf.mxu0
    %v1658 = vadd.f32 0.0, %v1657
    %v1659 = vpop.f32.mrf.mxu0
    %v1660 = vpop.f32.mrf.mxu0
    %v1661 = vpop.f32.mrf.mxu0
    %1662 = vdwg.mxu0
    %v1663 = vtanh.pop %v1658
    %s1664 = sld [smem:[#allocation2 + $0x10]]
    %v1665 = vstv %s1664
    %v1666 = vmul.f32 %v1663, %v1665
    %v1667 = vadd.f32 %v1617, %v1666
    %v1668 = vpack.c.bf16 %v697, %v697
    %1670 = vrot.lane.b32.xlu0 %v1512, 19
    %v1671 = vpop.permute.xlu0 %1670
    %1672 = vrot.lane.b32.xlu0 %v1668, 19
    %v1673 = vpop.permute.xlu0 %1672
    %vm1674 = vcmask 154624
    %v1675 = vsel %vm1674, %v1671, %v1673
    %v1677 = vsel %vm503, %v1675, 0
    %1679 = vmatprep.subr.bf16.mxu0 0
    %1680 = vmatpush1.bf16.msra.mxu0 0
    %1681 = vmatprep.subr.bf16.mxu0 0
    %1682 = vmatpush1.bf16.msra.mxu0 0
    %1683 = vmatprep.subr.bf16.mxu0 0
    %1684 = vmatpush1.bf16.msra.mxu0 0
    %1685 = vmatprep.subr.bf16.mxu0 0
    %1686 = vmatpush1.bf16.msra.mxu0 0
    %1687 = vmatprep.subr.bf16.mxu0 0
    %1688 = vmatpush1.bf16.msra.mxu0 %v785
    %1689 = vmatprep.subr.bf16.mxu0 0
    %1690 = vmatpush1.bf16.msra.mxu0 %v775
    %1691 = vmatprep.subr.bf16.mxu0 0
    %1692 = vmatpush1.bf16.msra.mxu0 %v774
    %1693 = vmatprep.subr.bf16.mxu0 0
    %1694 = vmatpush1.bf16.msra.mxu0 %v773
    %1695 = vmatprep.subr.bf16.mxu0 0
    %1696 = vmatpush2.bf16.msra.mxu0 0
    %1697 = vmatprep.subr.bf16.mxu0 0
    %1698 = vmatpush2.bf16.msra.mxu0 0
    %1699 = vmatprep.subr.bf16.mxu0 0
    %1700 = vmatpush2.bf16.msra.mxu0 0
    %1701 = vmatprep.subr.bf16.mxu0 0
    %1702 = vmatpush2.bf16.msra.mxu0 0
    %1703 = vmatprep.subr.bf16.mxu0 0
    %1704 = vmatpush2.bf16.msra.mxu0 0
    %1705 = vmatprep.subr.bf16.mxu0 0
    %1706 = vmatpush2.bf16.msra.mxu0 0
    %1707 = vmatprep.subr.bf16.mxu0 0
    %1708 = vmatpush2.bf16.msra.mxu0 0
    %1709 = vmatprep.subr.bf16.mxu0 0
    %1710 = vmatpush2.bf16.msra.mxu0 0
    %1711 = vmatprep.mubr.bf16.mxu0 0
    %1712 = vmatmul.mubr.bf16.gmra.mxu0 %v1677
    %v1713 = vpop.f32.mrf.mxu0
    %v1714 = vadd.f32 0.0, %v1713
    %v1715 = vpop.f32.mrf.mxu0
    %v1716 = vpop.f32.mrf.mxu0
    %v1717 = vpop.f32.mrf.mxu0
    %1718 = vdwg.mxu0
    %v1719 = vtanh.pop %v1714
    %s1720 = sld [smem:[#allocation2 + $0x11]]
    %v1721 = vstv %s1720
    %v1722 = vmul.f32 %v1719, %v1721
    %v1723 = vadd.f32 %v1667, %v1722
    %1724 = vrot.lane.b32.xlu0 %v1668, 96
    %v1725 = vpop.permute.xlu0 %1724
    %v1727 = vsel %vm503, %v1725, 0
    %1729 = vmatprep.subr.bf16.mxu0 0
    %1730 = vmatpush1.bf16.msra.mxu0 0
    %1731 = vmatprep.subr.bf16.mxu0 0
    %1732 = vmatpush1.bf16.msra.mxu0 0
    %1733 = vmatprep.subr.bf16.mxu0 0
    %1734 = vmatpush1.bf16.msra.mxu0 0
    %1735 = vmatprep.subr.bf16.mxu0 0
    %1736 = vmatpush1.bf16.msra.mxu0 0
    %1737 = vmatprep.subr.bf16.mxu0 0
    %1738 = vmatpush1.bf16.msra.mxu0 %v785
    %1739 = vmatprep.subr.bf16.mxu0 0
    %1740 = vmatpush1.bf16.msra.mxu0 %v775
    %1741 = vmatprep.subr.bf16.mxu0 0
    %1742 = vmatpush1.bf16.msra.mxu0 %v774
    %1743 = vmatprep.subr.bf16.mxu0 0
    %1744 = vmatpush1.bf16.msra.mxu0 %v773
    %1745 = vmatprep.subr.bf16.mxu0 0
    %1746 = vmatpush2.bf16.msra.mxu0 0
    %1747 = vmatprep.subr.bf16.mxu0 0
    %1748 = vmatpush2.bf16.msra.mxu0 0
    %1749 = vmatprep.subr.bf16.mxu0 0
    %1750 = vmatpush2.bf16.msra.mxu0 0
    %1751 = vmatprep.subr.bf16.mxu0 0
    %1752 = vmatpush2.bf16.msra.mxu0 0
    %1753 = vmatprep.subr.bf16.mxu0 0
    %1754 = vmatpush2.bf16.msra.mxu0 0
    %1755 = vmatprep.subr.bf16.mxu0 0
    %1756 = vmatpush2.bf16.msra.mxu0 0
    %1757 = vmatprep.subr.bf16.mxu0 0
    %1758 = vmatpush2.bf16.msra.mxu0 0
    %1759 = vmatprep.subr.bf16.mxu0 0
    %1760 = vmatpush2.bf16.msra.mxu0 0
    %1761 = vmatprep.mubr.bf16.mxu0 0
    %1762 = vmatmul.mubr.bf16.gmra.mxu0 %v1727
    %v1763 = vpop.f32.mrf.mxu0
    %v1764 = vadd.f32 0.0, %v1763
    %v1765 = vpop.f32.mrf.mxu0
    %v1766 = vpop.f32.mrf.mxu0
    %v1767 = vpop.f32.mrf.mxu0
    %1768 = vdwg.mxu0
    %v1769 = vtanh.pop %v1764
    %s1770 = sld [smem:[#allocation2 + $0x12]]
    %v1771 = vstv %s1770
    %v1772 = vmul.f32 %v1769, %v1771
    %v1773 = vadd.f32 %v1723, %v1772
    %v1774 = vpack.c.bf16 %v736, %v736
    %1776 = vrot.lane.b32.xlu0 %v1668, 45
    %v1777 = vpop.permute.xlu0 %1776
    %1778 = vrot.lane.b32.xlu0 %v1774, 45
    %v1779 = vpop.permute.xlu0 %1778
    %vm1780 = vcmask 367616
    %v1781 = vsel %vm1780, %v1777, %v1779
    %v1783 = vsel %vm503, %v1781, 0
    %1785 = vmatprep.subr.bf16.mxu0 0
    %1786 = vmatpush1.bf16.msra.mxu0 0
    %1787 = vmatprep.subr.bf16.mxu0 0
    %1788 = vmatpush1.bf16.msra.mxu0 0
    %1789 = vmatprep.subr.bf16.mxu0 0
    %1790 = vmatpush1.bf16.msra.mxu0 0
    %1791 = vmatprep.subr.bf16.mxu0 0
    %1792 = vmatpush1.bf16.msra.mxu0 0
    %1793 = vmatprep.subr.bf16.mxu0 0
    %1794 = vmatpush1.bf16.msra.mxu0 %v785
    %1795 = vmatprep.subr.bf16.mxu0 0
    %1796 = vmatpush1.bf16.msra.mxu0 %v775
    %1797 = vmatprep.subr.bf16.mxu0 0
    %1798 = vmatpush1.bf16.msra.mxu0 %v774
    %1799 = vmatprep.subr.bf16.mxu0 0
    %1800 = vmatpush1.bf16.msra.mxu0 %v773
    %1801 = vmatprep.subr.bf16.mxu0 0
    %1802 = vmatpush2.bf16.msra.mxu0 0
    %1803 = vmatprep.subr.bf16.mxu0 0
    %1804 = vmatpush2.bf16.msra.mxu0 0
    %1805 = vmatprep.subr.bf16.mxu0 0
    %1806 = vmatpush2.bf16.msra.mxu0 0
    %1807 = vmatprep.subr.bf16.mxu0 0
    %1808 = vmatpush2.bf16.msra.mxu0 0
    %1809 = vmatprep.subr.bf16.mxu0 0
    %1810 = vmatpush2.bf16.msra.mxu0 0
    %1811 = vmatprep.subr.bf16.mxu0 0
    %1812 = vmatpush2.bf16.msra.mxu0 0
    %1813 = vmatprep.subr.bf16.mxu0 0
    %1814 = vmatpush2.bf16.msra.mxu0 0
    %1815 = vmatprep.subr.bf16.mxu0 0
    %1816 = vmatpush2.bf16.msra.mxu0 0
    %1817 = vmatprep.mubr.bf16.mxu0 0
    %1818 = vmatmul.mubr.bf16.gmra.mxu0 %v1783
    %v1819 = vpop.f32.mrf.mxu0
    %v1820 = vadd.f32 0.0, %v1819
    %v1821 = vpop.f32.mrf.mxu0
    %v1822 = vpop.f32.mrf.mxu0
    %v1823 = vpop.f32.mrf.mxu0
    %1824 = vdwg.mxu0
    %v1825 = vtanh.pop %v1820
    %s1826 = sld [smem:[#allocation2 + $0x13]]
    %v1827 = vstv %s1826
    %v1828 = vmul.f32 %v1825, %v1827
    %v1829 = vadd.f32 %v1773, %v1828
    %s1830 = sld [smem:[#allocation2 + $0x80]]
    %v1831 = vstv %s1830
    %v1832 = vadd.f32 %v1305, %v1831
    %s1833 = sld [smem:[#allocation2 + $0x81]]
    %v1834 = vstv %s1833
    %v1835 = vadd.f32 %v1829, %v1834
    %1837 = vrot.lane.b32.xlu0 %v1835, 4
    %v1838 = vpop.permute.xlu0 %1837
    %1841 = vrot.lane.b32.xlu0 %v572, 8
    %v1842 = vpop.permute.xlu0 %1841
    %vm1844 = vcmask 31744
    %v1845 = vsel %vm1844, %v1832, %v1838
    %vm1846 = vcmask 64512
    %v1847 = vsel %vm1846, %v1845, %v1842
    %vm1848 = vcmask 146432
    %v1849 = vsel %vm1848, %v1847, 0.0
    %1850 = vst [vmem:[%s4] sm:$0xf] %v1849
    // Predicated region
    $region22: #{bothnet_forward.5} parent=1 // pred_check
      _
    $region23: #{bothnet_forward.5} parent=1 // pred_check_branch
      %1852 = sbr.rel (0) target = $region25
    $region24: #{bothnet_forward.5} parent=1 // pred_region
      _
    $region25: #{bothnet_forward.5} parent=1 // pred_fallthru
      _
    // Predicated region
    $region26: #{bothnet_forward.5} parent=1 // pred_check
      _
    $region27: #{bothnet_forward.5} parent=1 // pred_check_branch
      %1854 = sbr.rel (0) target = $region29
    $region28: #{bothnet_forward.5} parent=1 // pred_region
      _
    $region29: #{bothnet_forward.5} parent=1 // pred_fallthru
      _
    %1855 = vsyncpa [#allocation3], 1

</llo_original>
